<compile_context>
chip_gen: v7x
topology: tpu7x:2x2x1
jax: 0.10.0
libtpu: 0.0.40
codegen_flags: <defaults>
</compile_context>

<pallas_src>
import functools
import math

import jax
import jax.numpy as jnp
from jax.experimental import pallas as pl
from jax.experimental.pallas import tpu as pltpu


# ---------------------------------------------------------------------------
# Tiling helper
# ---------------------------------------------------------------------------

def _pick_tile(dim, max_tile, align):
    """Largest tile <= max_tile that is a multiple of `align` and divides dim;
    falls back to the full dim (always legal for BlockSpec)."""
    if dim <= max_tile:
        return dim
    t = (max_tile // align) * align
    while t >= align:
        if dim % t == 0:
            return t
        t -= align
    return dim


# ---------------------------------------------------------------------------
# Tiled linear kernel:  y = act(x @ w + b)
# The f32 output block doubles as the K-axis accumulator (no VMEM scratch).
# ---------------------------------------------------------------------------

def _linear_kernel(x_ref, w_ref, b_ref, o_ref, *, activation):
    k = pl.program_id(2)

    @pl.when(k == 0)
    def _():
        o_ref[...] = jnp.zeros_like(o_ref)

    o_ref[...] += jnp.dot(x_ref[...], w_ref[...],
                          preferred_element_type=jnp.float32)

    @pl.when(k == pl.num_programs(2) - 1)
    def _():
        y = o_ref[...] + b_ref[...]          # (1, tn) bias broadcasts over rows
        if activation == "relu":
            y = jnp.maximum(y, 0.0)
        o_ref[...] = y


def pallas_linear(x, w, b=None, activation=None):
    """y = x @ w + b.  x: (M, K), w: (K, N), b: (N,) or None.

    Operands are cast to bf16 for the MXU, accumulated in f32, output in f32.
    """
    M, K = x.shape
    K2, N = w.shape
    assert K == K2, (K, K2)
    x = x.astype(jnp.bfloat16)
    w = w.astype(jnp.bfloat16)
    b2 = (jnp.zeros((1, N), jnp.float32) if b is None
          else b.reshape(1, N).astype(jnp.float32))

    tm = _pick_tile(M, 256, 8)
    tk = _pick_tile(K, 512, 128)
    tn = _pick_tile(N, 256, 128)

    return pl.pallas_call(
        functools.partial(_linear_kernel, activation=activation),
        out_shape=jax.ShapeDtypeStruct((M, N), jnp.float32),
        grid=(M // tm, N // tn, K // tk),
        in_specs=[
            pl.BlockSpec((tm, tk), lambda i, j, k: (i, k)),
            pl.BlockSpec((tk, tn), lambda i, j, k: (k, j)),
            pl.BlockSpec((1, tn), lambda i, j, k: (0, j)),
        ],
        out_specs=pl.BlockSpec((tm, tn), lambda i, j, k: (i, j)),
        compiler_params=pltpu.CompilerParams(
            dimension_semantics=("parallel", "parallel", "arbitrary")),
    )(x, w, b2)


# ---------------------------------------------------------------------------
# Multi-head attention kernel with fused output projection.
# All heads of one batch slice per grid step, lane-dense (Lq, E) output,
# in-kernel iota causal mask, softmax in f32, out-proj on the MXU.
# ---------------------------------------------------------------------------

def _mha_kernel(q_ref, k_ref, v_ref, wo_ref, bo_ref, o_ref, *,
                num_heads, scale, causal):
    q = q_ref[0]                       # (Lq, E) bf16
    k = k_ref[0]                       # (Lk, E) bf16
    v = v_ref[0]                       # (Lk, E) bf16
    Lq, E = q.shape
    Lk = k.shape[0]
    hd = E // num_heads

    if causal:
        row = jax.lax.broadcasted_iota(jnp.int32, (Lq, Lk), 0)
        col = jax.lax.broadcasted_iota(jnp.int32, (Lq, Lk), 1)
        bias = jnp.where(col > row, -1e30, 0.0).astype(jnp.float32)

    outs = []
    for h in range(num_heads):
        lo, hi = h * hd, (h + 1) * hd
        qh, kh, vh = q[:, lo:hi], k[:, lo:hi], v[:, lo:hi]
        s = jax.lax.dot_general(qh, kh, (((1,), (1,)), ((), ())),
                                preferred_element_type=jnp.float32) * scale
        if causal:
            s = s + bias
        s = s - jnp.max(s, axis=-1, keepdims=True)          # f32 softmax
        p = jnp.exp(s)
        p = p * pl.reciprocal(jnp.sum(p, axis=-1, keepdims=True), approx=True)
        outs.append(jnp.dot(p.astype(v.dtype), vh,
                            preferred_element_type=jnp.float32))
    ctx = jnp.concatenate(outs, axis=-1)                     # (Lq, E) f32
    # fused output projection: (Lq, E) @ (E, E) + bias
    proj = jnp.dot(ctx.astype(jnp.bfloat16), wo_ref[...],
                   preferred_element_type=jnp.float32)
    o_ref[0] = proj + bo_ref[...]


def pallas_attention(q, k, v, out_w, out_b, num_heads, causal):
    """q: (N, Lq, E), k/v: (N, Lk, E).  Returns projected attention (N, Lq, E) f32."""
    N, Lq, E = q.shape
    Lk = k.shape[1]
    assert E % num_heads == 0
    scale = 1.0 / math.sqrt(E // num_heads)
    return pl.pallas_call(
        functools.partial(_mha_kernel, num_heads=num_heads, scale=scale,
                          causal=causal),
        out_shape=jax.ShapeDtypeStruct((N, Lq, E), jnp.float32),
        grid=(N,),
        in_specs=[
            pl.BlockSpec((1, Lq, E), lambda i: (i, 0, 0)),
            pl.BlockSpec((1, Lk, E), lambda i: (i, 0, 0)),
            pl.BlockSpec((1, Lk, E), lambda i: (i, 0, 0)),
            pl.BlockSpec((E, E), lambda i: (0, 0)),
            pl.BlockSpec((1, E), lambda i: (0, 0)),
        ],
        out_specs=pl.BlockSpec((1, Lq, E), lambda i: (i, 0, 0)),
        compiler_params=pltpu.CompilerParams(dimension_semantics=("parallel",)),
    )(q.astype(jnp.bfloat16), k.astype(jnp.bfloat16), v.astype(jnp.bfloat16),
      out_w.astype(jnp.bfloat16), out_b.reshape(1, E).astype(jnp.float32))


# ---------------------------------------------------------------------------
# Fused (residual-add +) LayerNorm kernel, row tiled
# ---------------------------------------------------------------------------

def _ln_body(h, g, b, eps):
    mu = jnp.mean(h, axis=-1, keepdims=True)
    d = h - mu
    var = jnp.mean(d * d, axis=-1, keepdims=True)
    return d * jax.lax.rsqrt(var + eps) * g + b


def _ln_kernel(x_ref, g_ref, b_ref, o_ref, *, eps):
    o_ref[...] = _ln_body(x_ref[...], g_ref[...], b_ref[...], eps)


def _add_ln_kernel(x_ref, r_ref, g_ref, b_ref, o_ref, *, eps):
    o_ref[...] = _ln_body(x_ref[...] + r_ref[...], g_ref[...], b_ref[...], eps)


def pallas_layernorm(x, gamma, beta, res=None, eps=1e-5):
    """LayerNorm(x [+ res]) over the last dim.  x, res: (M, E) f32."""
    M, E = x.shape
    tm = _pick_tile(M, 512, 8)
    g2 = gamma.reshape(1, E).astype(jnp.float32)
    b2 = beta.reshape(1, E).astype(jnp.float32)
    row_spec = pl.BlockSpec((tm, E), lambda i: (i, 0))
    vec_spec = pl.BlockSpec((1, E), lambda i: (0, 0))
    cp = pltpu.CompilerParams(dimension_semantics=("parallel",))
    if res is None:
        return pl.pallas_call(
            functools.partial(_ln_kernel, eps=eps),
            out_shape=jax.ShapeDtypeStruct((M, E), jnp.float32),
            grid=(M // tm,),
            in_specs=[row_spec, vec_spec, vec_spec],
            out_specs=row_spec,
            compiler_params=cp,
        )(x.astype(jnp.float32), g2, b2)
    return pl.pallas_call(
        functools.partial(_add_ln_kernel, eps=eps),
        out_shape=jax.ShapeDtypeStruct((M, E), jnp.float32),
        grid=(M // tm,),
        in_specs=[row_spec, row_spec, vec_spec, vec_spec],
        out_specs=row_spec,
        compiler_params=cp,
    )(x.astype(jnp.float32), res.astype(jnp.float32), g2, b2)


# ---------------------------------------------------------------------------
# Transformer building blocks (glue around the Pallas kernels)
# ---------------------------------------------------------------------------

def multi_head_attention(query, key_value, p, num_heads, *, causal, is_self):
    """query: (Lq, N, E); key_value: (Lk, N, E)  [batch_first=False layout]."""
    Lq, N, E = query.shape
    Lk = key_value.shape[0]
    q2d = query.reshape(Lq * N, E)
    if is_self:
        # fused QKV projection: one (E, 3E) matmul
        qkv = pallas_linear(q2d, p["in_w"], p["in_b"])            # (Lq*N, 3E)
        q, k, v = qkv[:, :E], qkv[:, E:2 * E], qkv[:, 2 * E:]
        k = k.reshape(Lq, N, E)
        v = v.reshape(Lq, N, E)
    else:
        kv2d = key_value.reshape(Lk * N, E)
        q = pallas_linear(q2d, p["in_w"][:, :E], p["in_b"][:E])
        kv = pallas_linear(kv2d, p["in_w"][:, E:], p["in_b"][E:])  # (Lk*N, 2E)
        k, v = kv[:, :E], kv[:, E:]
        k = k.reshape(Lk, N, E)
        v = v.reshape(Lk, N, E)
    q = q.reshape(Lq, N, E)

    # batch-major for the attention kernel: (N, L, E); out-proj fused inside
    out = pallas_attention(q.transpose(1, 0, 2), k.transpose(1, 0, 2),
                           v.transpose(1, 0, 2), p["out_w"], p["out_b"],
                           num_heads, causal)                     # (N, Lq, E)
    return out.transpose(1, 0, 2)                                 # (Lq, N, E)


def encoder_layer(x, p, num_heads):
    L, N, E = x.shape
    x2 = x.reshape(L * N, E)
    sa = multi_head_attention(x, x, p["self_attn"], num_heads,
                              causal=False, is_self=True)
    x2 = pallas_layernorm(sa.reshape(L * N, E), p["norm1_w"], p["norm1_b"],
                          res=x2)
    h = pallas_linear(x2, p["lin1_w"], p["lin1_b"], activation="relu")
    h = pallas_linear(h, p["lin2_w"], p["lin2_b"])
    x2 = pallas_layernorm(h, p["norm2_w"], p["norm2_b"], res=x2)
    return x2.reshape(L, N, E)


def decoder_layer(x, memory, p, num_heads):
    L, N, E = x.shape
    x2 = x.reshape(L * N, E)
    sa = multi_head_attention(x, x, p["self_attn"], num_heads,
                              causal=True, is_self=True)
    x2 = pallas_layernorm(sa.reshape(L * N, E), p["norm1_w"], p["norm1_b"],
                          res=x2)
    x3 = x2.reshape(L, N, E)
    ca = multi_head_attention(x3, memory, p["cross_attn"], num_heads,
                              causal=False, is_self=False)
    x2 = pallas_layernorm(ca.reshape(L * N, E), p["norm2_w"], p["norm2_b"],
                          res=x2)
    h = pallas_linear(x2, p["lin1_w"], p["lin1_b"], activation="relu")
    h = pallas_linear(h, p["lin2_w"], p["lin2_b"])
    x2 = pallas_layernorm(h, p["norm3_w"], p["norm3_b"], res=x2)
    return x2.reshape(L, N, E)


def music_transformer_forward(params, tokens, *, num_heads, max_length):
    B, S = tokens.shape
    assert B == S, "batch_first=False + (S,S) tgt_mask requires B == S"
    V, E = params["embedding"].shape

    # token embedding: plain gather (no one-hot matmul)
    x_embed = jnp.take(params["embedding"], tokens, axis=0)          # (B, S, E)

    # relative positional embedding
    position = jnp.arange(S)
    dists = position[:, None] - position[None, :] + max_length - 1   # (S, S)
    # TODO(synk): the PyTorch module adds a (B,S,S,E) relative-embedding tensor
    # to the (B,S,E) token embedding; the resulting 4-D tensor crashes
    # nn.Transformer.  We add the mean of the relative embeddings over the
    # second position axis so the addition is well defined.
    rel = jnp.take(params["pos_table"], dists, axis=0)               # (S, S, E)
    pos_embed = jnp.mean(rel, axis=1)                                # (S, E)
    x = (x_embed + pos_embed[None, :, :]).astype(jnp.float32)        # (B, S, E)

    # nn.Transformer (batch_first=False): axis 0 = seq (L=B), axis 1 = batch (N=S)
    L, N = B, S

    # encoder stack (+ final LayerNorm, as in nn.Transformer)
    mem = x
    for p in params["encoder_layers"]:
        mem = encoder_layer(mem, p, num_heads)
    mem = pallas_layernorm(mem.reshape(L * N, E), params["enc_norm_w"],
                           params["enc_norm_b"]).reshape(L, N, E)

    # decoder stack (+ final LayerNorm); tgt = src = x, tgt_mask = causal
    out = x
    for p in params["decoder_layers"]:
        out = decoder_layer(out, mem, p, num_heads)
    out = pallas_layernorm(out.reshape(L * N, E), params["dec_norm_w"],
                           params["dec_norm_b"])

    # final projection to vocabulary
    logits = pallas_linear(out, params["fc_w"], params["fc_b"])
    return logits.reshape(B, S, V)


# ---------------------------------------------------------------------------
# Deterministic parameter initialization.
# Matmul weights are stored pre-transposed as (in, out) in bf16; embedding /
# positional tables, biases and LayerNorm params stay in f32.
# ---------------------------------------------------------------------------

def init_params(key, vocab_size, embed_dim, num_heads, num_layers, max_length,
                num_decoder_layers=6, dim_feedforward=2048):
    keys = iter(jax.random.split(key, 256))

    def w(n_in, n_out, dtype=jnp.bfloat16):
        return (jax.random.normal(next(keys), (n_in, n_out), jnp.float32)
                * 0.02).astype(dtype)

    E, F = embed_dim, dim_feedforward

    def attn():
        return {"in_w": w(E, 3 * E), "in_b": jnp.zeros((3 * E,), jnp.float32),
                "out_w": w(E, E), "out_b": jnp.zeros((E,), jnp.float32)}

    def enc_layer():
        return {"self_attn": attn(),
                "lin1_w": w(E, F), "lin1_b": jnp.zeros((F,), jnp.float32),
                "lin2_w": w(F, E), "lin2_b": jnp.zeros((E,), jnp.float32),
                "norm1_w": jnp.ones((E,), jnp.float32),
                "norm1_b": jnp.zeros((E,), jnp.float32),
                "norm2_w": jnp.ones((E,), jnp.float32),
                "norm2_b": jnp.zeros((E,), jnp.float32)}

    def dec_layer():
        d = enc_layer()
        d["cross_attn"] = attn()
        d["norm3_w"] = jnp.ones((E,), jnp.float32)
        d["norm3_b"] = jnp.zeros((E,), jnp.float32)
        return d

    return {
        "embedding": w(vocab_size, E, jnp.float32),
        "pos_table": w(2 * max_length - 1, E, jnp.float32),
        "encoder_layers": [enc_layer() for _ in range(num_layers)],
        "decoder_layers": [dec_layer() for _ in range(num_decoder_layers)],
        "enc_norm_w": jnp.ones((E,), jnp.float32),
        "enc_norm_b": jnp.zeros((E,), jnp.float32),
        "dec_norm_w": jnp.ones((E,), jnp.float32),
        "dec_norm_b": jnp.zeros((E,), jnp.float32),
        "fc_w": w(E, vocab_size),
        "fc_b": jnp.zeros((vocab_size,), jnp.float32),
    }


if __name__ == "__main__":
    vocab_size, embed_dim, num_heads, num_layers, max_length = 32, 32, 4, 2, 16
    B = S = 8  # B == S required by the reference's batch_first=False + (S,S) mask
    assert embed_dim % num_heads == 0

    key = jax.random.PRNGKey(0)
    pkey, xkey = jax.random.split(key)
    params = init_params(pkey, vocab_size, embed_dim, num_heads, num_layers,
                         max_length)
    tokens = jax.random.randint(xkey, (B, S), 0, vocab_size, dtype=jnp.int32)

    fwd = jax.jit(functools.partial(music_transformer_forward,
                                    num_heads=num_heads, max_length=max_length))
    logits = fwd(params, tokens)
    jax.block_until_ready(logits)
    assert logits.shape == (B, S, vocab_size)
    assert bool(jnp.all(jnp.isfinite(logits)))
    print("KERNEL_OK")
</pallas_src>

<mosaic_0001>
module attributes {stable_mosaic.version = 11 : i64} {
  func.func @_linear_kernel(%arg0: i32, %arg1: i32, %arg2: i32, %arg3: memref<64x32xbf16, #tpu.memory_space<vmem>>, %arg4: memref<32x96xbf16, #tpu.memory_space<vmem>>, %arg5: memref<1x96xf32, #tpu.memory_space<vmem>>, %arg6: memref<64x96xf32, #tpu.memory_space<vmem>>) attributes {dimension_semantics = [#tpu.dimension_semantics<parallel>, #tpu.dimension_semantics<parallel>, #tpu.dimension_semantics<arbitrary>], iteration_bounds = array<i64: 1, 1, 1>, scalar_prefetch = 0 : i64, scratch_operands = 0 : i64, tpu.core_type = #tpu.core_type<tc>, window_params = [{transform_indices = @transform_0, window_bounds = array<i64: 64, 32>}, {transform_indices = @transform_1, window_bounds = array<i64: 32, 96>}, {transform_indices = @transform_2, window_bounds = array<i64: 1, 96>}, {transform_indices = @transform_3, window_bounds = array<i64: 64, 96>}]} {
    %c0_i32 = arith.constant 0 : i32
    %0 = arith.cmpi eq, %arg2, %c0_i32 : i32
    %1 = arith.extui %0 : i1 to i32
    %c0_i32_0 = arith.constant 0 : i32
    %2 = arith.cmpi ne, %1, %c0_i32_0 : i32
    scf.if %2 {
      %cst_10 = arith.constant 0.000000e+00 : f32
      %12 = vector.broadcast %cst_10 : f32 to vector<64x96xf32>
      %c0_11 = arith.constant 0 : index
      %c0_12 = arith.constant 0 : index
      %13 = vector.load %arg6[%c0_11, %c0_12] : memref<64x96xf32, #tpu.memory_space<vmem>>, vector<64x96xf32>
      tpu.vector_store %arg6[%c0_11, %c0_12], %12 {strides = array<i32>} : memref<64x96xf32, #tpu.memory_space<vmem>>, vector<64x96xf32>,
    } else {
    }
    %c0 = arith.constant 0 : index
    %c0_1 = arith.constant 0 : index
    %3 = vector.load %arg6[%c0, %c0_1] : memref<64x96xf32, #tpu.memory_space<vmem>>, vector<64x96xf32>
    %c0_2 = arith.constant 0 : index
    %c0_3 = arith.constant 0 : index
    %4 = vector.load %arg3[%c0_2, %c0_3] : memref<64x32xbf16, #tpu.memory_space<vmem>>, vector<64x32xbf16>
    %c0_4 = arith.constant 0 : index
    %c0_5 = arith.constant 0 : index
    %5 = vector.load %arg4[%c0_4, %c0_5] : memref<32x96xbf16, #tpu.memory_space<vmem>>, vector<32x96xbf16>
    %cst = arith.constant dense<0.000000e+00> : vector<64x96xf32>
    %6 = tpu.matmul %4, %5, %cst {dimension_numbers = #tpu.dot_dimension_numbers<[1], [0], [0], [1], [0, 0, 1, 1], [], []>} : vector<64x32xbf16>, vector<32x96xbf16>, vector<64x96xf32> -> vector<64x96xf32>
    %7 = arith.addf %3, %6 : vector<64x96xf32>
    %c0_6 = arith.constant 0 : index
    %c0_7 = arith.constant 0 : index
    %8 = vector.load %arg6[%c0_6, %c0_7] : memref<64x96xf32, #tpu.memory_space<vmem>>, vector<64x96xf32>
    tpu.vector_store %arg6[%c0_6, %c0_7], %7 {strides = array<i32>} : memref<64x96xf32, #tpu.memory_space<vmem>>, vector<64x96xf32>,
    %c0_i32_8 = arith.constant 0 : i32
    %9 = arith.cmpi eq, %arg2, %c0_i32_8 : i32
    %10 = arith.extui %9 : i1 to i32
    %c0_i32_9 = arith.constant 0 : i32
    %11 = arith.cmpi ne, %10, %c0_i32_9 : i32
    scf.if %11 {
      %c0_10 = arith.constant 0 : index
      %c0_11 = arith.constant 0 : index
      %12 = vector.load %arg6[%c0_10, %c0_11] : memref<64x96xf32, #tpu.memory_space<vmem>>, vector<64x96xf32>
      %c0_12 = arith.constant 0 : index
      %c0_13 = arith.constant 0 : index
      %13 = vector.load %arg5[%c0_12, %c0_13] : memref<1x96xf32, #tpu.memory_space<vmem>>, vector<1x96xf32>
      %14 = vector.broadcast %13 : vector<1x96xf32> to vector<64x96xf32>
      %15 = arith.addf %12, %14 : vector<64x96xf32>
      %c0_14 = arith.constant 0 : index
      %c0_15 = arith.constant 0 : index
      %16 = vector.load %arg6[%c0_14, %c0_15] : memref<64x96xf32, #tpu.memory_space<vmem>>, vector<64x96xf32>
      tpu.vector_store %arg6[%c0_14, %c0_15], %15 {strides = array<i32>} : memref<64x96xf32, #tpu.memory_space<vmem>>, vector<64x96xf32>,
    } else {
    }
    return
  }
  func.func @transform_0(%arg0: i32, %arg1: i32, %arg2: i32) -> (i32, i32) {
    %c0_i32 = arith.constant 0 : i32
    return %arg0, %arg2 : i32, i32
  }
  func.func @transform_1(%arg0: i32, %arg1: i32, %arg2: i32) -> (i32, i32) {
    %c0_i32 = arith.constant 0 : i32
    return %arg2, %arg1 : i32, i32
  }
  func.func @transform_2(%arg0: i32, %arg1: i32, %arg2: i32) -> (i32, i32) {
    %c0_i32 = arith.constant 0 : i32
    %c0_i32_0 = arith.constant 0 : i32
    return %c0_i32, %arg1 : i32, i32
  }
  func.func @transform_3(%arg0: i32, %arg1: i32, %arg2: i32) -> (i32, i32) {
    %c0_i32 = arith.constant 0 : i32
    return %arg0, %arg1 : i32, i32
  }
}

module attributes {stable_mosaic.version = 11 : i64} {
  func.func @_mha_kernel(%arg0: i32, %arg1: memref<1x8x32xbf16, #tpu.memory_space<vmem>>, %arg2: memref<1x8x32xbf16, #tpu.memory_space<vmem>>, %arg3: memref<1x8x32xbf16, #tpu.memory_space<vmem>>, %arg4: memref<32x32xbf16, #tpu.memory_space<vmem>>, %arg5: memref<1x32xf32, #tpu.memory_space<vmem>>, %arg6: memref<1x8x32xf32, #tpu.memory_space<vmem>>) attributes {dimension_semantics = [#tpu.dimension_semantics<parallel>], iteration_bounds = array<i64: 8>, scalar_prefetch = 0 : i64, scratch_operands = 0 : i64, tpu.core_type = #tpu.core_type<tc>, window_params = [{transform_indices = @transform_0, window_bounds = array<i64: 1, 8, 32>}, {transform_indices = @transform_1, window_bounds = array<i64: 1, 8, 32>}, {transform_indices = @transform_2, window_bounds = array<i64: 1, 8, 32>}, {pipeline_mode = #tpu.pipeline_mode<synchronous>, transform_indices = @transform_3, window_bounds = array<i64: 32, 32>}, {pipeline_mode = #tpu.pipeline_mode<synchronous>, transform_indices = @transform_4, window_bounds = array<i64: 1, 32>}, {transform_indices = @transform_5, window_bounds = array<i64: 1, 8, 32>}]} {
    %c0 = arith.constant 0 : index
    %c0_0 = arith.constant 0 : index
    %c0_1 = arith.constant 0 : index
    %0 = vector.load %arg1[%c0, %c0_0, %c0_1] : memref<1x8x32xbf16, #tpu.memory_space<vmem>>, vector<1x8x32xbf16>
    %1 = vector.shape_cast %0 : vector<1x8x32xbf16> to vector<8x32xbf16>
    %c0_2 = arith.constant 0 : index
    %c0_3 = arith.constant 0 : index
    %c0_4 = arith.constant 0 : index
    %2 = vector.load %arg2[%c0_2, %c0_3, %c0_4] : memref<1x8x32xbf16, #tpu.memory_space<vmem>>, vector<1x8x32xbf16>
    %3 = vector.shape_cast %2 : vector<1x8x32xbf16> to vector<8x32xbf16>
    %c0_5 = arith.constant 0 : index
    %c0_6 = arith.constant 0 : index
    %c0_7 = arith.constant 0 : index
    %4 = vector.load %arg3[%c0_5, %c0_6, %c0_7] : memref<1x8x32xbf16, #tpu.memory_space<vmem>>, vector<1x8x32xbf16>
    %5 = vector.shape_cast %4 : vector<1x8x32xbf16> to vector<8x32xbf16>
    %6 = vector.extract_strided_slice %1 {offsets = [0, 0], sizes = [8, 8], strides = [1, 1]} : vector<8x32xbf16> to vector<8x8xbf16>
    %7 = vector.extract_strided_slice %3 {offsets = [0, 0], sizes = [8, 8], strides = [1, 1]} : vector<8x32xbf16> to vector<8x8xbf16>
    %8 = vector.extract_strided_slice %5 {offsets = [0, 0], sizes = [8, 8], strides = [1, 1]} : vector<8x32xbf16> to vector<8x8xbf16>
    %cst = arith.constant dense<0.000000e+00> : vector<8x8xf32>
    %9 = tpu.matmul %6, %7, %cst {dimension_numbers = #tpu.dot_dimension_numbers<[1], [1], [0], [0], [0, 0, 1, 0], [], []>} : vector<8x8xbf16>, vector<8x8xbf16>, vector<8x8xf32> -> vector<8x8xf32>
    %cst_8 = arith.constant 0.353553385 : f32
    %10 = vector.broadcast %cst_8 : f32 to vector<8x8xf32>
    %11 = arith.mulf %9, %10 : vector<8x8xf32>
    %cst_9 = arith.constant dense<0xFF800000> : vector<8xf32>
    %12 = vector.multi_reduction <maximumf>, %11, %cst_9 [1] : vector<8x8xf32> to vector<8xf32>
    %13 = vector.shape_cast %12 : vector<8xf32> to vector<8x1xf32>
    %14 = vector.broadcast %13 : vector<8x1xf32> to vector<8x8xf32>
    %15 = arith.subf %11, %14 : vector<8x8xf32>
    %16 = math.exp %15 : vector<8x8xf32>
    %cst_10 = arith.constant dense<0.000000e+00> : vector<8xf32>
    %17 = vector.multi_reduction <add>, %16, %cst_10 [1] : vector<8x8xf32> to vector<8xf32>
    %18 = vector.shape_cast %17 : vector<8xf32> to vector<8x1xf32>
    %19 = tpu.reciprocal %18 {approx = true} : vector<8x1xf32> -> vector<8x1xf32>
    %20 = vector.broadcast %19 : vector<8x1xf32> to vector<8x8xf32>
    %21 = arith.mulf %16, %20 : vector<8x8xf32>
    %22 = arith.truncf %21 : vector<8x8xf32> to vector<8x8xbf16>
    %cst_11 = arith.constant dense<0.000000e+00> : vector<8x8xf32>
    %23 = tpu.matmul %22, %8, %cst_11 {dimension_numbers = #tpu.dot_dimension_numbers<[1], [0], [0], [1], [0, 0, 1, 1], [], []>} : vector<8x8xbf16>, vector<8x8xbf16>, vector<8x8xf32> -> vector<8x8xf32>
    %24 = vector.extract_strided_slice %1 {offsets = [0, 8], sizes = [8, 8], strides = [1, 1]} : vector<8x32xbf16> to vector<8x8xbf16>
    %25 = vector.extract_strided_slice %3 {offsets = [0, 8], sizes = [8, 8], strides = [1, 1]} : vector<8x32xbf16> to vector<8x8xbf16>
    %26 = vector.extract_strided_slice %5 {offsets = [0, 8], sizes = [8, 8], strides = [1, 1]} : vector<8x32xbf16> to vector<8x8xbf16>
    %cst_12 = arith.constant dense<0.000000e+00> : vector<8x8xf32>
    %27 = tpu.matmul %24, %25, %cst_12 {dimension_numbers = #tpu.dot_dimension_numbers<[1], [1], [0], [0], [0, 0, 1, 0], [], []>} : vector<8x8xbf16>, vector<8x8xbf16>, vector<8x8xf32> -> vector<8x8xf32>
    %cst_13 = arith.constant 0.353553385 : f32
    %28 = vector.broadcast %cst_13 : f32 to vector<8x8xf32>
    %29 = arith.mulf %27, %28 : vector<8x8xf32>
    %cst_14 = arith.constant dense<0xFF800000> : vector<8xf32>
    %30 = vector.multi_reduction <maximumf>, %29, %cst_14 [1] : vector<8x8xf32> to vector<8xf32>
    %31 = vector.shape_cast %30 : vector<8xf32> to vector<8x1xf32>
    %32 = vector.broadcast %31 : vector<8x1xf32> to vector<8x8xf32>
    %33 = arith.subf %29, %32 : vector<8x8xf32>
    %34 = math.exp %33 : vector<8x8xf32>
    %cst_15 = arith.constant dense<0.000000e+00> : vector<8xf32>
    %35 = vector.multi_reduction <add>, %34, %cst_15 [1] : vector<8x8xf32> to vector<8xf32>
    %36 = vector.shape_cast %35 : vector<8xf32> to vector<8x1xf32>
    %37 = tpu.reciprocal %36 {approx = true} : vector<8x1xf32> -> vector<8x1xf32>
    %38 = vector.broadcast %37 : vector<8x1xf32> to vector<8x8xf32>
    %39 = arith.mulf %34, %38 : vector<8x8xf32>
    %40 = arith.truncf %39 : vector<8x8xf32> to vector<8x8xbf16>
    %cst_16 = arith.constant dense<0.000000e+00> : vector<8x8xf32>
    %41 = tpu.matmul %40, %26, %cst_16 {dimension_numbers = #tpu.dot_dimension_numbers<[1], [0], [0], [1], [0, 0, 1, 1], [], []>} : vector<8x8xbf16>, vector<8x8xbf16>, vector<8x8xf32> -> vector<8x8xf32>
    %42 = vector.extract_strided_slice %1 {offsets = [0, 16], sizes = [8, 8], strides = [1, 1]} : vector<8x32xbf16> to vector<8x8xbf16>
    %43 = vector.extract_strided_slice %3 {offsets = [0, 16], sizes = [8, 8], strides = [1, 1]} : vector<8x32xbf16> to vector<8x8xbf16>
    %44 = vector.extract_strided_slice %5 {offsets = [0, 16], sizes = [8, 8], strides = [1, 1]} : vector<8x32xbf16> to vector<8x8xbf16>
    %cst_17 = arith.constant dense<0.000000e+00> : vector<8x8xf32>
    %45 = tpu.matmul %42, %43, %cst_17 {dimension_numbers = #tpu.dot_dimension_numbers<[1], [1], [0], [0], [0, 0, 1, 0], [], []>} : vector<8x8xbf16>, vector<8x8xbf16>, vector<8x8xf32> -> vector<8x8xf32>
    %cst_18 = arith.constant 0.353553385 : f32
    %46 = vector.broadcast %cst_18 : f32 to vector<8x8xf32>
    %47 = arith.mulf %45, %46 : vector<8x8xf32>
    %cst_19 = arith.constant dense<0xFF800000> : vector<8xf32>
    %48 = vector.multi_reduction <maximumf>, %47, %cst_19 [1] : vector<8x8xf32> to vector<8xf32>
    %49 = vector.shape_cast %48 : vector<8xf32> to vector<8x1xf32>
    %50 = vector.broadcast %49 : vector<8x1xf32> to vector<8x8xf32>
    %51 = arith.subf %47, %50 : vector<8x8xf32>
    %52 = math.exp %51 : vector<8x8xf32>
    %cst_20 = arith.constant dense<0.000000e+00> : vector<8xf32>
    %53 = vector.multi_reduction <add>, %52, %cst_20 [1] : vector<8x8xf32> to vector<8xf32>
    %54 = vector.shape_cast %53 : vector<8xf32> to vector<8x1xf32>
    %55 = tpu.reciprocal %54 {approx = true} : vector<8x1xf32> -> vector<8x1xf32>
    %56 = vector.broadcast %55 : vector<8x1xf32> to vector<8x8xf32>
    %57 = arith.mulf %52, %56 : vector<8x8xf32>
    %58 = arith.truncf %57 : vector<8x8xf32> to vector<8x8xbf16>
    %cst_21 = arith.constant dense<0.000000e+00> : vector<8x8xf32>
    %59 = tpu.matmul %58, %44, %cst_21 {dimension_numbers = #tpu.dot_dimension_numbers<[1], [0], [0], [1], [0, 0, 1, 1], [], []>} : vector<8x8xbf16>, vector<8x8xbf16>, vector<8x8xf32> -> vector<8x8xf32>
    %60 = vector.extract_strided_slice %1 {offsets = [0, 24], sizes = [8, 8], strides = [1, 1]} : vector<8x32xbf16> to vector<8x8xbf16>
    %61 = vector.extract_strided_slice %3 {offsets = [0, 24], sizes = [8, 8], strides = [1, 1]} : vector<8x32xbf16> to vector<8x8xbf16>
    %62 = vector.extract_strided_slice %5 {offsets = [0, 24], sizes = [8, 8], strides = [1, 1]} : vector<8x32xbf16> to vector<8x8xbf16>
    %cst_22 = arith.constant dense<0.000000e+00> : vector<8x8xf32>
    %63 = tpu.matmul %60, %61, %cst_22 {dimension_numbers = #tpu.dot_dimension_numbers<[1], [1], [0], [0], [0, 0, 1, 0], [], []>} : vector<8x8xbf16>, vector<8x8xbf16>, vector<8x8xf32> -> vector<8x8xf32>
    %cst_23 = arith.constant 0.353553385 : f32
    %64 = vector.broadcast %cst_23 : f32 to vector<8x8xf32>
    %65 = arith.mulf %63, %64 : vector<8x8xf32>
    %cst_24 = arith.constant dense<0xFF800000> : vector<8xf32>
    %66 = vector.multi_reduction <maximumf>, %65, %cst_24 [1] : vector<8x8xf32> to vector<8xf32>
    %67 = vector.shape_cast %66 : vector<8xf32> to vector<8x1xf32>
    %68 = vector.broadcast %67 : vector<8x1xf32> to vector<8x8xf32>
    %69 = arith.subf %65, %68 : vector<8x8xf32>
    %70 = math.exp %69 : vector<8x8xf32>
    %cst_25 = arith.constant dense<0.000000e+00> : vector<8xf32>
    %71 = vector.multi_reduction <add>, %70, %cst_25 [1] : vector<8x8xf32> to vector<8xf32>
    %72 = vector.shape_cast %71 : vector<8xf32> to vector<8x1xf32>
    %73 = tpu.reciprocal %72 {approx = true} : vector<8x1xf32> -> vector<8x1xf32>
    %74 = vector.broadcast %73 : vector<8x1xf32> to vector<8x8xf32>
    %75 = arith.mulf %70, %74 : vector<8x8xf32>
    %76 = arith.truncf %75 : vector<8x8xf32> to vector<8x8xbf16>
    %cst_26 = arith.constant dense<0.000000e+00> : vector<8x8xf32>
    %77 = tpu.matmul %76, %62, %cst_26 {dimension_numbers = #tpu.dot_dimension_numbers<[1], [0], [0], [1], [0, 0, 1, 1], [], []>} : vector<8x8xbf16>, vector<8x8xbf16>, vector<8x8xf32> -> vector<8x8xf32>
    %78 = tpu.concatenate %23, %41, %59, %77 in 1 : vector<8x8xf32>, vector<8x8xf32>, vector<8x8xf32>, vector<8x8xf32> -> vector<8x32xf32>
    %79 = arith.truncf %78 : vector<8x32xf32> to vector<8x32xbf16>
    %c0_27 = arith.constant 0 : index
    %c0_28 = arith.constant 0 : index
    %80 = vector.load %arg4[%c0_27, %c0_28] : memref<32x32xbf16, #tpu.memory_space<vmem>>, vector<32x32xbf16>
    %cst_29 = arith.constant dense<0.000000e+00> : vector<8x32xf32>
    %81 = tpu.matmul %79, %80, %cst_29 {dimension_numbers = #tpu.dot_dimension_numbers<[1], [0], [0], [1], [0, 0, 1, 1], [], []>} : vector<8x32xbf16>, vector<32x32xbf16>, vector<8x32xf32> -> vector<8x32xf32>
    %c0_30 = arith.constant 0 : index
    %c0_31 = arith.constant 0 : index
    %82 = vector.load %arg5[%c0_30, %c0_31] : memref<1x32xf32, #tpu.memory_space<vmem>>, vector<1x32xf32>
    %83 = vector.broadcast %82 : vector<1x32xf32> to vector<8x32xf32>
    %84 = arith.addf %81, %83 : vector<8x32xf32>
    %c0_32 = arith.constant 0 : index
    %c0_33 = arith.constant 0 : index
    %c0_34 = arith.constant 0 : index
    %85 = vector.load %arg6[%c0_32, %c0_33, %c0_34] : memref<1x8x32xf32, #tpu.memory_space<vmem>>, vector<1x8x32xf32>
    %86 = vector.shape_cast %85 : vector<1x8x32xf32> to vector<8x32xf32>
    %87 = vector.shape_cast %84 : vector<8x32xf32> to vector<1x8x32xf32>
    tpu.vector_store %arg6[%c0_32, %c0_33, %c0_34], %87 {strides = array<i32>} : memref<1x8x32xf32, #tpu.memory_space<vmem>>, vector<1x8x32xf32>,
    return
  }
  func.func @transform_0(%arg0: i32) -> (i32, i32, i32) {
    %c0_i32 = arith.constant 0 : i32
    %c0_i32_0 = arith.constant 0 : i32
    %c0_i32_1 = arith.constant 0 : i32
    return %arg0, %c0_i32, %c0_i32_0 : i32, i32, i32
  }
  func.func @transform_1(%arg0: i32) -> (i32, i32, i32) {
    %c0_i32 = arith.constant 0 : i32
    %c0_i32_0 = arith.constant 0 : i32
    %c0_i32_1 = arith.constant 0 : i32
    return %arg0, %c0_i32, %c0_i32_0 : i32, i32, i32
  }
  func.func @transform_2(%arg0: i32) -> (i32, i32, i32) {
    %c0_i32 = arith.constant 0 : i32
    %c0_i32_0 = arith.constant 0 : i32
    %c0_i32_1 = arith.constant 0 : i32
    return %arg0, %c0_i32, %c0_i32_0 : i32, i32, i32
  }
  func.func @transform_3(%arg0: i32) -> (i32, i32) {
    %c0_i32 = arith.constant 0 : i32
    %c0_i32_0 = arith.constant 0 : i32
    %c0_i32_1 = arith.constant 0 : i32
    return %c0_i32, %c0_i32_0 : i32, i32
  }
  func.func @transform_4(%arg0: i32) -> (i32, i32) {
    %c0_i32 = arith.constant 0 : i32
    %c0_i32_0 = arith.constant 0 : i32
    %c0_i32_1 = arith.constant 0 : i32
    return %c0_i32, %c0_i32_0 : i32, i32
  }
  func.func @transform_5(%arg0: i32) -> (i32, i32, i32) {
    %c0_i32 = arith.constant 0 : i32
    %c0_i32_0 = arith.constant 0 : i32
    %c0_i32_1 = arith.constant 0 : i32
    return %arg0, %c0_i32, %c0_i32_0 : i32, i32, i32
  }
}

module attributes {stable_mosaic.version = 11 : i64} {
  func.func @_add_ln_kernel(%arg0: i32, %arg1: memref<64x32xf32, #tpu.memory_space<vmem>>, %arg2: memref<64x32xf32, #tpu.memory_space<vmem>>, %arg3: memref<1x32xf32, #tpu.memory_space<vmem>>, %arg4: memref<1x32xf32, #tpu.memory_space<vmem>>, %arg5: memref<64x32xf32, #tpu.memory_space<vmem>>) attributes {dimension_semantics = [#tpu.dimension_semantics<parallel>], iteration_bounds = array<i64: 1>, scalar_prefetch = 0 : i64, scratch_operands = 0 : i64, tpu.core_type = #tpu.core_type<tc>, window_params = [{transform_indices = @transform_0, window_bounds = array<i64: 64, 32>}, {transform_indices = @transform_1, window_bounds = array<i64: 64, 32>}, {pipeline_mode = #tpu.pipeline_mode<synchronous>, transform_indices = @transform_2, window_bounds = array<i64: 1, 32>}, {pipeline_mode = #tpu.pipeline_mode<synchronous>, transform_indices = @transform_3, window_bounds = array<i64: 1, 32>}, {transform_indices = @transform_4, window_bounds = array<i64: 64, 32>}]} {
    %c0 = arith.constant 0 : index
    %c0_0 = arith.constant 0 : index
    %0 = vector.load %arg1[%c0, %c0_0] : memref<64x32xf32, #tpu.memory_space<vmem>>, vector<64x32xf32>
    %c0_1 = arith.constant 0 : index
    %c0_2 = arith.constant 0 : index
    %1 = vector.load %arg2[%c0_1, %c0_2] : memref<64x32xf32, #tpu.memory_space<vmem>>, vector<64x32xf32>
    %2 = arith.addf %0, %1 : vector<64x32xf32>
    %c0_3 = arith.constant 0 : index
    %c0_4 = arith.constant 0 : index
    %3 = vector.load %arg3[%c0_3, %c0_4] : memref<1x32xf32, #tpu.memory_space<vmem>>, vector<1x32xf32>
    %c0_5 = arith.constant 0 : index
    %c0_6 = arith.constant 0 : index
    %4 = vector.load %arg4[%c0_5, %c0_6] : memref<1x32xf32, #tpu.memory_space<vmem>>, vector<1x32xf32>
    %cst = arith.constant dense<0.000000e+00> : vector<64xf32>
    %5 = vector.multi_reduction <add>, %2, %cst [1] : vector<64x32xf32> to vector<64xf32>
    %6 = vector.shape_cast %5 : vector<64xf32> to vector<64x1xf32>
    %cst_7 = arith.constant 3.200000e+01 : f32
    %7 = vector.broadcast %cst_7 : f32 to vector<64x1xf32>
    %8 = arith.divf %6, %7 : vector<64x1xf32>
    %9 = vector.broadcast %8 : vector<64x1xf32> to vector<64x32xf32>
    %10 = arith.subf %2, %9 : vector<64x32xf32>
    %11 = arith.mulf %10, %10 : vector<64x32xf32>
    %cst_8 = arith.constant dense<0.000000e+00> : vector<64xf32>
    %12 = vector.multi_reduction <add>, %11, %cst_8 [1] : vector<64x32xf32> to vector<64xf32>
    %13 = vector.shape_cast %12 : vector<64xf32> to vector<64x1xf32>
    %cst_9 = arith.constant 3.200000e+01 : f32
    %14 = vector.broadcast %cst_9 : f32 to vector<64x1xf32>
    %15 = arith.divf %13, %14 : vector<64x1xf32>
    %cst_10 = arith.constant 9.99999974E-6 : f32
    %16 = vector.broadcast %cst_10 : f32 to vector<64x1xf32>
    %17 = arith.addf %15, %16 : vector<64x1xf32>
    %18 = math.rsqrt %17 : vector<64x1xf32>
    %19 = vector.broadcast %18 : vector<64x1xf32> to vector<64x32xf32>
    %20 = arith.mulf %10, %19 : vector<64x32xf32>
    %21 = vector.broadcast %3 : vector<1x32xf32> to vector<64x32xf32>
    %22 = arith.mulf %20, %21 : vector<64x32xf32>
    %23 = vector.broadcast %4 : vector<1x32xf32> to vector<64x32xf32>
    %24 = arith.addf %22, %23 : vector<64x32xf32>
    %c0_11 = arith.constant 0 : index
    %c0_12 = arith.constant 0 : index
    %25 = vector.load %arg5[%c0_11, %c0_12] : memref<64x32xf32, #tpu.memory_space<vmem>>, vector<64x32xf32>
    tpu.vector_store %arg5[%c0_11, %c0_12], %24 {strides = array<i32>} : memref<64x32xf32, #tpu.memory_space<vmem>>, vector<64x32xf32>,
    return
  }
  func.func @transform_0(%arg0: i32) -> (i32, i32) {
    %c0_i32 = arith.constant 0 : i32
    %c0_i32_0 = arith.constant 0 : i32
    return %arg0, %c0_i32 : i32, i32
  }
  func.func @transform_1(%arg0: i32) -> (i32, i32) {
    %c0_i32 = arith.constant 0 : i32
    %c0_i32_0 = arith.constant 0 : i32
    return %arg0, %c0_i32 : i32, i32
  }
  func.func @transform_2(%arg0: i32) -> (i32, i32) {
    %c0_i32 = arith.constant 0 : i32
    %c0_i32_0 = arith.constant 0 : i32
    %c0_i32_1 = arith.constant 0 : i32
    return %c0_i32, %c0_i32_0 : i32, i32
  }
  func.func @transform_3(%arg0: i32) -> (i32, i32) {
    %c0_i32 = arith.constant 0 : i32
    %c0_i32_0 = arith.constant 0 : i32
    %c0_i32_1 = arith.constant 0 : i32
    return %c0_i32, %c0_i32_0 : i32, i32
  }
  func.func @transform_4(%arg0: i32) -> (i32, i32) {
    %c0_i32 = arith.constant 0 : i32
    %c0_i32_0 = arith.constant 0 : i32
    return %arg0, %c0_i32 : i32, i32
  }
}

module attributes {stable_mosaic.version = 11 : i64} {
  func.func @_linear_kernel(%arg0: i32, %arg1: i32, %arg2: i32, %arg3: memref<64x32xbf16, #tpu.memory_space<vmem>>, %arg4: memref<32x256xbf16, #tpu.memory_space<vmem>>, %arg5: memref<1x256xf32, #tpu.memory_space<vmem>>, %arg6: memref<64x256xf32, #tpu.memory_space<vmem>>) attributes {dimension_semantics = [#tpu.dimension_semantics<parallel>, #tpu.dimension_semantics<parallel>, #tpu.dimension_semantics<arbitrary>], iteration_bounds = array<i64: 1, 8, 1>, scalar_prefetch = 0 : i64, scratch_operands = 0 : i64, tpu.core_type = #tpu.core_type<tc>, window_params = [{transform_indices = @transform_0, window_bounds = array<i64: 64, 32>}, {transform_indices = @transform_1, window_bounds = array<i64: 32, 256>}, {transform_indices = @transform_2, window_bounds = array<i64: 1, 256>}, {transform_indices = @transform_3, window_bounds = array<i64: 64, 256>}]} {
    %c0_i32 = arith.constant 0 : i32
    %0 = arith.cmpi eq, %arg2, %c0_i32 : i32
    %1 = arith.extui %0 : i1 to i32
    %c0_i32_0 = arith.constant 0 : i32
    %2 = arith.cmpi ne, %1, %c0_i32_0 : i32
    scf.if %2 {
      %cst_10 = arith.constant 0.000000e+00 : f32
      %12 = vector.broadcast %cst_10 : f32 to vector<64x256xf32>
      %c0_11 = arith.constant 0 : index
      %c0_12 = arith.constant 0 : index
      %13 = vector.load %arg6[%c0_11, %c0_12] : memref<64x256xf32, #tpu.memory_space<vmem>>, vector<64x256xf32>
      tpu.vector_store %arg6[%c0_11, %c0_12], %12 {strides = array<i32>} : memref<64x256xf32, #tpu.memory_space<vmem>>, vector<64x256xf32>,
    } else {
    }
    %c0 = arith.constant 0 : index
    %c0_1 = arith.constant 0 : index
    %3 = vector.load %arg6[%c0, %c0_1] : memref<64x256xf32, #tpu.memory_space<vmem>>, vector<64x256xf32>
    %c0_2 = arith.constant 0 : index
    %c0_3 = arith.constant 0 : index
    %4 = vector.load %arg3[%c0_2, %c0_3] : memref<64x32xbf16, #tpu.memory_space<vmem>>, vector<64x32xbf16>
    %c0_4 = arith.constant 0 : index
    %c0_5 = arith.constant 0 : index
    %5 = vector.load %arg4[%c0_4, %c0_5] : memref<32x256xbf16, #tpu.memory_space<vmem>>, vector<32x256xbf16>
    %cst = arith.constant dense<0.000000e+00> : vector<64x256xf32>
    %6 = tpu.matmul %4, %5, %cst {dimension_numbers = #tpu.dot_dimension_numbers<[1], [0], [0], [1], [0, 0, 1, 1], [], []>} : vector<64x32xbf16>, vector<32x256xbf16>, vector<64x256xf32> -> vector<64x256xf32>
    %7 = arith.addf %3, %6 : vector<64x256xf32>
    %c0_6 = arith.constant 0 : index
    %c0_7 = arith.constant 0 : index
    %8 = vector.load %arg6[%c0_6, %c0_7] : memref<64x256xf32, #tpu.memory_space<vmem>>, vector<64x256xf32>
    tpu.vector_store %arg6[%c0_6, %c0_7], %7 {strides = array<i32>} : memref<64x256xf32, #tpu.memory_space<vmem>>, vector<64x256xf32>,
    %c0_i32_8 = arith.constant 0 : i32
    %9 = arith.cmpi eq, %arg2, %c0_i32_8 : i32
    %10 = arith.extui %9 : i1 to i32
    %c0_i32_9 = arith.constant 0 : i32
    %11 = arith.cmpi ne, %10, %c0_i32_9 : i32
    scf.if %11 {
      %c0_10 = arith.constant 0 : index
      %c0_11 = arith.constant 0 : index
      %12 = vector.load %arg6[%c0_10, %c0_11] : memref<64x256xf32, #tpu.memory_space<vmem>>, vector<64x256xf32>
      %c0_12 = arith.constant 0 : index
      %c0_13 = arith.constant 0 : index
      %13 = vector.load %arg5[%c0_12, %c0_13] : memref<1x256xf32, #tpu.memory_space<vmem>>, vector<1x256xf32>
      %14 = vector.broadcast %13 : vector<1x256xf32> to vector<64x256xf32>
      %15 = arith.addf %12, %14 : vector<64x256xf32>
      %cst_14 = arith.constant 0.000000e+00 : f32
      %16 = vector.broadcast %cst_14 : f32 to vector<64x256xf32>
      %17 = arith.maximumf %15, %16 : vector<64x256xf32>
      %c0_15 = arith.constant 0 : index
      %c0_16 = arith.constant 0 : index
      %18 = vector.load %arg6[%c0_15, %c0_16] : memref<64x256xf32, #tpu.memory_space<vmem>>, vector<64x256xf32>
      tpu.vector_store %arg6[%c0_15, %c0_16], %17 {strides = array<i32>} : memref<64x256xf32, #tpu.memory_space<vmem>>, vector<64x256xf32>,
    } else {
    }
    return
  }
  func.func @transform_0(%arg0: i32, %arg1: i32, %arg2: i32) -> (i32, i32) {
    %c0_i32 = arith.constant 0 : i32
    return %arg0, %arg2 : i32, i32
  }
  func.func @transform_1(%arg0: i32, %arg1: i32, %arg2: i32) -> (i32, i32) {
    %c0_i32 = arith.constant 0 : i32
    return %arg2, %arg1 : i32, i32
  }
  func.func @transform_2(%arg0: i32, %arg1: i32, %arg2: i32) -> (i32, i32) {
    %c0_i32 = arith.constant 0 : i32
    %c0_i32_0 = arith.constant 0 : i32
    return %c0_i32, %arg1 : i32, i32
  }
  func.func @transform_3(%arg0: i32, %arg1: i32, %arg2: i32) -> (i32, i32) {
    %c0_i32 = arith.constant 0 : i32
    return %arg0, %arg1 : i32, i32
  }
}

module attributes {stable_mosaic.version = 11 : i64} {
  func.func @_linear_kernel(%arg0: i32, %arg1: i32, %arg2: i32, %arg3: memref<64x512xbf16, #tpu.memory_space<vmem>>, %arg4: memref<512x32xbf16, #tpu.memory_space<vmem>>, %arg5: memref<1x32xf32, #tpu.memory_space<vmem>>, %arg6: memref<64x32xf32, #tpu.memory_space<vmem>>) attributes {dimension_semantics = [#tpu.dimension_semantics<parallel>, #tpu.dimension_semantics<parallel>, #tpu.dimension_semantics<arbitrary>], iteration_bounds = array<i64: 1, 1, 4>, scalar_prefetch = 0 : i64, scratch_operands = 0 : i64, tpu.core_type = #tpu.core_type<tc>, window_params = [{transform_indices = @transform_0, window_bounds = array<i64: 64, 512>}, {transform_indices = @transform_1, window_bounds = array<i64: 512, 32>}, {transform_indices = @transform_2, window_bounds = array<i64: 1, 32>}, {transform_indices = @transform_3, window_bounds = array<i64: 64, 32>}]} {
    %c0_i32 = arith.constant 0 : i32
    %0 = arith.cmpi eq, %arg2, %c0_i32 : i32
    %1 = arith.extui %0 : i1 to i32
    %c0_i32_0 = arith.constant 0 : i32
    %2 = arith.cmpi ne, %1, %c0_i32_0 : i32
    scf.if %2 {
      %cst_9 = arith.constant 0.000000e+00 : f32
      %12 = vector.broadcast %cst_9 : f32 to vector<64x32xf32>
      %c0_10 = arith.constant 0 : index
      %c0_11 = arith.constant 0 : index
      %13 = vector.load %arg6[%c0_10, %c0_11] : memref<64x32xf32, #tpu.memory_space<vmem>>, vector<64x32xf32>
      tpu.vector_store %arg6[%c0_10, %c0_11], %12 {strides = array<i32>} : memref<64x32xf32, #tpu.memory_space<vmem>>, vector<64x32xf32>,
    } else {
    }
    %c0 = arith.constant 0 : index
    %c0_1 = arith.constant 0 : index
    %3 = vector.load %arg6[%c0, %c0_1] : memref<64x32xf32, #tpu.memory_space<vmem>>, vector<64x32xf32>
    %c0_2 = arith.constant 0 : index
    %c0_3 = arith.constant 0 : index
    %4 = vector.load %arg3[%c0_2, %c0_3] : memref<64x512xbf16, #tpu.memory_space<vmem>>, vector<64x512xbf16>
    %c0_4 = arith.constant 0 : index
    %c0_5 = arith.constant 0 : index
    %5 = vector.load %arg4[%c0_4, %c0_5] : memref<512x32xbf16, #tpu.memory_space<vmem>>, vector<512x32xbf16>
    %cst = arith.constant dense<0.000000e+00> : vector<64x32xf32>
    %6 = tpu.matmul %4, %5, %cst {dimension_numbers = #tpu.dot_dimension_numbers<[1], [0], [0], [1], [0, 0, 1, 1], [], []>} : vector<64x512xbf16>, vector<512x32xbf16>, vector<64x32xf32> -> vector<64x32xf32>
    %7 = arith.addf %3, %6 : vector<64x32xf32>
    %c0_6 = arith.constant 0 : index
    %c0_7 = arith.constant 0 : index
    %8 = vector.load %arg6[%c0_6, %c0_7] : memref<64x32xf32, #tpu.memory_space<vmem>>, vector<64x32xf32>
    tpu.vector_store %arg6[%c0_6, %c0_7], %7 {strides = array<i32>} : memref<64x32xf32, #tpu.memory_space<vmem>>, vector<64x32xf32>,
    %c3_i32 = arith.constant 3 : i32
    %9 = arith.cmpi eq, %arg2, %c3_i32 : i32
    %10 = arith.extui %9 : i1 to i32
    %c0_i32_8 = arith.constant 0 : i32
    %11 = arith.cmpi ne, %10, %c0_i32_8 : i32
    scf.if %11 {
      %c0_9 = arith.constant 0 : index
      %c0_10 = arith.constant 0 : index
      %12 = vector.load %arg6[%c0_9, %c0_10] : memref<64x32xf32, #tpu.memory_space<vmem>>, vector<64x32xf32>
      %c0_11 = arith.constant 0 : index
      %c0_12 = arith.constant 0 : index
      %13 = vector.load %arg5[%c0_11, %c0_12] : memref<1x32xf32, #tpu.memory_space<vmem>>, vector<1x32xf32>
      %14 = vector.broadcast %13 : vector<1x32xf32> to vector<64x32xf32>
      %15 = arith.addf %12, %14 : vector<64x32xf32>
      %c0_13 = arith.constant 0 : index
      %c0_14 = arith.constant 0 : index
      %16 = vector.load %arg6[%c0_13, %c0_14] : memref<64x32xf32, #tpu.memory_space<vmem>>, vector<64x32xf32>
      tpu.vector_store %arg6[%c0_13, %c0_14], %15 {strides = array<i32>} : memref<64x32xf32, #tpu.memory_space<vmem>>, vector<64x32xf32>,
    } else {
    }
    return
  }
  func.func @transform_0(%arg0: i32, %arg1: i32, %arg2: i32) -> (i32, i32) {
    %c0_i32 = arith.constant 0 : i32
    return %arg0, %arg2 : i32, i32
  }
  func.func @transform_1(%arg0: i32, %arg1: i32, %arg2: i32) -> (i32, i32) {
    %c0_i32 = arith.constant 0 : i32
    return %arg2, %arg1 : i32, i32
  }
  func.func @transform_2(%arg0: i32, %arg1: i32, %arg2: i32) -> (i32, i32) {
    %c0_i32 = arith.constant 0 : i32
    %c0_i32_0 = arith.constant 0 : i32
    return %c0_i32, %arg1 : i32, i32
  }
  func.func @transform_3(%arg0: i32, %arg1: i32, %arg2: i32) -> (i32, i32) {
    %c0_i32 = arith.constant 0 : i32
    return %arg0, %arg1 : i32, i32
  }
}

module attributes {stable_mosaic.version = 11 : i64} {
  func.func @_ln_kernel(%arg0: i32, %arg1: memref<64x32xf32, #tpu.memory_space<vmem>>, %arg2: memref<1x32xf32, #tpu.memory_space<vmem>>, %arg3: memref<1x32xf32, #tpu.memory_space<vmem>>, %arg4: memref<64x32xf32, #tpu.memory_space<vmem>>) attributes {dimension_semantics = [#tpu.dimension_semantics<parallel>], iteration_bounds = array<i64: 1>, scalar_prefetch = 0 : i64, scratch_operands = 0 : i64, tpu.core_type = #tpu.core_type<tc>, window_params = [{transform_indices = @transform_0, window_bounds = array<i64: 64, 32>}, {pipeline_mode = #tpu.pipeline_mode<synchronous>, transform_indices = @transform_1, window_bounds = array<i64: 1, 32>}, {pipeline_mode = #tpu.pipeline_mode<synchronous>, transform_indices = @transform_2, window_bounds = array<i64: 1, 32>}, {transform_indices = @transform_3, window_bounds = array<i64: 64, 32>}]} {
    %c0 = arith.constant 0 : index
    %c0_0 = arith.constant 0 : index
    %0 = vector.load %arg1[%c0, %c0_0] : memref<64x32xf32, #tpu.memory_space<vmem>>, vector<64x32xf32>
    %c0_1 = arith.constant 0 : index
    %c0_2 = arith.constant 0 : index
    %1 = vector.load %arg2[%c0_1, %c0_2] : memref<1x32xf32, #tpu.memory_space<vmem>>, vector<1x32xf32>
    %c0_3 = arith.constant 0 : index
    %c0_4 = arith.constant 0 : index
    %2 = vector.load %arg3[%c0_3, %c0_4] : memref<1x32xf32, #tpu.memory_space<vmem>>, vector<1x32xf32>
    %cst = arith.constant dense<0.000000e+00> : vector<64xf32>
    %3 = vector.multi_reduction <add>, %0, %cst [1] : vector<64x32xf32> to vector<64xf32>
    %4 = vector.shape_cast %3 : vector<64xf32> to vector<64x1xf32>
    %cst_5 = arith.constant 3.200000e+01 : f32
    %5 = vector.broadcast %cst_5 : f32 to vector<64x1xf32>
    %6 = arith.divf %4, %5 : vector<64x1xf32>
    %7 = vector.broadcast %6 : vector<64x1xf32> to vector<64x32xf32>
    %8 = arith.subf %0, %7 : vector<64x32xf32>
    %9 = arith.mulf %8, %8 : vector<64x32xf32>
    %cst_6 = arith.constant dense<0.000000e+00> : vector<64xf32>
    %10 = vector.multi_reduction <add>, %9, %cst_6 [1] : vector<64x32xf32> to vector<64xf32>
    %11 = vector.shape_cast %10 : vector<64xf32> to vector<64x1xf32>
    %cst_7 = arith.constant 3.200000e+01 : f32
    %12 = vector.broadcast %cst_7 : f32 to vector<64x1xf32>
    %13 = arith.divf %11, %12 : vector<64x1xf32>
    %cst_8 = arith.constant 9.99999974E-6 : f32
    %14 = vector.broadcast %cst_8 : f32 to vector<64x1xf32>
    %15 = arith.addf %13, %14 : vector<64x1xf32>
    %16 = math.rsqrt %15 : vector<64x1xf32>
    %17 = vector.broadcast %16 : vector<64x1xf32> to vector<64x32xf32>
    %18 = arith.mulf %8, %17 : vector<64x32xf32>
    %19 = vector.broadcast %1 : vector<1x32xf32> to vector<64x32xf32>
    %20 = arith.mulf %18, %19 : vector<64x32xf32>
    %21 = vector.broadcast %2 : vector<1x32xf32> to vector<64x32xf32>
    %22 = arith.addf %20, %21 : vector<64x32xf32>
    %c0_9 = arith.constant 0 : index
    %c0_10 = arith.constant 0 : index
    %23 = vector.load %arg4[%c0_9, %c0_10] : memref<64x32xf32, #tpu.memory_space<vmem>>, vector<64x32xf32>
    tpu.vector_store %arg4[%c0_9, %c0_10], %22 {strides = array<i32>} : memref<64x32xf32, #tpu.memory_space<vmem>>, vector<64x32xf32>,
    return
  }
  func.func @transform_0(%arg0: i32) -> (i32, i32) {
    %c0_i32 = arith.constant 0 : i32
    %c0_i32_0 = arith.constant 0 : i32
    return %arg0, %c0_i32 : i32, i32
  }
  func.func @transform_1(%arg0: i32) -> (i32, i32) {
    %c0_i32 = arith.constant 0 : i32
    %c0_i32_0 = arith.constant 0 : i32
    %c0_i32_1 = arith.constant 0 : i32
    return %c0_i32, %c0_i32_0 : i32, i32
  }
  func.func @transform_2(%arg0: i32) -> (i32, i32) {
    %c0_i32 = arith.constant 0 : i32
    %c0_i32_0 = arith.constant 0 : i32
    %c0_i32_1 = arith.constant 0 : i32
    return %c0_i32, %c0_i32_0 : i32, i32
  }
  func.func @transform_3(%arg0: i32) -> (i32, i32) {
    %c0_i32 = arith.constant 0 : i32
    %c0_i32_0 = arith.constant 0 : i32
    return %arg0, %c0_i32 : i32, i32
  }
}

module attributes {stable_mosaic.version = 11 : i64} {
  func.func @_linear_kernel(%arg0: i32, %arg1: i32, %arg2: i32, %arg3: memref<64x32xbf16, #tpu.memory_space<vmem>>, %arg4: memref<32x64xbf16, #tpu.memory_space<vmem>>, %arg5: memref<1x64xf32, #tpu.memory_space<vmem>>, %arg6: memref<64x64xf32, #tpu.memory_space<vmem>>) attributes {dimension_semantics = [#tpu.dimension_semantics<parallel>, #tpu.dimension_semantics<parallel>, #tpu.dimension_semantics<arbitrary>], iteration_bounds = array<i64: 1, 1, 1>, scalar_prefetch = 0 : i64, scratch_operands = 0 : i64, tpu.core_type = #tpu.core_type<tc>, window_params = [{transform_indices = @transform_0, window_bounds = array<i64: 64, 32>}, {transform_indices = @transform_1, window_bounds = array<i64: 32, 64>}, {transform_indices = @transform_2, window_bounds = array<i64: 1, 64>}, {transform_indices = @transform_3, window_bounds = array<i64: 64, 64>}]} {
    %c0_i32 = arith.constant 0 : i32
    %0 = arith.cmpi eq, %arg2, %c0_i32 : i32
    %1 = arith.extui %0 : i1 to i32
    %c0_i32_0 = arith.constant 0 : i32
    %2 = arith.cmpi ne, %1, %c0_i32_0 : i32
    scf.if %2 {
      %cst_10 = arith.constant 0.000000e+00 : f32
      %12 = vector.broadcast %cst_10 : f32 to vector<64x64xf32>
      %c0_11 = arith.constant 0 : index
      %c0_12 = arith.constant 0 : index
      %13 = vector.load %arg6[%c0_11, %c0_12] : memref<64x64xf32, #tpu.memory_space<vmem>>, vector<64x64xf32>
      tpu.vector_store %arg6[%c0_11, %c0_12], %12 {strides = array<i32>} : memref<64x64xf32, #tpu.memory_space<vmem>>, vector<64x64xf32>,
    } else {
    }
    %c0 = arith.constant 0 : index
    %c0_1 = arith.constant 0 : index
    %3 = vector.load %arg6[%c0, %c0_1] : memref<64x64xf32, #tpu.memory_space<vmem>>, vector<64x64xf32>
    %c0_2 = arith.constant 0 : index
    %c0_3 = arith.constant 0 : index
    %4 = vector.load %arg3[%c0_2, %c0_3] : memref<64x32xbf16, #tpu.memory_space<vmem>>, vector<64x32xbf16>
    %c0_4 = arith.constant 0 : index
    %c0_5 = arith.constant 0 : index
    %5 = vector.load %arg4[%c0_4, %c0_5] : memref<32x64xbf16, #tpu.memory_space<vmem>>, vector<32x64xbf16>
    %cst = arith.constant dense<0.000000e+00> : vector<64x64xf32>
    %6 = tpu.matmul %4, %5, %cst {dimension_numbers = #tpu.dot_dimension_numbers<[1], [0], [0], [1], [0, 0, 1, 1], [], []>} : vector<64x32xbf16>, vector<32x64xbf16>, vector<64x64xf32> -> vector<64x64xf32>
    %7 = arith.addf %3, %6 : vector<64x64xf32>
    %c0_6 = arith.constant 0 : index
    %c0_7 = arith.constant 0 : index
    %8 = vector.load %arg6[%c0_6, %c0_7] : memref<64x64xf32, #tpu.memory_space<vmem>>, vector<64x64xf32>
    tpu.vector_store %arg6[%c0_6, %c0_7], %7 {strides = array<i32>} : memref<64x64xf32, #tpu.memory_space<vmem>>, vector<64x64xf32>,
    %c0_i32_8 = arith.constant 0 : i32
    %9 = arith.cmpi eq, %arg2, %c0_i32_8 : i32
    %10 = arith.extui %9 : i1 to i32
    %c0_i32_9 = arith.constant 0 : i32
    %11 = arith.cmpi ne, %10, %c0_i32_9 : i32
    scf.if %11 {
      %c0_10 = arith.constant 0 : index
      %c0_11 = arith.constant 0 : index
      %12 = vector.load %arg6[%c0_10, %c0_11] : memref<64x64xf32, #tpu.memory_space<vmem>>, vector<64x64xf32>
      %c0_12 = arith.constant 0 : index
      %c0_13 = arith.constant 0 : index
      %13 = vector.load %arg5[%c0_12, %c0_13] : memref<1x64xf32, #tpu.memory_space<vmem>>, vector<1x64xf32>
      %14 = vector.broadcast %13 : vector<1x64xf32> to vector<64x64xf32>
      %15 = arith.addf %12, %14 : vector<64x64xf32>
      %c0_14 = arith.constant 0 : index
      %c0_15 = arith.constant 0 : index
      %16 = vector.load %arg6[%c0_14, %c0_15] : memref<64x64xf32, #tpu.memory_space<vmem>>, vector<64x64xf32>
      tpu.vector_store %arg6[%c0_14, %c0_15], %15 {strides = array<i32>} : memref<64x64xf32, #tpu.memory_space<vmem>>, vector<64x64xf32>,
    } else {
    }
    return
  }
  func.func @transform_0(%arg0: i32, %arg1: i32, %arg2: i32) -> (i32, i32) {
    %c0_i32 = arith.constant 0 : i32
    return %arg0, %arg2 : i32, i32
  }
  func.func @transform_1(%arg0: i32, %arg1: i32, %arg2: i32) -> (i32, i32) {
    %c0_i32 = arith.constant 0 : i32
    return %arg2, %arg1 : i32, i32
  }
  func.func @transform_2(%arg0: i32, %arg1: i32, %arg2: i32) -> (i32, i32) {
    %c0_i32 = arith.constant 0 : i32
    %c0_i32_0 = arith.constant 0 : i32
    return %c0_i32, %arg1 : i32, i32
  }
  func.func @transform_3(%arg0: i32, %arg1: i32, %arg2: i32) -> (i32, i32) {
    %c0_i32 = arith.constant 0 : i32
    return %arg0, %arg1 : i32, i32
  }
}

module attributes {stable_mosaic.version = 11 : i64} {
  func.func @_linear_kernel(%arg0: i32, %arg1: i32, %arg2: i32, %arg3: memref<64x32xbf16, #tpu.memory_space<vmem>>, %arg4: memref<32x32xbf16, #tpu.memory_space<vmem>>, %arg5: memref<1x32xf32, #tpu.memory_space<vmem>>, %arg6: memref<64x32xf32, #tpu.memory_space<vmem>>) attributes {dimension_semantics = [#tpu.dimension_semantics<parallel>, #tpu.dimension_semantics<parallel>, #tpu.dimension_semantics<arbitrary>], iteration_bounds = array<i64: 1, 1, 1>, scalar_prefetch = 0 : i64, scratch_operands = 0 : i64, tpu.core_type = #tpu.core_type<tc>, window_params = [{transform_indices = @transform_0, window_bounds = array<i64: 64, 32>}, {transform_indices = @transform_1, window_bounds = array<i64: 32, 32>}, {transform_indices = @transform_2, window_bounds = array<i64: 1, 32>}, {transform_indices = @transform_3, window_bounds = array<i64: 64, 32>}]} {
    %c0_i32 = arith.constant 0 : i32
    %0 = arith.cmpi eq, %arg2, %c0_i32 : i32
    %1 = arith.extui %0 : i1 to i32
    %c0_i32_0 = arith.constant 0 : i32
    %2 = arith.cmpi ne, %1, %c0_i32_0 : i32
    scf.if %2 {
      %cst_10 = arith.constant 0.000000e+00 : f32
      %12 = vector.broadcast %cst_10 : f32 to vector<64x32xf32>
      %c0_11 = arith.constant 0 : index
      %c0_12 = arith.constant 0 : index
      %13 = vector.load %arg6[%c0_11, %c0_12] : memref<64x32xf32, #tpu.memory_space<vmem>>, vector<64x32xf32>
      tpu.vector_store %arg6[%c0_11, %c0_12], %12 {strides = array<i32>} : memref<64x32xf32, #tpu.memory_space<vmem>>, vector<64x32xf32>,
    } else {
    }
    %c0 = arith.constant 0 : index
    %c0_1 = arith.constant 0 : index
    %3 = vector.load %arg6[%c0, %c0_1] : memref<64x32xf32, #tpu.memory_space<vmem>>, vector<64x32xf32>
    %c0_2 = arith.constant 0 : index
    %c0_3 = arith.constant 0 : index
    %4 = vector.load %arg3[%c0_2, %c0_3] : memref<64x32xbf16, #tpu.memory_space<vmem>>, vector<64x32xbf16>
    %c0_4 = arith.constant 0 : index
    %c0_5 = arith.constant 0 : index
    %5 = vector.load %arg4[%c0_4, %c0_5] : memref<32x32xbf16, #tpu.memory_space<vmem>>, vector<32x32xbf16>
    %cst = arith.constant dense<0.000000e+00> : vector<64x32xf32>
    %6 = tpu.matmul %4, %5, %cst {dimension_numbers = #tpu.dot_dimension_numbers<[1], [0], [0], [1], [0, 0, 1, 1], [], []>} : vector<64x32xbf16>, vector<32x32xbf16>, vector<64x32xf32> -> vector<64x32xf32>
    %7 = arith.addf %3, %6 : vector<64x32xf32>
    %c0_6 = arith.constant 0 : index
    %c0_7 = arith.constant 0 : index
    %8 = vector.load %arg6[%c0_6, %c0_7] : memref<64x32xf32, #tpu.memory_space<vmem>>, vector<64x32xf32>
    tpu.vector_store %arg6[%c0_6, %c0_7], %7 {strides = array<i32>} : memref<64x32xf32, #tpu.memory_space<vmem>>, vector<64x32xf32>,
    %c0_i32_8 = arith.constant 0 : i32
    %9 = arith.cmpi eq, %arg2, %c0_i32_8 : i32
    %10 = arith.extui %9 : i1 to i32
    %c0_i32_9 = arith.constant 0 : i32
    %11 = arith.cmpi ne, %10, %c0_i32_9 : i32
    scf.if %11 {
      %c0_10 = arith.constant 0 : index
      %c0_11 = arith.constant 0 : index
      %12 = vector.load %arg6[%c0_10, %c0_11] : memref<64x32xf32, #tpu.memory_space<vmem>>, vector<64x32xf32>
      %c0_12 = arith.constant 0 : index
      %c0_13 = arith.constant 0 : index
      %13 = vector.load %arg5[%c0_12, %c0_13] : memref<1x32xf32, #tpu.memory_space<vmem>>, vector<1x32xf32>
      %14 = vector.broadcast %13 : vector<1x32xf32> to vector<64x32xf32>
      %15 = arith.addf %12, %14 : vector<64x32xf32>
      %c0_14 = arith.constant 0 : index
      %c0_15 = arith.constant 0 : index
      %16 = vector.load %arg6[%c0_14, %c0_15] : memref<64x32xf32, #tpu.memory_space<vmem>>, vector<64x32xf32>
      tpu.vector_store %arg6[%c0_14, %c0_15], %15 {strides = array<i32>} : memref<64x32xf32, #tpu.memory_space<vmem>>, vector<64x32xf32>,
    } else {
    }
    return
  }
  func.func @transform_0(%arg0: i32, %arg1: i32, %arg2: i32) -> (i32, i32) {
    %c0_i32 = arith.constant 0 : i32
    return %arg0, %arg2 : i32, i32
  }
  func.func @transform_1(%arg0: i32, %arg1: i32, %arg2: i32) -> (i32, i32) {
    %c0_i32 = arith.constant 0 : i32
    return %arg2, %arg1 : i32, i32
  }
  func.func @transform_2(%arg0: i32, %arg1: i32, %arg2: i32) -> (i32, i32) {
    %c0_i32 = arith.constant 0 : i32
    %c0_i32_0 = arith.constant 0 : i32
    return %c0_i32, %arg1 : i32, i32
  }
  func.func @transform_3(%arg0: i32, %arg1: i32, %arg2: i32) -> (i32, i32) {
    %c0_i32 = arith.constant 0 : i32
    return %arg0, %arg1 : i32, i32
  }
}

module attributes {stable_mosaic.version = 11 : i64} {
  func.func @_mha_kernel(%arg0: i32, %arg1: memref<1x8x32xbf16, #tpu.memory_space<vmem>>, %arg2: memref<1x8x32xbf16, #tpu.memory_space<vmem>>, %arg3: memref<1x8x32xbf16, #tpu.memory_space<vmem>>, %arg4: memref<32x32xbf16, #tpu.memory_space<vmem>>, %arg5: memref<1x32xf32, #tpu.memory_space<vmem>>, %arg6: memref<1x8x32xf32, #tpu.memory_space<vmem>>) attributes {dimension_semantics = [#tpu.dimension_semantics<parallel>], iteration_bounds = array<i64: 8>, scalar_prefetch = 0 : i64, scratch_operands = 0 : i64, tpu.core_type = #tpu.core_type<tc>, window_params = [{transform_indices = @transform_0, window_bounds = array<i64: 1, 8, 32>}, {transform_indices = @transform_1, window_bounds = array<i64: 1, 8, 32>}, {transform_indices = @transform_2, window_bounds = array<i64: 1, 8, 32>}, {pipeline_mode = #tpu.pipeline_mode<synchronous>, transform_indices = @transform_3, window_bounds = array<i64: 32, 32>}, {pipeline_mode = #tpu.pipeline_mode<synchronous>, transform_indices = @transform_4, window_bounds = array<i64: 1, 32>}, {transform_indices = @transform_5, window_bounds = array<i64: 1, 8, 32>}]} {
    %c0 = arith.constant 0 : index
    %c0_0 = arith.constant 0 : index
    %c0_1 = arith.constant 0 : index
    %0 = vector.load %arg1[%c0, %c0_0, %c0_1] : memref<1x8x32xbf16, #tpu.memory_space<vmem>>, vector<1x8x32xbf16>
    %1 = vector.shape_cast %0 : vector<1x8x32xbf16> to vector<8x32xbf16>
    %c0_2 = arith.constant 0 : index
    %c0_3 = arith.constant 0 : index
    %c0_4 = arith.constant 0 : index
    %2 = vector.load %arg2[%c0_2, %c0_3, %c0_4] : memref<1x8x32xbf16, #tpu.memory_space<vmem>>, vector<1x8x32xbf16>
    %3 = vector.shape_cast %2 : vector<1x8x32xbf16> to vector<8x32xbf16>
    %c0_5 = arith.constant 0 : index
    %c0_6 = arith.constant 0 : index
    %c0_7 = arith.constant 0 : index
    %4 = vector.load %arg3[%c0_5, %c0_6, %c0_7] : memref<1x8x32xbf16, #tpu.memory_space<vmem>>, vector<1x8x32xbf16>
    %5 = vector.shape_cast %4 : vector<1x8x32xbf16> to vector<8x32xbf16>
    %6 = tpu.iota {dimensions = array<i32: 0>} : vector<8x8xi32>
    %7 = tpu.iota {dimensions = array<i32: 1>} : vector<8x8xi32>
    %8 = arith.cmpi sgt, %7, %6 : vector<8x8xi32>
    %cst = arith.constant -1.000000e+30 : f32
    %cst_8 = arith.constant 0.000000e+00 : f32
    %9 = vector.broadcast %cst : f32 to vector<8x8xf32>
    %10 = vector.broadcast %cst_8 : f32 to vector<8x8xf32>
    %11 = arith.select %8, %9, %10 : vector<8x8xi1>, vector<8x8xf32>
    %12 = vector.extract_strided_slice %1 {offsets = [0, 0], sizes = [8, 8], strides = [1, 1]} : vector<8x32xbf16> to vector<8x8xbf16>
    %13 = vector.extract_strided_slice %3 {offsets = [0, 0], sizes = [8, 8], strides = [1, 1]} : vector<8x32xbf16> to vector<8x8xbf16>
    %14 = vector.extract_strided_slice %5 {offsets = [0, 0], sizes = [8, 8], strides = [1, 1]} : vector<8x32xbf16> to vector<8x8xbf16>
    %cst_9 = arith.constant dense<0.000000e+00> : vector<8x8xf32>
    %15 = tpu.matmul %12, %13, %cst_9 {dimension_numbers = #tpu.dot_dimension_numbers<[1], [1], [0], [0], [0, 0, 1, 0], [], []>} : vector<8x8xbf16>, vector<8x8xbf16>, vector<8x8xf32> -> vector<8x8xf32>
    %cst_10 = arith.constant 0.353553385 : f32
    %16 = vector.broadcast %cst_10 : f32 to vector<8x8xf32>
    %17 = arith.mulf %15, %16 : vector<8x8xf32>
    %18 = arith.addf %17, %11 : vector<8x8xf32>
    %cst_11 = arith.constant dense<0xFF800000> : vector<8xf32>
    %19 = vector.multi_reduction <maximumf>, %18, %cst_11 [1] : vector<8x8xf32> to vector<8xf32>
    %20 = vector.shape_cast %19 : vector<8xf32> to vector<8x1xf32>
    %21 = vector.broadcast %20 : vector<8x1xf32> to vector<8x8xf32>
    %22 = arith.subf %18, %21 : vector<8x8xf32>
    %23 = math.exp %22 : vector<8x8xf32>
    %cst_12 = arith.constant dense<0.000000e+00> : vector<8xf32>
    %24 = vector.multi_reduction <add>, %23, %cst_12 [1] : vector<8x8xf32> to vector<8xf32>
    %25 = vector.shape_cast %24 : vector<8xf32> to vector<8x1xf32>
    %26 = tpu.reciprocal %25 {approx = true} : vector<8x1xf32> -> vector<8x1xf32>
    %27 = vector.broadcast %26 : vector<8x1xf32> to vector<8x8xf32>
    %28 = arith.mulf %23, %27 : vector<8x8xf32>
    %29 = arith.truncf %28 : vector<8x8xf32> to vector<8x8xbf16>
    %cst_13 = arith.constant dense<0.000000e+00> : vector<8x8xf32>
    %30 = tpu.matmul %29, %14, %cst_13 {dimension_numbers = #tpu.dot_dimension_numbers<[1], [0], [0], [1], [0, 0, 1, 1], [], []>} : vector<8x8xbf16>, vector<8x8xbf16>, vector<8x8xf32> -> vector<8x8xf32>
    %31 = vector.extract_strided_slice %1 {offsets = [0, 8], sizes = [8, 8], strides = [1, 1]} : vector<8x32xbf16> to vector<8x8xbf16>
    %32 = vector.extract_strided_slice %3 {offsets = [0, 8], sizes = [8, 8], strides = [1, 1]} : vector<8x32xbf16> to vector<8x8xbf16>
    %33 = vector.extract_strided_slice %5 {offsets = [0, 8], sizes = [8, 8], strides = [1, 1]} : vector<8x32xbf16> to vector<8x8xbf16>
    %cst_14 = arith.constant dense<0.000000e+00> : vector<8x8xf32>
    %34 = tpu.matmul %31, %32, %cst_14 {dimension_numbers = #tpu.dot_dimension_numbers<[1], [1], [0], [0], [0, 0, 1, 0], [], []>} : vector<8x8xbf16>, vector<8x8xbf16>, vector<8x8xf32> -> vector<8x8xf32>
    %cst_15 = arith.constant 0.353553385 : f32
    %35 = vector.broadcast %cst_15 : f32 to vector<8x8xf32>
    %36 = arith.mulf %34, %35 : vector<8x8xf32>
    %37 = arith.addf %36, %11 : vector<8x8xf32>
    %cst_16 = arith.constant dense<0xFF800000> : vector<8xf32>
    %38 = vector.multi_reduction <maximumf>, %37, %cst_16 [1] : vector<8x8xf32> to vector<8xf32>
    %39 = vector.shape_cast %38 : vector<8xf32> to vector<8x1xf32>
    %40 = vector.broadcast %39 : vector<8x1xf32> to vector<8x8xf32>
    %41 = arith.subf %37, %40 : vector<8x8xf32>
    %42 = math.exp %41 : vector<8x8xf32>
    %cst_17 = arith.constant dense<0.000000e+00> : vector<8xf32>
    %43 = vector.multi_reduction <add>, %42, %cst_17 [1] : vector<8x8xf32> to vector<8xf32>
    %44 = vector.shape_cast %43 : vector<8xf32> to vector<8x1xf32>
    %45 = tpu.reciprocal %44 {approx = true} : vector<8x1xf32> -> vector<8x1xf32>
    %46 = vector.broadcast %45 : vector<8x1xf32> to vector<8x8xf32>
    %47 = arith.mulf %42, %46 : vector<8x8xf32>
    %48 = arith.truncf %47 : vector<8x8xf32> to vector<8x8xbf16>
    %cst_18 = arith.constant dense<0.000000e+00> : vector<8x8xf32>
    %49 = tpu.matmul %48, %33, %cst_18 {dimension_numbers = #tpu.dot_dimension_numbers<[1], [0], [0], [1], [0, 0, 1, 1], [], []>} : vector<8x8xbf16>, vector<8x8xbf16>, vector<8x8xf32> -> vector<8x8xf32>
    %50 = vector.extract_strided_slice %1 {offsets = [0, 16], sizes = [8, 8], strides = [1, 1]} : vector<8x32xbf16> to vector<8x8xbf16>
    %51 = vector.extract_strided_slice %3 {offsets = [0, 16], sizes = [8, 8], strides = [1, 1]} : vector<8x32xbf16> to vector<8x8xbf16>
    %52 = vector.extract_strided_slice %5 {offsets = [0, 16], sizes = [8, 8], strides = [1, 1]} : vector<8x32xbf16> to vector<8x8xbf16>
    %cst_19 = arith.constant dense<0.000000e+00> : vector<8x8xf32>
    %53 = tpu.matmul %50, %51, %cst_19 {dimension_numbers = #tpu.dot_dimension_numbers<[1], [1], [0], [0], [0, 0, 1, 0], [], []>} : vector<8x8xbf16>, vector<8x8xbf16>, vector<8x8xf32> -> vector<8x8xf32>
    %cst_20 = arith.constant 0.353553385 : f32
    %54 = vector.broadcast %cst_20 : f32 to vector<8x8xf32>
    %55 = arith.mulf %53, %54 : vector<8x8xf32>
    %56 = arith.addf %55, %11 : vector<8x8xf32>
    %cst_21 = arith.constant dense<0xFF800000> : vector<8xf32>
    %57 = vector.multi_reduction <maximumf>, %56, %cst_21 [1] : vector<8x8xf32> to vector<8xf32>
    %58 = vector.shape_cast %57 : vector<8xf32> to vector<8x1xf32>
    %59 = vector.broadcast %58 : vector<8x1xf32> to vector<8x8xf32>
    %60 = arith.subf %56, %59 : vector<8x8xf32>
    %61 = math.exp %60 : vector<8x8xf32>
    %cst_22 = arith.constant dense<0.000000e+00> : vector<8xf32>
    %62 = vector.multi_reduction <add>, %61, %cst_22 [1] : vector<8x8xf32> to vector<8xf32>
    %63 = vector.shape_cast %62 : vector<8xf32> to vector<8x1xf32>
    %64 = tpu.reciprocal %63 {approx = true} : vector<8x1xf32> -> vector<8x1xf32>
    %65 = vector.broadcast %64 : vector<8x1xf32> to vector<8x8xf32>
    %66 = arith.mulf %61, %65 : vector<8x8xf32>
    %67 = arith.truncf %66 : vector<8x8xf32> to vector<8x8xbf16>
    %cst_23 = arith.constant dense<0.000000e+00> : vector<8x8xf32>
    %68 = tpu.matmul %67, %52, %cst_23 {dimension_numbers = #tpu.dot_dimension_numbers<[1], [0], [0], [1], [0, 0, 1, 1], [], []>} : vector<8x8xbf16>, vector<8x8xbf16>, vector<8x8xf32> -> vector<8x8xf32>
    %69 = vector.extract_strided_slice %1 {offsets = [0, 24], sizes = [8, 8], strides = [1, 1]} : vector<8x32xbf16> to vector<8x8xbf16>
    %70 = vector.extract_strided_slice %3 {offsets = [0, 24], sizes = [8, 8], strides = [1, 1]} : vector<8x32xbf16> to vector<8x8xbf16>
    %71 = vector.extract_strided_slice %5 {offsets = [0, 24], sizes = [8, 8], strides = [1, 1]} : vector<8x32xbf16> to vector<8x8xbf16>
    %cst_24 = arith.constant dense<0.000000e+00> : vector<8x8xf32>
    %72 = tpu.matmul %69, %70, %cst_24 {dimension_numbers = #tpu.dot_dimension_numbers<[1], [1], [0], [0], [0, 0, 1, 0], [], []>} : vector<8x8xbf16>, vector<8x8xbf16>, vector<8x8xf32> -> vector<8x8xf32>
    %cst_25 = arith.constant 0.353553385 : f32
    %73 = vector.broadcast %cst_25 : f32 to vector<8x8xf32>
    %74 = arith.mulf %72, %73 : vector<8x8xf32>
    %75 = arith.addf %74, %11 : vector<8x8xf32>
    %cst_26 = arith.constant dense<0xFF800000> : vector<8xf32>
    %76 = vector.multi_reduction <maximumf>, %75, %cst_26 [1] : vector<8x8xf32> to vector<8xf32>
    %77 = vector.shape_cast %76 : vector<8xf32> to vector<8x1xf32>
    %78 = vector.broadcast %77 : vector<8x1xf32> to vector<8x8xf32>
    %79 = arith.subf %75, %78 : vector<8x8xf32>
    %80 = math.exp %79 : vector<8x8xf32>
    %cst_27 = arith.constant dense<0.000000e+00> : vector<8xf32>
    %81 = vector.multi_reduction <add>, %80, %cst_27 [1] : vector<8x8xf32> to vector<8xf32>
    %82 = vector.shape_cast %81 : vector<8xf32> to vector<8x1xf32>
    %83 = tpu.reciprocal %82 {approx = true} : vector<8x1xf32> -> vector<8x1xf32>
    %84 = vector.broadcast %83 : vector<8x1xf32> to vector<8x8xf32>
    %85 = arith.mulf %80, %84 : vector<8x8xf32>
    %86 = arith.truncf %85 : vector<8x8xf32> to vector<8x8xbf16>
    %cst_28 = arith.constant dense<0.000000e+00> : vector<8x8xf32>
    %87 = tpu.matmul %86, %71, %cst_28 {dimension_numbers = #tpu.dot_dimension_numbers<[1], [0], [0], [1], [0, 0, 1, 1], [], []>} : vector<8x8xbf16>, vector<8x8xbf16>, vector<8x8xf32> -> vector<8x8xf32>
    %88 = tpu.concatenate %30, %49, %68, %87 in 1 : vector<8x8xf32>, vector<8x8xf32>, vector<8x8xf32>, vector<8x8xf32> -> vector<8x32xf32>
    %89 = arith.truncf %88 : vector<8x32xf32> to vector<8x32xbf16>
    %c0_29 = arith.constant 0 : index
    %c0_30 = arith.constant 0 : index
    %90 = vector.load %arg4[%c0_29, %c0_30] : memref<32x32xbf16, #tpu.memory_space<vmem>>, vector<32x32xbf16>
    %cst_31 = arith.constant dense<0.000000e+00> : vector<8x32xf32>
    %91 = tpu.matmul %89, %90, %cst_31 {dimension_numbers = #tpu.dot_dimension_numbers<[1], [0], [0], [1], [0, 0, 1, 1], [], []>} : vector<8x32xbf16>, vector<32x32xbf16>, vector<8x32xf32> -> vector<8x32xf32>
    %c0_32 = arith.constant 0 : index
    %c0_33 = arith.constant 0 : index
    %92 = vector.load %arg5[%c0_32, %c0_33] : memref<1x32xf32, #tpu.memory_space<vmem>>, vector<1x32xf32>
    %93 = vector.broadcast %92 : vector<1x32xf32> to vector<8x32xf32>
    %94 = arith.addf %91, %93 : vector<8x32xf32>
    %c0_34 = arith.constant 0 : index
    %c0_35 = arith.constant 0 : index
    %c0_36 = arith.constant 0 : index
    %95 = vector.load %arg6[%c0_34, %c0_35, %c0_36] : memref<1x8x32xf32, #tpu.memory_space<vmem>>, vector<1x8x32xf32>
    %96 = vector.shape_cast %95 : vector<1x8x32xf32> to vector<8x32xf32>
    %97 = vector.shape_cast %94 : vector<8x32xf32> to vector<1x8x32xf32>
    tpu.vector_store %arg6[%c0_34, %c0_35, %c0_36], %97 {strides = array<i32>} : memref<1x8x32xf32, #tpu.memory_space<vmem>>, vector<1x8x32xf32>,
    return
  }
  func.func @transform_0(%arg0: i32) -> (i32, i32, i32) {
    %c0_i32 = arith.constant 0 : i32
    %c0_i32_0 = arith.constant 0 : i32
    %c0_i32_1 = arith.constant 0 : i32
    return %arg0, %c0_i32, %c0_i32_0 : i32, i32, i32
  }
  func.func @transform_1(%arg0: i32) -> (i32, i32, i32) {
    %c0_i32 = arith.constant 0 : i32
    %c0_i32_0 = arith.constant 0 : i32
    %c0_i32_1 = arith.constant 0 : i32
    return %arg0, %c0_i32, %c0_i32_0 : i32, i32, i32
  }
  func.func @transform_2(%arg0: i32) -> (i32, i32, i32) {
    %c0_i32 = arith.constant 0 : i32
    %c0_i32_0 = arith.constant 0 : i32
    %c0_i32_1 = arith.constant 0 : i32
    return %arg0, %c0_i32, %c0_i32_0 : i32, i32, i32
  }
  func.func @transform_3(%arg0: i32) -> (i32, i32) {
    %c0_i32 = arith.constant 0 : i32
    %c0_i32_0 = arith.constant 0 : i32
    %c0_i32_1 = arith.constant 0 : i32
    return %c0_i32, %c0_i32_0 : i32, i32
  }
  func.func @transform_4(%arg0: i32) -> (i32, i32) {
    %c0_i32 = arith.constant 0 : i32
    %c0_i32_0 = arith.constant 0 : i32
    %c0_i32_1 = arith.constant 0 : i32
    return %c0_i32, %c0_i32_0 : i32, i32
  }
  func.func @transform_5(%arg0: i32) -> (i32, i32, i32) {
    %c0_i32 = arith.constant 0 : i32
    %c0_i32_0 = arith.constant 0 : i32
    %c0_i32_1 = arith.constant 0 : i32
    return %arg0, %c0_i32, %c0_i32_0 : i32, i32, i32
  }
}

module attributes {stable_mosaic.version = 11 : i64} {
  func.func @_linear_kernel(%arg0: i32, %arg1: i32, %arg2: i32, %arg3: memref<64x32xbf16, #tpu.memory_space<vmem>>, %arg4: memref<32x32xbf16, #tpu.memory_space<vmem>>, %arg5: memref<1x32xf32, #tpu.memory_space<vmem>>, %arg6: memref<64x32xf32, #tpu.memory_space<vmem>>) attributes {dimension_semantics = [#tpu.dimension_semantics<parallel>, #tpu.dimension_semantics<parallel>, #tpu.dimension_semantics<arbitrary>], iteration_bounds = array<i64: 1, 1, 1>, scalar_prefetch = 0 : i64, scratch_operands = 0 : i64, tpu.core_type = #tpu.core_type<tc>, window_params = [{transform_indices = @transform_0, window_bounds = array<i64: 64, 32>}, {transform_indices = @transform_1, window_bounds = array<i64: 32, 32>}, {transform_indices = @transform_2, window_bounds = array<i64: 1, 32>}, {transform_indices = @transform_3, window_bounds = array<i64: 64, 32>}]} {
    %c0_i32 = arith.constant 0 : i32
    %0 = arith.cmpi eq, %arg2, %c0_i32 : i32
    %1 = arith.extui %0 : i1 to i32
    %c0_i32_0 = arith.constant 0 : i32
    %2 = arith.cmpi ne, %1, %c0_i32_0 : i32
    scf.if %2 {
      %cst_10 = arith.constant 0.000000e+00 : f32
      %12 = vector.broadcast %cst_10 : f32 to vector<64x32xf32>
      %c0_11 = arith.constant 0 : index
      %c0_12 = arith.constant 0 : index
      %13 = vector.load %arg6[%c0_11, %c0_12] : memref<64x32xf32, #tpu.memory_space<vmem>>, vector<64x32xf32>
      tpu.vector_store %arg6[%c0_11, %c0_12], %12 {strides = array<i32>} : memref<64x32xf32, #tpu.memory_space<vmem>>, vector<64x32xf32>,
    } else {
    }
    %c0 = arith.constant 0 : index
    %c0_1 = arith.constant 0 : index
    %3 = vector.load %arg6[%c0, %c0_1] : memref<64x32xf32, #tpu.memory_space<vmem>>, vector<64x32xf32>
    %c0_2 = arith.constant 0 : index
    %c0_3 = arith.constant 0 : index
    %4 = vector.load %arg3[%c0_2, %c0_3] : memref<64x32xbf16, #tpu.memory_space<vmem>>, vector<64x32xbf16>
    %c0_4 = arith.constant 0 : index
    %c0_5 = arith.constant 0 : index
    %5 = vector.load %arg4[%c0_4, %c0_5] : memref<32x32xbf16, #tpu.memory_space<vmem>>, vector<32x32xbf16>
    %cst = arith.constant dense<0.000000e+00> : vector<64x32xf32>
    %6 = tpu.matmul %4, %5, %cst {dimension_numbers = #tpu.dot_dimension_numbers<[1], [0], [0], [1], [0, 0, 1, 1], [], []>} : vector<64x32xbf16>, vector<32x32xbf16>, vector<64x32xf32> -> vector<64x32xf32>
    %7 = arith.addf %3, %6 : vector<64x32xf32>
    %c0_6 = arith.constant 0 : index
    %c0_7 = arith.constant 0 : index
    %8 = vector.load %arg6[%c0_6, %c0_7] : memref<64x32xf32, #tpu.memory_space<vmem>>, vector<64x32xf32>
    tpu.vector_store %arg6[%c0_6, %c0_7], %7 {strides = array<i32>} : memref<64x32xf32, #tpu.memory_space<vmem>>, vector<64x32xf32>,
    %c0_i32_8 = arith.constant 0 : i32
    %9 = arith.cmpi eq, %arg2, %c0_i32_8 : i32
    %10 = arith.extui %9 : i1 to i32
    %c0_i32_9 = arith.constant 0 : i32
    %11 = arith.cmpi ne, %10, %c0_i32_9 : i32
    scf.if %11 {
      %c0_10 = arith.constant 0 : index
      %c0_11 = arith.constant 0 : index
      %12 = vector.load %arg6[%c0_10, %c0_11] : memref<64x32xf32, #tpu.memory_space<vmem>>, vector<64x32xf32>
      %c0_12 = arith.constant 0 : index
      %c0_13 = arith.constant 0 : index
      %13 = vector.load %arg5[%c0_12, %c0_13] : memref<1x32xf32, #tpu.memory_space<vmem>>, vector<1x32xf32>
      %14 = vector.broadcast %13 : vector<1x32xf32> to vector<64x32xf32>
      %15 = arith.addf %12, %14 : vector<64x32xf32>
      %c0_14 = arith.constant 0 : index
      %c0_15 = arith.constant 0 : index
      %16 = vector.load %arg6[%c0_14, %c0_15] : memref<64x32xf32, #tpu.memory_space<vmem>>, vector<64x32xf32>
      tpu.vector_store %arg6[%c0_14, %c0_15], %15 {strides = array<i32>} : memref<64x32xf32, #tpu.memory_space<vmem>>, vector<64x32xf32>,
    } else {
    }
    return
  }
  func.func @transform_0(%arg0: i32, %arg1: i32, %arg2: i32) -> (i32, i32) {
    %c0_i32 = arith.constant 0 : i32
    return %arg0, %arg2 : i32, i32
  }
  func.func @transform_1(%arg0: i32, %arg1: i32, %arg2: i32) -> (i32, i32) {
    %c0_i32 = arith.constant 0 : i32
    return %arg2, %arg1 : i32, i32
  }
  func.func @transform_2(%arg0: i32, %arg1: i32, %arg2: i32) -> (i32, i32) {
    %c0_i32 = arith.constant 0 : i32
    %c0_i32_0 = arith.constant 0 : i32
    return %c0_i32, %arg1 : i32, i32
  }
  func.func @transform_3(%arg0: i32, %arg1: i32, %arg2: i32) -> (i32, i32) {
    %c0_i32 = arith.constant 0 : i32
    return %arg0, %arg1 : i32, i32
  }
}

</mosaic_0001>

<llo_original>
// kernel: music_transformer_forward.77
$region0: #{music_transformer_forward.77}
  #allocation0 [shape = 'u32[]', space=smem, size = 0x4, offset = 0x4, fixed_abs, tag = 'smem constant byte address 0x4 - core index']
  #allocation1 [shape = 'u32[144,128]{1,0:T(1,128)}', space=vmem, size = 0x12000, scoped, tag = 'internal scratch']
  %s0 = inlined_call_operand.vmem [shape: f32[64,32], index: 0, kind: input, shape index: {}]
  %s1 = inlined_call_operand.vmem [shape: f32[64,32], index: 1, kind: input, shape index: {}]
  %s2 = inlined_call_operand.vmem [shape: f32[1,32], index: 2, kind: input, shape index: {}]
  %s3 = inlined_call_operand.vmem [shape: f32[1,32], index: 3, kind: input, shape index: {}]
  %s4 = inlined_call_operand.vmem [shape: f32[64,32], index: 4, kind: output, shape index: {}]
  %s5 = sld [smem:[#allocation0]]
  $region26: #{music_transformer_forward.77} parent=0
    _
  %s7 = ssub.s32 1, %s5
  %s8 = scalar_select 0, %s7, %s5
  // Predicated region
  $region2: #{music_transformer_forward.77} parent=0 // pred_check
    _
  $region3: #{music_transformer_forward.77} parent=0 // pred_check_branch
    %10 = sbr.rel (0) target = $region5
  $region4: #{music_transformer_forward.77} parent=0 // pred_region
    _
  $region5: #{music_transformer_forward.77} parent=0 // pred_fallthru
    _
  // Predicated region
  $region6: #{music_transformer_forward.77} parent=0 // pred_check
    _
  $region7: #{music_transformer_forward.77} parent=0 // pred_check_branch
    %12 = sbr.rel (0) target = $region9
  $region8: #{music_transformer_forward.77} parent=0 // pred_region
    _
  $region9: #{music_transformer_forward.77} parent=0 // pred_fallthru
    _
  // Predicated region
  $region10: #{music_transformer_forward.77} parent=0 // pred_check
    _
  $region11: #{music_transformer_forward.77} parent=0 // pred_check_branch
    %14 = sbr.rel (0) target = $region13
  $region12: #{music_transformer_forward.77} parent=0 // pred_region
    _
  $region13: #{music_transformer_forward.77} parent=0 // pred_fallthru
    _
  // Predicated region
  $region14: #{music_transformer_forward.77} parent=0 // pred_check
    _
  $region15: #{music_transformer_forward.77} parent=0 // pred_check_branch
    %16 = sbr.rel (0) target = $region17
  $region16: #{music_transformer_forward.77} parent=0 // pred_region
    _
  $region17: #{music_transformer_forward.77} parent=0 // pred_fallthru
    _
  %v17 = vld [vmem:[%s0] sm:$0xff]
  %v18 = vld [vmem:[%s0 + $0x8] sm:$0xff]
  %v19 = vld [vmem:[%s0 + $0x10] sm:$0xff]
  %v20 = vld [vmem:[%s0 + $0x18] sm:$0xff]
  %v21 = vld [vmem:[%s0 + $0x20] sm:$0xff]
  %v22 = vld [vmem:[%s0 + $0x28] sm:$0xff]
  %v23 = vld [vmem:[%s0 + $0x30] sm:$0xff]
  %v24 = vld [vmem:[%s0 + $0x38] sm:$0xff]
  %v25 = vld [vmem:[%s1] sm:$0xff]
  %v26 = vld [vmem:[%s1 + $0x8] sm:$0xff]
  %v27 = vld [vmem:[%s1 + $0x10] sm:$0xff]
  %v28 = vld [vmem:[%s1 + $0x18] sm:$0xff]
  %v29 = vld [vmem:[%s1 + $0x20] sm:$0xff]
  %v30 = vld [vmem:[%s1 + $0x28] sm:$0xff]
  %v31 = vld [vmem:[%s1 + $0x30] sm:$0xff]
  %v32 = vld [vmem:[%s1 + $0x38] sm:$0xff]
  %v33 = vadd.f32 %v17, %v25
  %v34 = vadd.f32 %v18, %v26
  %v35 = vadd.f32 %v19, %v27
  %v36 = vadd.f32 %v20, %v28
  %v37 = vadd.f32 %v21, %v29
  %v38 = vadd.f32 %v22, %v30
  %v39 = vadd.f32 %v23, %v31
  %v40 = vadd.f32 %v24, %v32
  %v41 = vld [vmem:[%s2] sm:$0x1]
  %v42 = vld [vmem:[%s3] sm:$0x1]
  %vm43 = vcmask 261120
  %v44 = vsel %vm43, %v33, 0.0
  %45 = vadd.xlane.f32.xlu0 %v44
  %v46 = vpop.xlane.xlu0 %45
  %v47 = vsel %vm43, %v34, 0.0
  %48 = vadd.xlane.f32.xlu0 %v47
  %v49 = vpop.xlane.xlu0 %48
  %v50 = vsel %vm43, %v35, 0.0
  %51 = vadd.xlane.f32.xlu0 %v50
  %v52 = vpop.xlane.xlu0 %51
  %v53 = vsel %vm43, %v36, 0.0
  %54 = vadd.xlane.f32.xlu0 %v53
  %v55 = vpop.xlane.xlu0 %54
  %v56 = vsel %vm43, %v37, 0.0
  %57 = vadd.xlane.f32.xlu0 %v56
  %v58 = vpop.xlane.xlu0 %57
  %v59 = vsel %vm43, %v38, 0.0
  %60 = vadd.xlane.f32.xlu0 %v59
  %v61 = vpop.xlane.xlu0 %60
  %v62 = vsel %vm43, %v39, 0.0
  %63 = vadd.xlane.f32.xlu0 %v62
  %v64 = vpop.xlane.xlu0 %63
  %v65 = vsel %vm43, %v40, 0.0
  %66 = vadd.xlane.f32.xlu0 %v65
  %v67 = vpop.xlane.xlu0 %66
  %v68 = vrcp.pop 32.0
  %v69 = vmul.f32 %v46, %v68
  %v70 = vmul.f32 %v49, %v68
  %v71 = vmul.f32 %v52, %v68
  %v72 = vmul.f32 %v55, %v68
  %v73 = vmul.f32 %v58, %v68
  %v74 = vmul.f32 %v61, %v68
  %v75 = vmul.f32 %v64, %v68
  %v76 = vmul.f32 %v67, %v68
  %v77 = vsub.f32 %v33, %v69
  %v78 = vsub.f32 %v34, %v70
  %v79 = vsub.f32 %v35, %v71
  %v80 = vsub.f32 %v36, %v72
  %v81 = vsub.f32 %v37, %v73
  %v82 = vsub.f32 %v38, %v74
  %v83 = vsub.f32 %v39, %v75
  %v84 = vsub.f32 %v40, %v76
  %v85 = vmul.f32 %v77, %v77
  %v86 = vmul.f32 %v78, %v78
  %v87 = vmul.f32 %v79, %v79
  %v88 = vmul.f32 %v80, %v80
  %v89 = vmul.f32 %v81, %v81
  %v90 = vmul.f32 %v82, %v82
  %v91 = vmul.f32 %v83, %v83
  %v92 = vmul.f32 %v84, %v84
  %v93 = vsel %vm43, %v85, 0.0
  %94 = vadd.xlane.f32.xlu0 %v93
  %v95 = vpop.xlane.xlu0 %94
  %v96 = vsel %vm43, %v86, 0.0
  %97 = vadd.xlane.f32.xlu0 %v96
  %v98 = vpop.xlane.xlu0 %97
  %v99 = vsel %vm43, %v87, 0.0
  %100 = vadd.xlane.f32.xlu0 %v99
  %v101 = vpop.xlane.xlu0 %100
  %v102 = vsel %vm43, %v88, 0.0
  %103 = vadd.xlane.f32.xlu0 %v102
  %v104 = vpop.xlane.xlu0 %103
  %v105 = vsel %vm43, %v89, 0.0
  %106 = vadd.xlane.f32.xlu0 %v105
  %v107 = vpop.xlane.xlu0 %106
  %v108 = vsel %vm43, %v90, 0.0
  %109 = vadd.xlane.f32.xlu0 %v108
  %v110 = vpop.xlane.xlu0 %109
  %v111 = vsel %vm43, %v91, 0.0
  %112 = vadd.xlane.f32.xlu0 %v111
  %v113 = vpop.xlane.xlu0 %112
  %v114 = vsel %vm43, %v92, 0.0
  %115 = vadd.xlane.f32.xlu0 %v114
  %v116 = vpop.xlane.xlu0 %115
  %v117 = vmul.f32 %v95, %v68
  %v118 = vmul.f32 %v98, %v68
  %v119 = vmul.f32 %v101, %v68
  %v120 = vmul.f32 %v104, %v68
  %v121 = vmul.f32 %v107, %v68
  %v122 = vmul.f32 %v110, %v68
  %v123 = vmul.f32 %v113, %v68
  %v124 = vmul.f32 %v116, %v68
  %v125 = vadd.f32 %v117, 1e-05
  %v126 = vadd.f32 %v118, 1e-05
  %v127 = vadd.f32 %v119, 1e-05
  %v128 = vadd.f32 %v120, 1e-05
  %v129 = vadd.f32 %v121, 1e-05
  %v130 = vadd.f32 %v122, 1e-05
  %v131 = vadd.f32 %v123, 1e-05
  %v132 = vadd.f32 %v124, 1e-05
  %v133 = vrsqrt.pop %v125
  %v134 = vrsqrt.pop %v126
  %v135 = vrsqrt.pop %v127
  %v136 = vrsqrt.pop %v128
  %v137 = vrsqrt.pop %v129
  %v138 = vrsqrt.pop %v130
  %v139 = vrsqrt.pop %v131
  %v140 = vrsqrt.pop %v132
  %v141 = vmul.f32 %v77, %v133
  %v142 = vmul.f32 %v78, %v134
  %v143 = vmul.f32 %v79, %v135
  %v144 = vmul.f32 %v80, %v136
  %v145 = vmul.f32 %v81, %v137
  %v146 = vmul.f32 %v82, %v138
  %v147 = vmul.f32 %v83, %v139
  %v148 = vmul.f32 %v84, %v140
  %v150 = vlaneseq
  %v151 = vshrl.u32 %v150, 7
  %v152 = vsub.s32 0, %v151
  %v153 = vrot.slane %v41, %v152
  %v155 = vmul.f32 %v141, %v153
  %v156 = vmul.f32 %v142, %v153
  %v157 = vmul.f32 %v143, %v153
  %v158 = vmul.f32 %v144, %v153
  %v159 = vmul.f32 %v145, %v153
  %v160 = vmul.f32 %v146, %v153
  %v161 = vmul.f32 %v147, %v153
  %v162 = vmul.f32 %v148, %v153
  %v164 = vlaneseq
  %v165 = vshrl.u32 %v164, 7
  %v166 = vsub.s32 0, %v165
  %v167 = vrot.slane %v42, %v166
  %v169 = vadd.f32 %v155, %v167
  %v170 = vadd.f32 %v156, %v167
  %v171 = vadd.f32 %v157, %v167
  %v172 = vadd.f32 %v158, %v167
  %v173 = vadd.f32 %v159, %v167
  %v174 = vadd.f32 %v160, %v167
  %v175 = vadd.f32 %v161, %v167
  %v176 = vadd.f32 %v162, %v167
  %177 = vst.msk [vmem:[%s4] sm:$0xff] %vm43, %v169
  %178 = vst.msk [vmem:[%s4 + $0x8] sm:$0xff] %vm43, %v170
  %179 = vst.msk [vmem:[%s4 + $0x10] sm:$0xff] %vm43, %v171
  %180 = vst.msk [vmem:[%s4 + $0x18] sm:$0xff] %vm43, %v172
  %181 = vst.msk [vmem:[%s4 + $0x20] sm:$0xff] %vm43, %v173
  %182 = vst.msk [vmem:[%s4 + $0x28] sm:$0xff] %vm43, %v174
  %183 = vst.msk [vmem:[%s4 + $0x30] sm:$0xff] %vm43, %v175
  %184 = vst.msk [vmem:[%s4 + $0x38] sm:$0xff] %vm43, %v176
  // Predicated region
  $region18: #{music_transformer_forward.77} parent=0 // pred_check
    _
  $region19: #{music_transformer_forward.77} parent=0 // pred_check_branch
    %186 = sbr.rel (0) target = $region21
  $region20: #{music_transformer_forward.77} parent=0 // pred_region
    _
  $region21: #{music_transformer_forward.77} parent=0 // pred_fallthru
    _
  // Predicated region
  $region22: #{music_transformer_forward.77} parent=0 // pred_check
    _
  $region23: #{music_transformer_forward.77} parent=0 // pred_check_branch
    %188 = sbr.rel (0) target = $region25
  $region24: #{music_transformer_forward.77} parent=0 // pred_region
    _
  $region25: #{music_transformer_forward.77} parent=0 // pred_fallthru
    _

// kernel: music_transformer_forward.75
$region0: #{music_transformer_forward.75}
  #allocation0 [shape = 'u32[]', space=smem, size = 0x4, offset = 0x4, fixed_abs, tag = 'smem constant byte address 0x4 - core index']
  #allocation1 [shape = 'u32[144,128]{1,0:T(1,128)}', space=vmem, size = 0x12000, scoped, tag = 'internal scratch']
  %s0 = inlined_call_operand.vmem [shape: bf16[64,32], index: 0, kind: input, shape index: {}]
  %s1 = inlined_call_operand.vmem [shape: bf16[32,96], index: 1, kind: input, shape index: {}]
  %s2 = inlined_call_operand.vmem [shape: f32[1,96], index: 2, kind: input, shape index: {}]
  %s3 = inlined_call_operand.vmem [shape: f32[64,96], index: 3, kind: output, shape index: {}]
  %s4 = sld [smem:[#allocation0]]
  $region30: #{music_transformer_forward.75} parent=0
    _
  %s6 = ssub.s32 1, %s4
  %s7 = scalar_select 0, %s6, %s4
  // Predicated region
  $region2: #{music_transformer_forward.75} parent=0 // pred_check
    _
  $region3: #{music_transformer_forward.75} parent=0 // pred_check_branch
    %9 = sbr.rel (0) target = $region5
  $region4: #{music_transformer_forward.75} parent=0 // pred_region
    _
  $region5: #{music_transformer_forward.75} parent=0 // pred_fallthru
    _
  // Predicated region
  $region6: #{music_transformer_forward.75} parent=0 // pred_check
    _
  $region7: #{music_transformer_forward.75} parent=0 // pred_check_branch
    %11 = sbr.rel (0) target = $region9
  $region8: #{music_transformer_forward.75} parent=0 // pred_region
    _
  $region9: #{music_transformer_forward.75} parent=0 // pred_fallthru
    _
  // Predicated region
  $region10: #{music_transformer_forward.75} parent=0 // pred_check
    _
  $region11: #{music_transformer_forward.75} parent=0 // pred_check_branch
    %13 = sbr.rel (0) target = $region13
  $region12: #{music_transformer_forward.75} parent=0 // pred_region
    _
  $region13: #{music_transformer_forward.75} parent=0 // pred_fallthru
    _
  %p15 = scmp.eq.s32.totalorder 0, 0
  // Predicated region
  $region14: #{music_transformer_forward.75} parent=0 // pred_check
    %p16 = pneg %p15
  $region15: #{music_transformer_forward.75} parent=0 // pred_check_branch
    %18 = sbr.rel (%p16) target = $region17
  $region16: #{music_transformer_forward.75} parent=0 // pred_region
    %vm19 = vcmask 785408
    %20 = vst.msk [vmem:[%s3] sm:$0xff] %vm19, 0.0
    %21 = vst.msk [vmem:[%s3 + $0x8] sm:$0xff] %vm19, 0.0
    %22 = vst.msk [vmem:[%s3 + $0x10] sm:$0xff] %vm19, 0.0
    %23 = vst.msk [vmem:[%s3 + $0x18] sm:$0xff] %vm19, 0.0
    %24 = vst.msk [vmem:[%s3 + $0x20] sm:$0xff] %vm19, 0.0
    %25 = vst.msk [vmem:[%s3 + $0x28] sm:$0xff] %vm19, 0.0
    %26 = vst.msk [vmem:[%s3 + $0x30] sm:$0xff] %vm19, 0.0
    %27 = vst.msk [vmem:[%s3 + $0x38] sm:$0xff] %vm19, 0.0
  $region17: #{music_transformer_forward.75} parent=0 // pred_fallthru
    _
  %v28 = vld [vmem:[%s3] sm:$0xff]
  %v29 = vld [vmem:[%s3 + $0x8] sm:$0xff]
  %v30 = vld [vmem:[%s3 + $0x10] sm:$0xff]
  %v31 = vld [vmem:[%s3 + $0x18] sm:$0xff]
  %v32 = vld [vmem:[%s3 + $0x20] sm:$0xff]
  %v33 = vld [vmem:[%s3 + $0x28] sm:$0xff]
  %v34 = vld [vmem:[%s3 + $0x30] sm:$0xff]
  %v35 = vld [vmem:[%s3 + $0x38] sm:$0xff]
  %v36 = vld [vmem:[%s0] sm:$0xf]
  %v37 = vld [vmem:[%s0 + $0x4] sm:$0xf]
  %v38 = vld [vmem:[%s0 + $0x8] sm:$0xf]
  %v39 = vld [vmem:[%s0 + $0xc] sm:$0xf]
  %v40 = vld [vmem:[%s0 + $0x10] sm:$0xf]
  %v41 = vld [vmem:[%s0 + $0x14] sm:$0xf]
  %v42 = vld [vmem:[%s0 + $0x18] sm:$0xf]
  %v43 = vld [vmem:[%s0 + $0x1c] sm:$0xf]
  %v44 = vld [vmem:[%s1] sm:$0xf]
  %v45 = vld [vmem:[%s1 + $0x4] sm:$0xf]
  %v46 = vld [vmem:[%s1 + $0x8] sm:$0xf]
  %v47 = vld [vmem:[%s1 + $0xc] sm:$0xf]
  %v56 = vunpack.c.l.b16 %v36
  %v57 = vunpack.c.l.b16 %v37
  %v58 = vunpack.c.l.b16 %v38
  %v59 = vunpack.c.l.b16 %v39
  %v60 = vunpack.c.l.b16 %v40
  %v61 = vunpack.c.l.b16 %v41
  %v62 = vunpack.c.l.b16 %v42
  %v63 = vunpack.c.l.b16 %v43
  %v64 = vpack.c.b16 %v57, %v56
  %v65 = vpack.c.b16 %v59, %v58
  %v66 = vpack.c.b16 %v61, %v60
  %v67 = vpack.c.b16 %v63, %v62
  %v72 = vunpack.c.l.b16 %v44
  %v73 = vunpack.c.l.b16 %v45
  %v74 = vunpack.c.l.b16 %v46
  %v75 = vunpack.c.l.b16 %v47
  %v76 = vpack.c.b16 %v73, %v72
  %v77 = vpack.c.b16 %v75, %v74
  %vm80 = vcmask 261120
  %v82 = vsel %vm80, %v64, 0
  %v85 = vsel %vm80, %v65, 0
  %v88 = vsel %vm80, %v66, 0
  %v91 = vsel %vm80, %v67, 0
  %93 = vmatprep.subr.bf16.mxu0 0
  %94 = vmatpush1.bf16.msra.mxu0 %v76
  %95 = vmatprep.subr.bf16.mxu0 0
  %96 = vmatpush1.bf16.msra.mxu0 %v77
  %97 = vmatprep.subr.bf16.mxu0 0
  %98 = vmatpush1.bf16.msra.mxu0 0
  %99 = vmatprep.subr.bf16.mxu0 0
  %100 = vmatpush1.bf16.msra.mxu0 0
  %101 = vmatprep.subr.bf16.mxu0 0
  %102 = vmatpush1.bf16.msra.mxu0 0
  %103 = vmatprep.subr.bf16.mxu0 0
  %104 = vmatpush1.bf16.msra.mxu0 0
  %105 = vmatprep.subr.bf16.mxu0 0
  %106 = vmatpush1.bf16.msra.mxu0 0
  %107 = vmatprep.subr.bf16.mxu0 0
  %108 = vmatpush1.bf16.msra.mxu0 0
  %109 = vmatprep.subr.bf16.mxu0 0
  %110 = vmatpush1.bf16.msra.mxu0 0
  %111 = vmatprep.subr.bf16.mxu0 0
  %112 = vmatpush1.bf16.msra.mxu0 0
  %113 = vmatprep.subr.bf16.mxu0 0
  %114 = vmatpush1.bf16.msra.mxu0 0
  %115 = vmatprep.subr.bf16.mxu0 0
  %116 = vmatpush1.bf16.msra.mxu0 0
  %117 = vmatprep.subr.bf16.mxu0 0
  %118 = vmatpush1.bf16.msra.mxu0 0
  %119 = vmatprep.subr.bf16.mxu0 0
  %120 = vmatpush1.bf16.msra.mxu0 0
  %121 = vmatprep.subr.bf16.mxu0 0
  %122 = vmatpush1.bf16.msra.mxu0 0
  %123 = vmatprep.subr.bf16.mxu0 0
  %124 = vmatpush1.bf16.msra.mxu0 0
  %125 = vmatprep.mubr.bf16.mxu0 0
  %126 = vmatmul.mubr.bf16.gmra.mrb[0].mxu0 %v82
  %v127 = vpop.f32.mrb[0].mxu0
  %v128 = vadd.f32 0.0, %v127
  %v129 = vpop.f32.mrb[0].mxu0
  %v130 = vpop.f32.mrb[0].mxu0
  %v131 = vadd.f32 0.0, %v130
  %v132 = vpop.f32.mrb[0].mxu0
  %133 = vmatprep.mubr.bf16.mxu0 0
  %134 = vmatmul.mubr.bf16.gmra.mrb[0].mxu0 %v85
  %v135 = vpop.f32.mrb[0].mxu0
  %v136 = vadd.f32 0.0, %v135
  %v137 = vpop.f32.mrb[0].mxu0
  %v138 = vpop.f32.mrb[0].mxu0
  %v139 = vadd.f32 0.0, %v138
  %v140 = vpop.f32.mrb[0].mxu0
  %141 = vmatprep.mubr.bf16.mxu0 0
  %142 = vmatmul.mubr.bf16.gmra.mrb[0].mxu0 %v88
  %v143 = vpop.f32.mrb[0].mxu0
  %v144 = vadd.f32 0.0, %v143
  %v145 = vpop.f32.mrb[0].mxu0
  %v146 = vpop.f32.mrb[0].mxu0
  %v147 = vadd.f32 0.0, %v146
  %v148 = vpop.f32.mrb[0].mxu0
  %149 = vmatprep.mubr.bf16.mxu0 0
  %150 = vmatmul.mubr.bf16.gmra.mrb[0].mxu0 %v91
  %v151 = vpop.f32.mrb[0].mxu0
  %v152 = vadd.f32 0.0, %v151
  %v153 = vpop.f32.mrb[0].mxu0
  %v154 = vpop.f32.mrb[0].mxu0
  %v155 = vadd.f32 0.0, %v154
  %v156 = vpop.f32.mrb[0].mxu0
  %157 = vdwg.mxu0
  %v158 = vadd.f32 %v28, %v128
  %v159 = vadd.f32 %v29, %v131
  %v160 = vadd.f32 %v30, %v136
  %v161 = vadd.f32 %v31, %v139
  %v162 = vadd.f32 %v32, %v144
  %v163 = vadd.f32 %v33, %v147
  %v164 = vadd.f32 %v34, %v152
  %v165 = vadd.f32 %v35, %v155
  %vm166 = vcmask 785408
  %167 = vst.msk [vmem:[%s3] sm:$0xff] %vm166, %v158
  %168 = vst.msk [vmem:[%s3 + $0x8] sm:$0xff] %vm166, %v159
  %169 = vst.msk [vmem:[%s3 + $0x10] sm:$0xff] %vm166, %v160
  %170 = vst.msk [vmem:[%s3 + $0x18] sm:$0xff] %vm166, %v161
  %171 = vst.msk [vmem:[%s3 + $0x20] sm:$0xff] %vm166, %v162
  %172 = vst.msk [vmem:[%s3 + $0x28] sm:$0xff] %vm166, %v163
  %173 = vst.msk [vmem:[%s3 + $0x30] sm:$0xff] %vm166, %v164
  %174 = vst.msk [vmem:[%s3 + $0x38] sm:$0xff] %vm166, %v165
  // Predicated region
  $region18: #{music_transformer_forward.75} parent=0 // pred_check
    %p175 = pneg %p15
  $region19: #{music_transformer_forward.75} parent=0 // pred_check_branch
    %177 = sbr.rel (%p175) target = $region21
  $region20: #{music_transformer_forward.75} parent=0 // pred_region
    %v178 = vld [vmem:[%s3] sm:$0xff]
    %v179 = vld [vmem:[%s3 + $0x8] sm:$0xff]
    %v180 = vld [vmem:[%s3 + $0x10] sm:$0xff]
    %v181 = vld [vmem:[%s3 + $0x18] sm:$0xff]
    %v182 = vld [vmem:[%s3 + $0x20] sm:$0xff]
    %v183 = vld [vmem:[%s3 + $0x28] sm:$0xff]
    %v184 = vld [vmem:[%s3 + $0x30] sm:$0xff]
    %v185 = vld [vmem:[%s3 + $0x38] sm:$0xff]
    %v186 = vld [vmem:[%s2] sm:$0x1]
    %v188 = vlaneseq
    %v189 = vshrl.u32 %v188, 7
    %v190 = vsub.s32 0, %v189
    %v191 = vrot.slane %v186, %v190
    %v193 = vadd.f32 %v178, %v191
    %v194 = vadd.f32 %v179, %v191
    %v195 = vadd.f32 %v180, %v191
    %v196 = vadd.f32 %v181, %v191
    %v197 = vadd.f32 %v182, %v191
    %v198 = vadd.f32 %v183, %v191
    %v199 = vadd.f32 %v184, %v191
    %v200 = vadd.f32 %v185, %v191
    %201 = vst.msk [vmem:[%s3] sm:$0xff] %vm166, %v193
    %202 = vst.msk [vmem:[%s3 + $0x8] sm:$0xff] %vm166, %v194
    %203 = vst.msk [vmem:[%s3 + $0x10] sm:$0xff] %vm166, %v195
    %204 = vst.msk [vmem:[%s3 + $0x18] sm:$0xff] %vm166, %v196
    %205 = vst.msk [vmem:[%s3 + $0x20] sm:$0xff] %vm166, %v197
    %206 = vst.msk [vmem:[%s3 + $0x28] sm:$0xff] %vm166, %v198
    %207 = vst.msk [vmem:[%s3 + $0x30] sm:$0xff] %vm166, %v199
    %208 = vst.msk [vmem:[%s3 + $0x38] sm:$0xff] %vm166, %v200
  $region21: #{music_transformer_forward.75} parent=0 // pred_fallthru
    _
  // Predicated region
  $region22: #{music_transformer_forward.75} parent=0 // pred_check
    _
  $region23: #{music_transformer_forward.75} parent=0 // pred_check_branch
    %210 = sbr.rel (0) target = $region25
  $region24: #{music_transformer_forward.75} parent=0 // pred_region
    _
  $region25: #{music_transformer_forward.75} parent=0 // pred_fallthru
    _
  // Predicated region
  $region26: #{music_transformer_forward.75} parent=0 // pred_check
    _
  $region27: #{music_transformer_forward.75} parent=0 // pred_check_branch
    %212 = sbr.rel (0) target = $region29
  $region28: #{music_transformer_forward.75} parent=0 // pred_region
    _
  $region29: #{music_transformer_forward.75} parent=0 // pred_fallthru
    _

// kernel: music_transformer_forward.78
$region0: #{music_transformer_forward.78}
  #allocation0 [shape = 'u32[]', space=smem, size = 0x4, offset = 0x4, fixed_abs, tag = 'smem constant byte address 0x4 - core index']
  #allocation1 [shape = 'u32[144,128]{1,0:T(1,128)}', space=vmem, size = 0x12000, scoped, tag = 'internal scratch']
  %s0 = inlined_call_operand.vmem [shape: bf16[64,32], index: 0, kind: input, shape index: {}]
  %s1 = inlined_call_operand.vmem [shape: bf16[32,2048], index: 1, kind: input, shape index: {}]
  %s2 = inlined_call_operand.vmem [shape: f32[1,2048], index: 2, kind: input, shape index: {}]
  %s3 = inlined_call_operand.vmem [shape: f32[64,2048], index: 3, kind: output, shape index: {}]
  %s4 = sld [smem:[#allocation0]]
  $region110: #{music_transformer_forward.78} parent=0
    _
  %s6 = ssub.s32 1, %s4
  %s7 = scalar_select 0, %s6, %s4
  $region1: #{music_transformer_forward.78} parent=0
    #allocation2 [shape = 'u8[32768]{0}', space=vmem, size = 0x8000, scoped, tag = 'input window, operand 1']
    #allocation3 [shape = 'u8[131072]{0}', space=vmem, size = 0x20000, scoped, tag = 'output window, operand 0']
    loop: start=0, step=1, limit=10
    $region2: #{music_transformer_forward.78} parent=1 // loop_pre_header
      _
    $region3: #{music_transformer_forward.78} parent=1 // loop_header
      %s9 = sphi 0, %s13
      %p10 = scmp.ge.s32.totalorder %s9, 10
      %s16 = sphi 0, %s35
      %s17 = sphi 0, %s31
      %s18 = sphi 0, %s27
      %s19 = sphi 0, %s16
      %s20 = sphi 0, %s17
      %s21 = sphi 0, %s18
      %s22 = sphi 0, %s19
      %s23 = sphi 0, %s20
      %s24 = sphi 0, %s21
      %s40 = sphi 0, %s42
      %s43 = sphi 0, %s40
      %s44 = sphi 0, %s43
      %s60 = sphi 0, %s44
      %s68 = sphi 0, %s70
      %s71 = sphi 0, %s68
      %s72 = sphi 0, %s71
      %s88 = sphi 0, %s72
      %s94 = sphi 0, %s96
      %s97 = sphi 0, %s94
      %s98 = sphi 0, %s97
      %s114 = sphi 0, %s98
      %s122 = sphi 0, %s124
      %s125 = sphi 0, %s122
      %s126 = sphi 0, %s125
      %s142 = sphi 0, %s126
    $region4: #{music_transformer_forward.78} parent=1 // loop_header_branch
      %12 = sbr.rel (%p10) target = $region8
    $region5: #{music_transformer_forward.78} parent=1 // loop_body
      %s14 = ssub.s32 %s9, 1
      %s15 = ssub.s32 %s9, 2
      %s25 = sadd.s32 1, %s18
      %p26 = scmp.ge.s32.totalorder %s25, 1
      %s27 = scalar_select %p26, 0, %s25
      %s28 = sadd.s32 1, %s17
      %s29 = scalar_select %p26, %s28, %s17
      %p30 = scmp.ge.s32.totalorder %s29, 8
      %s31 = scalar_select %p30, 0, %s29
      %s32 = sadd.s32 1, %s16
      %s33 = scalar_select %p30, %s32, %s16
      %p34 = scmp.ge.s32.totalorder %s33, 1
      %s35 = scalar_select %p34, 0, %s33
      %s36 = ssub.s32 %s16, %s35
      %s37 = ssub.s32 %s18, %s27
      %s38 = sor.u32 %s36, %s37
      %p39 = scmp.eq.s32.totalorder %s38, 0
      %s41 = sadd.s32 %s40, 1
      %s42 = scalar_select %p39, %s40, %s41
      %p45 = pneg %p39
      %p46 = scmp.eq.s32.totalorder %s9, 7
      %p47 = por %p45, %p46
      %p48 = scmp.ne.s32.totalorder %s40, %s43
      %p49 = scmp.eq.s32.totalorder %s9, 0
      %p50 = por %p48, %p49
      %p51 = scmp.ne.s32.totalorder %s40, %s43
      %p52 = scmp.eq.s32.totalorder %s14, 7
      %p53 = por %p51, %p52
      %p54 = scmp.ne.s32.totalorder %s43, %s44
      %p55 = scmp.eq.s32.totalorder %s14, 0
      %p56 = por %p54, %p55
      %p57 = scmp.ne.s32.totalorder %s43, %s44
      %p58 = scmp.eq.s32.totalorder %s15, 7
      %p59 = por %p57, %p58
      %p61 = scmp.ne.s32.totalorder %s44, %s60
      %p62 = scmp.eq.s32.totalorder %s15, 0
      %p63 = por %p61, %p62
      %s64 = ssub.s32 %s18, %s27
      %s65 = ssub.s32 %s17, %s31
      %s66 = sor.u32 %s64, %s65
      %p67 = scmp.eq.s32.totalorder %s66, 0
      %s69 = sadd.s32 %s68, 1
      %s70 = scalar_select %p67, %s68, %s69
      %p73 = pneg %p67
      %p74 = scmp.eq.s32.totalorder %s9, 7
      %p75 = por %p73, %p74
      %p76 = scmp.ne.s32.totalorder %s68, %s71
      %p77 = scmp.eq.s32.totalorder %s9, 0
      %p78 = por %p76, %p77
      %p79 = scmp.ne.s32.totalorder %s68, %s71
      %p80 = scmp.eq.s32.totalorder %s14, 7
      %p81 = por %p79, %p80
      %p82 = scmp.ne.s32.totalorder %s71, %s72
      %p83 = scmp.eq.s32.totalorder %s14, 0
      %p84 = por %p82, %p83
      %p85 = scmp.ne.s32.totalorder %s71, %s72
      %p86 = scmp.eq.s32.totalorder %s15, 7
      %p87 = por %p85, %p86
      %p89 = scmp.ne.s32.totalorder %s72, %s88
      %p90 = scmp.eq.s32.totalorder %s15, 0
      %p91 = por %p89, %p90
      %s92 = ssub.s32 %s17, %s31
      %p93 = scmp.eq.s32.totalorder %s92, 0
      %s95 = sadd.s32 %s94, 1
      %s96 = scalar_select %p93, %s94, %s95
      %p99 = pneg %p93
      %p100 = scmp.eq.s32.totalorder %s9, 7
      %p101 = por %p99, %p100
      %p102 = scmp.ne.s32.totalorder %s94, %s97
      %p103 = scmp.eq.s32.totalorder %s9, 0
      %p104 = por %p102, %p103
      %p105 = scmp.ne.s32.totalorder %s94, %s97
      %p106 = scmp.eq.s32.totalorder %s14, 7
      %p107 = por %p105, %p106
      %p108 = scmp.ne.s32.totalorder %s97, %s98
      %p109 = scmp.eq.s32.totalorder %s14, 0
      %p110 = por %p108, %p109
      %p111 = scmp.ne.s32.totalorder %s97, %s98
      %p112 = scmp.eq.s32.totalorder %s15, 7
      %p113 = por %p111, %p112
      %p115 = scmp.ne.s32.totalorder %s98, %s114
      %p116 = scmp.eq.s32.totalorder %s15, 0
      %p117 = por %p115, %p116
      %s118 = ssub.s32 %s16, %s35
      %s119 = ssub.s32 %s17, %s31
      %s120 = sor.u32 %s118, %s119
      %p121 = scmp.eq.s32.totalorder %s120, 0
      %s123 = sadd.s32 %s122, 1
      %s124 = scalar_select %p121, %s122, %s123
      %p127 = pneg %p121
      %p128 = scmp.eq.s32.totalorder %s9, 7
      %p129 = por %p127, %p128
      %p130 = scmp.ne.s32.totalorder %s122, %s125
      %p131 = scmp.eq.s32.totalorder %s9, 0
      %p132 = por %p130, %p131
      %p133 = scmp.ne.s32.totalorder %s122, %s125
      %p134 = scmp.eq.s32.totalorder %s14, 7
      %p135 = por %p133, %p134
      %p136 = scmp.ne.s32.totalorder %s125, %s126
      %p137 = scmp.eq.s32.totalorder %s14, 0
      %p138 = por %p136, %p137
      %p139 = scmp.ne.s32.totalorder %s125, %s126
      %p140 = scmp.eq.s32.totalorder %s15, 7
      %p141 = por %p139, %p140
      %p143 = scmp.ne.s32.totalorder %s126, %s142
      %p144 = scmp.eq.s32.totalorder %s15, 0
      %p145 = por %p143, %p144
      %p146 = scmp.le.s32.totalorder 1, %s9
      %p147 = scmp.lt.s32.totalorder %s9, 9
      %p148 = pnand %p146, %p147
      %p149 = pneg %p148
      // Predicated region
      $region9: #{music_transformer_forward.78} parent=5 // pred_check
        _
      $region10: #{music_transformer_forward.78} parent=5 // pred_check_branch
        %151 = sbr.rel (%p148) target = $region12
      $region11: #{music_transformer_forward.78} parent=5 // pred_region
        %s152 = ssub.s32 %s9, 1
        // Predicated region
        $region13: #{music_transformer_forward.78} parent=11 // pred_check
          %p153 = pneg %p56
        $region14: #{music_transformer_forward.78} parent=11 // pred_check_branch
          %155 = sbr.rel (%p153) target = $region16
        $region15: #{music_transformer_forward.78} parent=11 // pred_region
          %s156 = smul.u32 8, %s19
          %p157 = scmp.lt.s32.totalorder %s156, 7
          %s158 = scalar_select %p157, %s156, 7
          %p159 = scmp.lt.s32.totalorder %s21, 0
          %s160 = scalar_select %p159, %s21, 0
          %s161 = sadd.s32 %s160, %s158
          %s162 = smul.addr %s161, 4
          %s163 = scalar_lea.vmem %s0, %s162
          %s164 = smul.u32 8, %s19
        $region16: #{music_transformer_forward.78} parent=11 // pred_fallthru
          _
      $region12: #{music_transformer_forward.78} parent=5 // pred_fallthru
        _
      %p165 = scmp.lt.s32.totalorder %s9, 8
      // Predicated region
      $region17: #{music_transformer_forward.78} parent=5 // pred_check
        %p166 = pneg %p165
      $region18: #{music_transformer_forward.78} parent=5 // pred_check_branch
        %168 = sbr.rel (%p166) target = $region20
      $region19: #{music_transformer_forward.78} parent=5 // pred_region
        // Predicated region
        $region21: #{music_transformer_forward.78} parent=19 // pred_check
          %p169 = pneg %p78
        $region22: #{music_transformer_forward.78} parent=19 // pred_check_branch
          %171 = sbr.rel (%p169) target = $region24
        $region23: #{music_transformer_forward.78} parent=19 // pred_region
          %s172 = sand.u32 %s68, 1
          %s173 = sand.u32 %s68, 1
          %s174 = smul.addr %s173, 32
          %s175 = scalar_lea.vmem [#allocation2], %s174
          %s176 = smul.u32 4, %s18
          %s177 = smul.u32 2, %s17
          %s178 = smul.addr %s176, 16
          %s179 = sadd.s32 %s177, %s178
          %s180 = smul.addr %s179, 4
          %s181 = scalar_lea.vmem %s1, %s180
          // Predicated region
          $region25: #{music_transformer_forward.78} parent=23 // pred_check
            _
          $region26: #{music_transformer_forward.78} parent=23 // pred_check_branch
            %183 = sbr.rel (0) target = $region28
          $region27: #{music_transformer_forward.78} parent=23 // pred_region
            // Predicated region
            $region29: #{music_transformer_forward.78} parent=27 // pred_check
              _
            $region30: #{music_transformer_forward.78} parent=27 // pred_check_branch
              %185 = sbr.rel (0) target = $region32
            $region31: #{music_transformer_forward.78} parent=27 // pred_region
              // Predicated region
              $region44: #{music_transformer_forward.78} parent=31 // pred_check
                _
              $region45: #{music_transformer_forward.78} parent=31 // pred_check_branch
                %206 = sbr.rel (0) target = $region47
              $region46: #{music_transformer_forward.78} parent=31 // pred_region
                loop: start=0, step=1, limit=1
                $region48: #{music_transformer_forward.78} parent=46 // loop_pre_header
                  _
                $region49: #{music_transformer_forward.78} parent=46 // loop_header
                  %s208 = sphi 0, %s212
                  %p209 = scmp.ge.s32.totalorder %s208, 1
                  %s213 = sphi %s181, %s181
                  %s214 = sphi %s175, %s175
                $region50: #{music_transformer_forward.78} parent=46 // loop_header_branch
                  %211 = sbr.rel (%p209) target = $region54
                $region51: #{music_transformer_forward.78} parent=46 // loop_body
                  %v215 = vld [vmem:[%s213] sm:$0xff]
                  %216 = vst [vmem:[%s214] sm:$0xff] %v215
                  %v217 = vld [vmem:[%s213 + $0x40] sm:$0xff]
                  %218 = vst [vmem:[%s214 + $0x8] sm:$0xff] %v217
                  %v219 = vld [vmem:[%s213 + $0x80] sm:$0xff]
                  %220 = vst [vmem:[%s214 + $0x10] sm:$0xff] %v219
                  %v221 = vld [vmem:[%s213 + $0xc0] sm:$0xff]
                  %222 = vst [vmem:[%s214 + $0x18] sm:$0xff] %v221
                $region52: #{music_transformer_forward.78} parent=46 // loop_footer
                  %s212 = sadd.s32 1, %s208
                $region53: #{music_transformer_forward.78} parent=46 // loop_footer_branch
                  %207 = sbr.rel target = $region49
                $region54: #{music_transformer_forward.78} parent=46 // loop_exit
                  _
              $region47: #{music_transformer_forward.78} parent=31 // pred_fallthru
                _
              // Predicated region
              $region55: #{music_transformer_forward.78} parent=31 // pred_check
                _
              $region56: #{music_transformer_forward.78} parent=31 // pred_check_branch
                %224 = sbr.rel target = $region58
              $region57: #{music_transformer_forward.78} parent=31 // pred_region
                _
              $region58: #{music_transformer_forward.78} parent=31 // pred_fallthru
                _
            $region32: #{music_transformer_forward.78} parent=27 // pred_fallthru
              _
            // Predicated region
            $region33: #{music_transformer_forward.78} parent=27 // pred_check
              _
            $region34: #{music_transformer_forward.78} parent=27 // pred_check_branch
              %187 = sbr.rel target = $region36
            $region35: #{music_transformer_forward.78} parent=27 // pred_region
              loop: start=0, step=1, limit=1
              $region37: #{music_transformer_forward.78} parent=35 // loop_pre_header
                _
              $region38: #{music_transformer_forward.78} parent=35 // loop_header
                %s190 = sphi 0, %s194
                %p191 = scmp.ge.s32.totalorder %s190, 1
                %s195 = sphi %s181, %s181
                %s196 = sphi %s175, %s175
              $region39: #{music_transformer_forward.78} parent=35 // loop_header_branch
                %193 = sbr.rel (%p191) target = $region43
              $region40: #{music_transformer_forward.78} parent=35 // loop_body
                %v197 = vld [vmem:[%s195] sm:$0xff]
                %198 = vst [vmem:[%s196] sm:$0xff] %v197
                %v199 = vld [vmem:[%s195 + $0x40] sm:$0xff]
                %200 = vst [vmem:[%s196 + $0x8] sm:$0xff] %v199
                %v201 = vld [vmem:[%s195 + $0x80] sm:$0xff]
                %202 = vst [vmem:[%s196 + $0x10] sm:$0xff] %v201
                %v203 = vld [vmem:[%s195 + $0xc0] sm:$0xff]
                %204 = vst [vmem:[%s196 + $0x18] sm:$0xff] %v203
              $region41: #{music_transformer_forward.78} parent=35 // loop_footer
                %s194 = sadd.s32 1, %s190
              $region42: #{music_transformer_forward.78} parent=35 // loop_footer_branch
                %189 = sbr.rel target = $region38
              $region43: #{music_transformer_forward.78} parent=35 // loop_exit
                _
            $region36: #{music_transformer_forward.78} parent=27 // pred_fallthru
              _
          $region28: #{music_transformer_forward.78} parent=23 // pred_fallthru
            _
          %225 = vnop
        $region24: #{music_transformer_forward.78} parent=19 // pred_fallthru
          _
        // Predicated region
        $region59: #{music_transformer_forward.78} parent=19 // pred_check
          %p226 = pneg %p104
        $region60: #{music_transformer_forward.78} parent=19 // pred_check_branch
          %228 = sbr.rel (%p226) target = $region62
        $region61: #{music_transformer_forward.78} parent=19 // pred_region
          %s229 = smul.u32 2, %s17
          %p230 = scmp.lt.s32.totalorder %s229, 15
          %s231 = scalar_select %p230, %s229, 15
          %s232 = scalar_lea.vmem %s2, %s231
          %s233 = smul.u32 2, %s17
        $region62: #{music_transformer_forward.78} parent=19 // pred_fallthru
          _
      $region20: #{music_transformer_forward.78} parent=5 // pred_fallthru
        _
      %p234 = scmp.le.s32.totalorder 1, %s9
      %p235 = scmp.lt.s32.totalorder %s9, 9
      %p236 = pnand %p234, %p235
      %p237 = pneg %p236
      // Predicated region
      $region63: #{music_transformer_forward.78} parent=5 // pred_check
        _
      $region64: #{music_transformer_forward.78} parent=5 // pred_check_branch
        %239 = sbr.rel (%p236) target = $region66
      $region65: #{music_transformer_forward.78} parent=5 // pred_region
        %s240 = ssub.s32 %s9, 1
        %s241 = sand.u32 %s71, 1
        %s242 = sand.u32 %s71, 1
        %s243 = smul.addr %s242, 32
        %s244 = scalar_lea.vmem [#allocation2], %s243
        // Predicated region
        $region67: #{music_transformer_forward.78} parent=65 // pred_check
          %p245 = pneg %p84
        $region68: #{music_transformer_forward.78} parent=65 // pred_check_branch
          %247 = sbr.rel (%p245) target = $region70
        $region69: #{music_transformer_forward.78} parent=65 // pred_region
          _
        $region70: #{music_transformer_forward.78} parent=65 // pred_fallthru
          _
        %s248 = smul.u32 8, %s19
        %p249 = scmp.lt.s32.totalorder %s248, 7
        %s250 = scalar_select %p249, %s248, 7
        %p251 = scmp.lt.s32.totalorder %s21, 0
        %s252 = scalar_select %p251, %s21, 0
        %s253 = sadd.s32 %s252, %s250
        %s254 = smul.addr %s253, 4
        %s255 = scalar_lea.vmem %s0, %s254
        %p256 = pneg %p56
        %p257 = pneg %p53
        %s258 = sand.u32 %s71, 1
        %s259 = sand.u32 %s71, 1
        %s260 = smul.addr %s259, 32
        %s261 = scalar_lea.vmem [#allocation2], %s260
        %p262 = pneg %p84
        %p263 = pneg %p81
        %s264 = smul.u32 2, %s20
        %p265 = scmp.lt.s32.totalorder %s264, 15
        %s266 = scalar_select %p265, %s264, 15
        %s267 = scalar_lea.vmem %s2, %s266
        %p268 = pneg %p110
        %p269 = pneg %p107
        %p270 = pneg %p138
        %p271 = pneg %p135
        %s272 = sand.u32 %s125, 1
        %s273 = sand.u32 %s125, 1
        %s274 = smul.addr %s273, 128
        %s275 = scalar_lea.vmem [#allocation3], %s274
        %s276 = smul.u32 8, %s19
        %p277 = scmp.lt.s32.totalorder %s276, 7
        %s278 = scalar_select %p277, %s276, 7
        %p279 = scmp.lt.s32.totalorder %s21, 0
        %s280 = scalar_select %p279, %s21, 0
        %s281 = sadd.s32 %s280, %s278
        %s282 = smul.addr %s281, 4
        %s283 = scalar_lea.vmem %s0, %s282
        %s284 = smul.u32 8, %s19
        %s285 = smul.u32 4, %s21
        %s286 = smul.u32 2, %s20
        %s287 = smul.u32 2, %s20
        %p288 = scmp.lt.s32.totalorder %s287, 15
        %s289 = scalar_select %p288, %s287, 15
        %s290 = scalar_lea.vmem %s2, %s289
        %s291 = smul.u32 2, %s20
        %s292 = smul.u32 8, %s19
        %s293 = smul.u32 2, %s20
        %p295 = scmp.eq.s32.totalorder %s21, 0
        // Predicated region
        $region71: #{music_transformer_forward.78} parent=65 // pred_check
          %p296 = pneg %p295
        $region72: #{music_transformer_forward.78} parent=65 // pred_check_branch
          %298 = sbr.rel (%p296) target = $region74
        $region73: #{music_transformer_forward.78} parent=65 // pred_region
          %299 = vst [vmem:[%s275] sm:$0xff] 0.0
          %300 = vst [vmem:[%s275 + $0x8] sm:$0xff] 0.0
          %301 = vst [vmem:[%s275 + $0x10] sm:$0xff] 0.0
          %302 = vst [vmem:[%s275 + $0x18] sm:$0xff] 0.0
          %303 = vst [vmem:[%s275 + $0x20] sm:$0xff] 0.0
          %304 = vst [vmem:[%s275 + $0x28] sm:$0xff] 0.0
          %305 = vst [vmem:[%s275 + $0x30] sm:$0xff] 0.0
          %306 = vst [vmem:[%s275 + $0x38] sm:$0xff] 0.0
          %307 = vst [vmem:[%s275 + $0x40] sm:$0xff] 0.0
          %308 = vst [vmem:[%s275 + $0x48] sm:$0xff] 0.0
          %309 = vst [vmem:[%s275 + $0x50] sm:$0xff] 0.0
          %310 = vst [vmem:[%s275 + $0x58] sm:$0xff] 0.0
          %311 = vst [vmem:[%s275 + $0x60] sm:$0xff] 0.0
          %312 = vst [vmem:[%s275 + $0x68] sm:$0xff] 0.0
          %313 = vst [vmem:[%s275 + $0x70] sm:$0xff] 0.0
          %314 = vst [vmem:[%s275 + $0x78] sm:$0xff] 0.0
        $region74: #{music_transformer_forward.78} parent=65 // pred_fallthru
          _
        %v315 = vld [vmem:[%s275] sm:$0xff]
        %v316 = vld [vmem:[%s275 + $0x8] sm:$0xff]
        %v317 = vld [vmem:[%s275 + $0x10] sm:$0xff]
        %v318 = vld [vmem:[%s275 + $0x18] sm:$0xff]
        %v319 = vld [vmem:[%s275 + $0x20] sm:$0xff]
        %v320 = vld [vmem:[%s275 + $0x28] sm:$0xff]
        %v321 = vld [vmem:[%s275 + $0x30] sm:$0xff]
        %v322 = vld [vmem:[%s275 + $0x38] sm:$0xff]
        %v323 = vld [vmem:[%s275 + $0x40] sm:$0xff]
        %v324 = vld [vmem:[%s275 + $0x48] sm:$0xff]
        %v325 = vld [vmem:[%s275 + $0x50] sm:$0xff]
        %v326 = vld [vmem:[%s275 + $0x58] sm:$0xff]
        %v327 = vld [vmem:[%s275 + $0x60] sm:$0xff]
        %v328 = vld [vmem:[%s275 + $0x68] sm:$0xff]
        %v329 = vld [vmem:[%s275 + $0x70] sm:$0xff]
        %v330 = vld [vmem:[%s275 + $0x78] sm:$0xff]
        %v331 = vld [vmem:[%s283] sm:$0xf]
        %v332 = vld [vmem:[%s283 + $0x4] sm:$0xf]
        %v333 = vld [vmem:[%s283 + $0x8] sm:$0xf]
        %v334 = vld [vmem:[%s283 + $0xc] sm:$0xf]
        %v335 = vld [vmem:[%s283 + $0x10] sm:$0xf]
        %v336 = vld [vmem:[%s283 + $0x14] sm:$0xf]
        %v337 = vld [vmem:[%s283 + $0x18] sm:$0xf]
        %v338 = vld [vmem:[%s283 + $0x1c] sm:$0xf]
        %v339 = vld [vmem:[%s244] sm:$0xff]
        %v340 = vld [vmem:[%s244 + $0x8] sm:$0xff]
        %v341 = vld [vmem:[%s244 + $0x10] sm:$0xff]
        %v342 = vld [vmem:[%s244 + $0x18] sm:$0xff]
        %v351 = vunpack.c.l.b16 %v331
        %v352 = vunpack.c.l.b16 %v332
        %v353 = vunpack.c.l.b16 %v333
        %v354 = vunpack.c.l.b16 %v334
        %v355 = vunpack.c.l.b16 %v335
        %v356 = vunpack.c.l.b16 %v336
        %v357 = vunpack.c.l.b16 %v337
        %v358 = vunpack.c.l.b16 %v338
        %v359 = vpack.c.b16 %v352, %v351
        %v360 = vpack.c.b16 %v354, %v353
        %v361 = vpack.c.b16 %v356, %v355
        %v362 = vpack.c.b16 %v358, %v357
        %v367 = vunpack.c.l.b16 %v339
        %v368 = vunpack.c.h.b16 %v339
        %v369 = vunpack.c.l.b16 %v340
        %v370 = vunpack.c.h.b16 %v340
        %v371 = vunpack.c.l.b16 %v341
        %v372 = vunpack.c.h.b16 %v341
        %v373 = vunpack.c.l.b16 %v342
        %v374 = vunpack.c.h.b16 %v342
        %v375 = vpack.c.b16 %v369, %v367
        %v376 = vpack.c.b16 %v370, %v368
        %v377 = vpack.c.b16 %v373, %v371
        %v378 = vpack.c.b16 %v374, %v372
        %vm383 = vcmask 261120
        %v385 = vsel %vm383, %v359, 0
        %v388 = vsel %vm383, %v360, 0
        %v391 = vsel %vm383, %v361, 0
        %v394 = vsel %vm383, %v362, 0
        %396 = vmatprep.subr.bf16.mxu0 %v376
        %397 = vmatpush1.bf16.msra.mxu0 %v375
        %398 = vmatprep.subr.bf16.mxu0 %v378
        %399 = vmatpush1.bf16.msra.mxu0 %v377
        %400 = vmatprep.subr.bf16.mxu0 0
        %401 = vmatpush1.bf16.msra.mxu0 0
        %402 = vmatprep.subr.bf16.mxu0 0
        %403 = vmatpush1.bf16.msra.mxu0 0
        %404 = vmatprep.subr.bf16.mxu0 0
        %405 = vmatpush1.bf16.msra.mxu0 0
        %406 = vmatprep.subr.bf16.mxu0 0
        %407 = vmatpush1.bf16.msra.mxu0 0
        %408 = vmatprep.subr.bf16.mxu0 0
        %409 = vmatpush1.bf16.msra.mxu0 0
        %410 = vmatprep.subr.bf16.mxu0 0
        %411 = vmatpush1.bf16.msra.mxu0 0
        %412 = vmatprep.subr.bf16.mxu0 0
        %413 = vmatpush1.bf16.msra.mxu0 0
        %414 = vmatprep.subr.bf16.mxu0 0
        %415 = vmatpush1.bf16.msra.mxu0 0
        %416 = vmatprep.subr.bf16.mxu0 0
        %417 = vmatpush1.bf16.msra.mxu0 0
        %418 = vmatprep.subr.bf16.mxu0 0
        %419 = vmatpush1.bf16.msra.mxu0 0
        %420 = vmatprep.subr.bf16.mxu0 0
        %421 = vmatpush1.bf16.msra.mxu0 0
        %422 = vmatprep.subr.bf16.mxu0 0
        %423 = vmatpush1.bf16.msra.mxu0 0
        %424 = vmatprep.subr.bf16.mxu0 0
        %425 = vmatpush1.bf16.msra.mxu0 0
        %426 = vmatprep.subr.bf16.mxu0 0
        %427 = vmatpush1.bf16.msra.mxu0 0
        %428 = vmatprep.mubr.bf16.mxu0 0
        %429 = vmatmul.mubr.bf16.gmra.mrb[0].mxu0 %v385
        %v430 = vpop.f32.mrb[0].mxu0
        %v431 = vadd.f32 0.0, %v430
        %v432 = vpop.f32.mrb[0].mxu0
        %v433 = vadd.f32 0.0, %v432
        %v434 = vpop.f32.mrb[0].mxu0
        %v435 = vadd.f32 0.0, %v434
        %v436 = vpop.f32.mrb[0].mxu0
        %v437 = vadd.f32 0.0, %v436
        %438 = vmatprep.mubr.bf16.mxu0 0
        %439 = vmatmul.mubr.bf16.gmra.mrb[0].mxu0 %v388
        %v440 = vpop.f32.mrb[0].mxu0
        %v441 = vadd.f32 0.0, %v440
        %v442 = vpop.f32.mrb[0].mxu0
        %v443 = vadd.f32 0.0, %v442
        %v444 = vpop.f32.mrb[0].mxu0
        %v445 = vadd.f32 0.0, %v444
        %v446 = vpop.f32.mrb[0].mxu0
        %v447 = vadd.f32 0.0, %v446
        %448 = vmatprep.mubr.bf16.mxu0 0
        %449 = vmatmul.mubr.bf16.gmra.mrb[0].mxu0 %v391
        %v450 = vpop.f32.mrb[0].mxu0
        %v451 = vadd.f32 0.0, %v450
        %v452 = vpop.f32.mrb[0].mxu0
        %v453 = vadd.f32 0.0, %v452
        %v454 = vpop.f32.mrb[0].mxu0
        %v455 = vadd.f32 0.0, %v454
        %v456 = vpop.f32.mrb[0].mxu0
        %v457 = vadd.f32 0.0, %v456
        %458 = vmatprep.mubr.bf16.mxu0 0
        %459 = vmatmul.mubr.bf16.gmra.mrb[0].mxu0 %v394
        %v460 = vpop.f32.mrb[0].mxu0
        %v461 = vadd.f32 0.0, %v460
        %v462 = vpop.f32.mrb[0].mxu0
        %v463 = vadd.f32 0.0, %v462
        %v464 = vpop.f32.mrb[0].mxu0
        %v465 = vadd.f32 0.0, %v464
        %v466 = vpop.f32.mrb[0].mxu0
        %v467 = vadd.f32 0.0, %v466
        %468 = vdwg.mxu0
        %v469 = vadd.f32 %v315, %v431
        %v470 = vadd.f32 %v316, %v433
        %v471 = vadd.f32 %v317, %v435
        %v472 = vadd.f32 %v318, %v437
        %v473 = vadd.f32 %v319, %v441
        %v474 = vadd.f32 %v320, %v443
        %v475 = vadd.f32 %v321, %v445
        %v476 = vadd.f32 %v322, %v447
        %v477 = vadd.f32 %v323, %v451
        %v478 = vadd.f32 %v324, %v453
        %v479 = vadd.f32 %v325, %v455
        %v480 = vadd.f32 %v326, %v457
        %v481 = vadd.f32 %v327, %v461
        %v482 = vadd.f32 %v328, %v463
        %v483 = vadd.f32 %v329, %v465
        %v484 = vadd.f32 %v330, %v467
        %485 = vst [vmem:[%s275] sm:$0xff] %v469
        %486 = vst [vmem:[%s275 + $0x8] sm:$0xff] %v470
        %487 = vst [vmem:[%s275 + $0x10] sm:$0xff] %v471
        %488 = vst [vmem:[%s275 + $0x18] sm:$0xff] %v472
        %489 = vst [vmem:[%s275 + $0x20] sm:$0xff] %v473
        %490 = vst [vmem:[%s275 + $0x28] sm:$0xff] %v474
        %491 = vst [vmem:[%s275 + $0x30] sm:$0xff] %v475
        %492 = vst [vmem:[%s275 + $0x38] sm:$0xff] %v476
        %493 = vst [vmem:[%s275 + $0x40] sm:$0xff] %v477
        %494 = vst [vmem:[%s275 + $0x48] sm:$0xff] %v478
        %495 = vst [vmem:[%s275 + $0x50] sm:$0xff] %v479
        %496 = vst [vmem:[%s275 + $0x58] sm:$0xff] %v480
        %497 = vst [vmem:[%s275 + $0x60] sm:$0xff] %v481
        %498 = vst [vmem:[%s275 + $0x68] sm:$0xff] %v482
        %499 = vst [vmem:[%s275 + $0x70] sm:$0xff] %v483
        %500 = vst [vmem:[%s275 + $0x78] sm:$0xff] %v484
        // Predicated region
        $region75: #{music_transformer_forward.78} parent=65 // pred_check
          %p501 = pneg %p295
        $region76: #{music_transformer_forward.78} parent=65 // pred_check_branch
          %503 = sbr.rel (%p501) target = $region78
        $region77: #{music_transformer_forward.78} parent=65 // pred_region
          %v504 = vld [vmem:[%s275] sm:$0xff]
          %v505 = vld [vmem:[%s275 + $0x8] sm:$0xff]
          %v506 = vld [vmem:[%s275 + $0x10] sm:$0xff]
          %v507 = vld [vmem:[%s275 + $0x18] sm:$0xff]
          %v508 = vld [vmem:[%s275 + $0x20] sm:$0xff]
          %v509 = vld [vmem:[%s275 + $0x28] sm:$0xff]
          %v510 = vld [vmem:[%s275 + $0x30] sm:$0xff]
          %v511 = vld [vmem:[%s275 + $0x38] sm:$0xff]
          %v512 = vld [vmem:[%s275 + $0x40] sm:$0xff]
          %v513 = vld [vmem:[%s275 + $0x48] sm:$0xff]
          %v514 = vld [vmem:[%s275 + $0x50] sm:$0xff]
          %v515 = vld [vmem:[%s275 + $0x58] sm:$0xff]
          %v516 = vld [vmem:[%s275 + $0x60] sm:$0xff]
          %v517 = vld [vmem:[%s275 + $0x68] sm:$0xff]
          %v518 = vld [vmem:[%s275 + $0x70] sm:$0xff]
          %v519 = vld [vmem:[%s275 + $0x78] sm:$0xff]
          %v520 = vld [vmem:[%s290] sm:$0x3]
          %v522 = vlaneseq
          %v523 = vshrl.u32 %v522, 7
          %v524 = vsub.s32 0, %v523
          %v525 = vrot.slane %v520, %v524
          %v526 = vlaneseq
          %v527 = vshrl.u32 %v526, 7
          %v528 = vsub.s32 1, %v527
          %v529 = vrot.slane %v520, %v528
          %v532 = vadd.f32 %v504, %v525
          %v533 = vadd.f32 %v505, %v529
          %v534 = vadd.f32 %v506, %v525
          %v535 = vadd.f32 %v507, %v529
          %v536 = vadd.f32 %v508, %v525
          %v537 = vadd.f32 %v509, %v529
          %v538 = vadd.f32 %v510, %v525
          %v539 = vadd.f32 %v511, %v529
          %v540 = vadd.f32 %v512, %v525
          %v541 = vadd.f32 %v513, %v529
          %v542 = vadd.f32 %v514, %v525
          %v543 = vadd.f32 %v515, %v529
          %v544 = vadd.f32 %v516, %v525
          %v545 = vadd.f32 %v517, %v529
          %v546 = vadd.f32 %v518, %v525
          %v547 = vadd.f32 %v519, %v529
          %v548 = vmax.f32 %v532, 0.0
          %v549 = vmax.f32 %v533, 0.0
          %v550 = vmax.f32 %v534, 0.0
          %v551 = vmax.f32 %v535, 0.0
          %v552 = vmax.f32 %v536, 0.0
          %v553 = vmax.f32 %v537, 0.0
          %v554 = vmax.f32 %v538, 0.0
          %v555 = vmax.f32 %v539, 0.0
          %v556 = vmax.f32 %v540, 0.0
          %v557 = vmax.f32 %v541, 0.0
          %v558 = vmax.f32 %v542, 0.0
          %v559 = vmax.f32 %v543, 0.0
          %v560 = vmax.f32 %v544, 0.0
          %v561 = vmax.f32 %v545, 0.0
          %v562 = vmax.f32 %v546, 0.0
          %v563 = vmax.f32 %v547, 0.0
          %564 = vst [vmem:[%s275] sm:$0xff] %v548
          %565 = vst [vmem:[%s275 + $0x8] sm:$0xff] %v549
          %566 = vst [vmem:[%s275 + $0x10] sm:$0xff] %v550
          %567 = vst [vmem:[%s275 + $0x18] sm:$0xff] %v551
          %568 = vst [vmem:[%s275 + $0x20] sm:$0xff] %v552
          %569 = vst [vmem:[%s275 + $0x28] sm:$0xff] %v553
          %570 = vst [vmem:[%s275 + $0x30] sm:$0xff] %v554
          %571 = vst [vmem:[%s275 + $0x38] sm:$0xff] %v555
          %572 = vst [vmem:[%s275 + $0x40] sm:$0xff] %v556
          %573 = vst [vmem:[%s275 + $0x48] sm:$0xff] %v557
          %574 = vst [vmem:[%s275 + $0x50] sm:$0xff] %v558
          %575 = vst [vmem:[%s275 + $0x58] sm:$0xff] %v559
          %576 = vst [vmem:[%s275 + $0x60] sm:$0xff] %v560
          %577 = vst [vmem:[%s275 + $0x68] sm:$0xff] %v561
          %578 = vst [vmem:[%s275 + $0x70] sm:$0xff] %v562
          %579 = vst [vmem:[%s275 + $0x78] sm:$0xff] %v563
        $region78: #{music_transformer_forward.78} parent=65 // pred_fallthru
          _
        %s580 = sand.u32 %s125, 1
        %s581 = sand.u32 %s125, 1
        %s582 = smul.addr %s581, 128
        %s583 = scalar_lea.vmem [#allocation3], %s582
        // Predicated region
        $region79: #{music_transformer_forward.78} parent=65 // pred_check
          %p584 = pneg %p135
        $region80: #{music_transformer_forward.78} parent=65 // pred_check_branch
          %586 = sbr.rel (%p584) target = $region82
        $region81: #{music_transformer_forward.78} parent=65 // pred_region
          %s587 = smul.u32 8, %s19
          %s588 = smul.u32 2, %s20
          %s589 = smul.addr %s587, 16
          %s590 = sadd.s32 %s588, %s589
          %s591 = smul.addr %s590, 8
          %s592 = scalar_lea.vmem %s3, %s591
          // Predicated region
          $region83: #{music_transformer_forward.78} parent=81 // pred_check
            _
          $region84: #{music_transformer_forward.78} parent=81 // pred_check_branch
            %594 = sbr.rel (0) target = $region86
          $region85: #{music_transformer_forward.78} parent=81 // pred_region
            // Predicated region
            $region87: #{music_transformer_forward.78} parent=85 // pred_check
              _
            $region88: #{music_transformer_forward.78} parent=85 // pred_check_branch
              %596 = sbr.rel (0) target = $region90
            $region89: #{music_transformer_forward.78} parent=85 // pred_region
              loop: start=0, step=1, limit=1
              $region91: #{music_transformer_forward.78} parent=89 // loop_pre_header
                _
              $region92: #{music_transformer_forward.78} parent=89 // loop_header
                %s598 = sphi 0, %s602
                %p599 = scmp.ge.s32.totalorder %s598, 1
                %s603 = sphi %s583, %s583
                %s604 = sphi %s592, %s592
              $region93: #{music_transformer_forward.78} parent=89 // loop_header_branch
                %601 = sbr.rel (%p599) target = $region97
              $region94: #{music_transformer_forward.78} parent=89 // loop_body
                %v605 = vld [vmem:[%s603] sm:$0xff]
                %606 = vst [vmem:[%s604] sm:$0xff] %v605
                %v607 = vld [vmem:[%s603 + $0x8] sm:$0xff]
                %608 = vst [vmem:[%s604 + $0x8] sm:$0xff] %v607
                %v609 = vld [vmem:[%s603 + $0x10] sm:$0xff]
                %610 = vst [vmem:[%s604 + $0x80] sm:$0xff] %v609
                %v611 = vld [vmem:[%s603 + $0x18] sm:$0xff]
                %612 = vst [vmem:[%s604 + $0x88] sm:$0xff] %v611
                %v613 = vld [vmem:[%s603 + $0x20] sm:$0xff]
                %614 = vst [vmem:[%s604 + $0x100] sm:$0xff] %v613
                %v615 = vld [vmem:[%s603 + $0x28] sm:$0xff]
                %616 = vst [vmem:[%s604 + $0x108] sm:$0xff] %v615
                %v617 = vld [vmem:[%s603 + $0x30] sm:$0xff]
                %618 = vst [vmem:[%s604 + $0x180] sm:$0xff] %v617
                %v619 = vld [vmem:[%s603 + $0x38] sm:$0xff]
                %620 = vst [vmem:[%s604 + $0x188] sm:$0xff] %v619
                %v621 = vld [vmem:[%s603 + $0x40] sm:$0xff]
                %622 = vst [vmem:[%s604 + $0x200] sm:$0xff] %v621
                %v623 = vld [vmem:[%s603 + $0x48] sm:$0xff]
                %624 = vst [vmem:[%s604 + $0x208] sm:$0xff] %v623
                %v625 = vld [vmem:[%s603 + $0x50] sm:$0xff]
                %626 = vst [vmem:[%s604 + $0x280] sm:$0xff] %v625
                %v627 = vld [vmem:[%s603 + $0x58] sm:$0xff]
                %628 = vst [vmem:[%s604 + $0x288] sm:$0xff] %v627
                %v629 = vld [vmem:[%s603 + $0x60] sm:$0xff]
                %630 = vst [vmem:[%s604 + $0x300] sm:$0xff] %v629
                %v631 = vld [vmem:[%s603 + $0x68] sm:$0xff]
                %632 = vst [vmem:[%s604 + $0x308] sm:$0xff] %v631
                %v633 = vld [vmem:[%s603 + $0x70] sm:$0xff]
                %634 = vst [vmem:[%s604 + $0x380] sm:$0xff] %v633
                %v635 = vld [vmem:[%s603 + $0x78] sm:$0xff]
                %636 = vst [vmem:[%s604 + $0x388] sm:$0xff] %v635
              $region95: #{music_transformer_forward.78} parent=89 // loop_footer
                %s602 = sadd.s32 1, %s598
              $region96: #{music_transformer_forward.78} parent=89 // loop_footer_branch
                %597 = sbr.rel target = $region92
              $region97: #{music_transformer_forward.78} parent=89 // loop_exit
                _
            $region90: #{music_transformer_forward.78} parent=85 // pred_fallthru
              _
            // Predicated region
            $region98: #{music_transformer_forward.78} parent=85 // pred_check
              _
            $region99: #{music_transformer_forward.78} parent=85 // pred_check_branch
              %638 = sbr.rel target = $region101
            $region100: #{music_transformer_forward.78} parent=85 // pred_region
              _
            $region101: #{music_transformer_forward.78} parent=85 // pred_fallthru
              _
          $region86: #{music_transformer_forward.78} parent=81 // pred_fallthru
            _
          %639 = vnop
        $region82: #{music_transformer_forward.78} parent=65 // pred_fallthru
          _
      $region66: #{music_transformer_forward.78} parent=5 // pred_fallthru
        _
      %p640 = scmp.le.s32.totalorder 2, %s9
      // Predicated region
      $region102: #{music_transformer_forward.78} parent=5 // pred_check
        %p641 = pneg %p640
      $region103: #{music_transformer_forward.78} parent=5 // pred_check_branch
        %643 = sbr.rel (%p641) target = $region105
      $region104: #{music_transformer_forward.78} parent=5 // pred_region
        %s644 = ssub.s32 %s9, 2
        // Predicated region
        $region106: #{music_transformer_forward.78} parent=104 // pred_check
          %p645 = pneg %p141
        $region107: #{music_transformer_forward.78} parent=104 // pred_check_branch
          %647 = sbr.rel (%p645) target = $region109
        $region108: #{music_transformer_forward.78} parent=104 // pred_region
          %s648 = sand.u32 %s126, 1
          %s649 = sand.u32 %s126, 1
          %s650 = smul.addr %s649, 128
          %s651 = scalar_lea.vmem [#allocation3], %s650
        $region109: #{music_transformer_forward.78} parent=104 // pred_fallthru
          _
      $region105: #{music_transformer_forward.78} parent=5 // pred_fallthru
        _
    $region6: #{music_transformer_forward.78} parent=1 // loop_footer
      %s13 = sadd.s32 1, %s9
    $region7: #{music_transformer_forward.78} parent=1 // loop_footer_branch
      %8 = sbr.rel target = $region3
    $region8: #{music_transformer_forward.78} parent=1 // loop_exit
      _

// kernel: music_transformer_forward.76
$region0: #{music_transformer_forward.76}
  #allocation0 [shape = 'u32[]', space=smem, size = 0x4, offset = 0x4, fixed_abs, tag = 'smem constant byte address 0x4 - core index']
  #allocation1 [shape = 'u32[144,128]{1,0:T(1,128)}', space=vmem, size = 0x12000, scoped, tag = 'internal scratch']
  %s0 = inlined_call_operand.vmem [shape: bf16[8,8,32], index: 0, kind: input, shape index: {}]
  %s1 = inlined_call_operand.vmem [shape: bf16[8,8,32], index: 1, kind: input, shape index: {}]
  %s2 = inlined_call_operand.vmem [shape: bf16[8,8,32], index: 2, kind: input, shape index: {}]
  %s3 = inlined_call_operand.vmem [shape: bf16[32,32], index: 3, kind: input, shape index: {}]
  %s4 = inlined_call_operand.vmem [shape: f32[1,32], index: 4, kind: input, shape index: {}]
  %s5 = inlined_call_operand.vmem [shape: f32[8,8,32], index: 5, kind: output, shape index: {}]
  %s6 = sld [smem:[#allocation0]]
  $region53: #{music_transformer_forward.76} parent=0
    _
  %s8 = ssub.s32 1, %s6
  %s9 = scalar_select 0, %s8, %s6
  loop: start=0, step=1, limit=10
  $region2: #{music_transformer_forward.76} parent=0 // loop_pre_header
    _
  $region3: #{music_transformer_forward.76} parent=0 // loop_header
    %s11 = sphi 0, %s15
    %p12 = scmp.ge.s32.totalorder %s11, 10
    %s21 = sphi 0, %s23
    %s24 = sphi 0, %s21
    %s25 = sphi 0, %s24
    %s41 = sphi 0, %s25
    %s47 = sphi 0, %s49
    %s50 = sphi 0, %s47
    %s51 = sphi 0, %s50
    %s67 = sphi 0, %s51
    %s73 = sphi 0, %s75
    %s76 = sphi 0, %s73
    %s77 = sphi 0, %s76
    %s93 = sphi 0, %s77
    %s97 = sphi 0, %s97
    %s99 = sphi 0, %s97
    %s100 = sphi 0, %s99
    %s114 = sphi 0, %s100
    %s118 = sphi 0, %s118
    %s120 = sphi 0, %s118
    %s121 = sphi 0, %s120
    %s135 = sphi 0, %s121
    %s141 = sphi 0, %s143
    %s144 = sphi 0, %s141
    %s145 = sphi 0, %s144
    %s161 = sphi 0, %s145
  $region4: #{music_transformer_forward.76} parent=0 // loop_header_branch
    %14 = sbr.rel (%p12) target = $region8
  $region5: #{music_transformer_forward.76} parent=0 // loop_body
    %s16 = ssub.s32 %s11, 1
    %s17 = ssub.s32 %s11, 2
    %s18 = sadd.s32 %s11, 1
    %s19 = ssub.s32 %s11, %s18
    %p20 = scmp.eq.s32.totalorder %s19, 0
    %s22 = sadd.s32 %s21, 1
    %s23 = scalar_select %p20, %s21, %s22
    %p26 = pneg %p20
    %p27 = scmp.eq.s32.totalorder %s11, 7
    %p28 = por %p26, %p27
    %p29 = scmp.ne.s32.totalorder %s21, %s24
    %p30 = scmp.eq.s32.totalorder %s11, 0
    %p31 = por %p29, %p30
    %p32 = scmp.ne.s32.totalorder %s21, %s24
    %p33 = scmp.eq.s32.totalorder %s16, 7
    %p34 = por %p32, %p33
    %p35 = scmp.ne.s32.totalorder %s24, %s25
    %p36 = scmp.eq.s32.totalorder %s16, 0
    %p37 = por %p35, %p36
    %p38 = scmp.ne.s32.totalorder %s24, %s25
    %p39 = scmp.eq.s32.totalorder %s17, 7
    %p40 = por %p38, %p39
    %p42 = scmp.ne.s32.totalorder %s25, %s41
    %p43 = scmp.eq.s32.totalorder %s17, 0
    %p44 = por %p42, %p43
    %s45 = ssub.s32 %s11, %s18
    %p46 = scmp.eq.s32.totalorder %s45, 0
    %s48 = sadd.s32 %s47, 1
    %s49 = scalar_select %p46, %s47, %s48
    %p52 = pneg %p46
    %p53 = scmp.eq.s32.totalorder %s11, 7
    %p54 = por %p52, %p53
    %p55 = scmp.ne.s32.totalorder %s47, %s50
    %p56 = scmp.eq.s32.totalorder %s11, 0
    %p57 = por %p55, %p56
    %p58 = scmp.ne.s32.totalorder %s47, %s50
    %p59 = scmp.eq.s32.totalorder %s16, 7
    %p60 = por %p58, %p59
    %p61 = scmp.ne.s32.totalorder %s50, %s51
    %p62 = scmp.eq.s32.totalorder %s16, 0
    %p63 = por %p61, %p62
    %p64 = scmp.ne.s32.totalorder %s50, %s51
    %p65 = scmp.eq.s32.totalorder %s17, 7
    %p66 = por %p64, %p65
    %p68 = scmp.ne.s32.totalorder %s51, %s67
    %p69 = scmp.eq.s32.totalorder %s17, 0
    %p70 = por %p68, %p69
    %s71 = ssub.s32 %s11, %s18
    %p72 = scmp.eq.s32.totalorder %s71, 0
    %s74 = sadd.s32 %s73, 1
    %s75 = scalar_select %p72, %s73, %s74
    %p78 = pneg %p72
    %p79 = scmp.eq.s32.totalorder %s11, 7
    %p80 = por %p78, %p79
    %p81 = scmp.ne.s32.totalorder %s73, %s76
    %p82 = scmp.eq.s32.totalorder %s11, 0
    %p83 = por %p81, %p82
    %p84 = scmp.ne.s32.totalorder %s73, %s76
    %p85 = scmp.eq.s32.totalorder %s16, 7
    %p86 = por %p84, %p85
    %p87 = scmp.ne.s32.totalorder %s76, %s77
    %p88 = scmp.eq.s32.totalorder %s16, 0
    %p89 = por %p87, %p88
    %p90 = scmp.ne.s32.totalorder %s76, %s77
    %p91 = scmp.eq.s32.totalorder %s17, 7
    %p92 = por %p90, %p91
    %p94 = scmp.ne.s32.totalorder %s77, %s93
    %p95 = scmp.eq.s32.totalorder %s17, 0
    %p96 = por %p94, %p95
    %s98 = sadd.s32 %s97, 1
    %p101 = scmp.eq.s32.totalorder %s11, 7
    %p102 = scmp.ne.s32.totalorder %s97, %s99
    %p103 = scmp.eq.s32.totalorder %s11, 0
    %p104 = por %p102, %p103
    %p105 = scmp.ne.s32.totalorder %s97, %s99
    %p106 = scmp.eq.s32.totalorder %s16, 7
    %p107 = por %p105, %p106
    %p108 = scmp.ne.s32.totalorder %s99, %s100
    %p109 = scmp.eq.s32.totalorder %s16, 0
    %p110 = por %p108, %p109
    %p111 = scmp.ne.s32.totalorder %s99, %s100
    %p112 = scmp.eq.s32.totalorder %s17, 7
    %p113 = por %p111, %p112
    %p115 = scmp.ne.s32.totalorder %s100, %s114
    %p116 = scmp.eq.s32.totalorder %s17, 0
    %p117 = por %p115, %p116
    %s119 = sadd.s32 %s118, 1
    %p122 = scmp.eq.s32.totalorder %s11, 7
    %p123 = scmp.ne.s32.totalorder %s118, %s120
    %p124 = scmp.eq.s32.totalorder %s11, 0
    %p125 = por %p123, %p124
    %p126 = scmp.ne.s32.totalorder %s118, %s120
    %p127 = scmp.eq.s32.totalorder %s16, 7
    %p128 = por %p126, %p127
    %p129 = scmp.ne.s32.totalorder %s120, %s121
    %p130 = scmp.eq.s32.totalorder %s16, 0
    %p131 = por %p129, %p130
    %p132 = scmp.ne.s32.totalorder %s120, %s121
    %p133 = scmp.eq.s32.totalorder %s17, 7
    %p134 = por %p132, %p133
    %p136 = scmp.ne.s32.totalorder %s121, %s135
    %p137 = scmp.eq.s32.totalorder %s17, 0
    %p138 = por %p136, %p137
    %s139 = ssub.s32 %s11, %s18
    %p140 = scmp.eq.s32.totalorder %s139, 0
    %s142 = sadd.s32 %s141, 1
    %s143 = scalar_select %p140, %s141, %s142
    %p146 = pneg %p140
    %p147 = scmp.eq.s32.totalorder %s11, 7
    %p148 = por %p146, %p147
    %p149 = scmp.ne.s32.totalorder %s141, %s144
    %p150 = scmp.eq.s32.totalorder %s11, 0
    %p151 = por %p149, %p150
    %p152 = scmp.ne.s32.totalorder %s141, %s144
    %p153 = scmp.eq.s32.totalorder %s16, 7
    %p154 = por %p152, %p153
    %p155 = scmp.ne.s32.totalorder %s144, %s145
    %p156 = scmp.eq.s32.totalorder %s16, 0
    %p157 = por %p155, %p156
    %p158 = scmp.ne.s32.totalorder %s144, %s145
    %p159 = scmp.eq.s32.totalorder %s17, 7
    %p160 = por %p158, %p159
    %p162 = scmp.ne.s32.totalorder %s145, %s161
    %p163 = scmp.eq.s32.totalorder %s17, 0
    %p164 = por %p162, %p163
    %p165 = scmp.le.s32.totalorder 1, %s11
    %p166 = scmp.lt.s32.totalorder %s11, 9
    %p167 = pnand %p165, %p166
    %p168 = pneg %p167
    // Predicated region
    $region9: #{music_transformer_forward.76} parent=5 // pred_check
      _
    $region10: #{music_transformer_forward.76} parent=5 // pred_check_branch
      %170 = sbr.rel (%p167) target = $region12
    $region11: #{music_transformer_forward.76} parent=5 // pred_region
      %s171 = ssub.s32 %s11, 1
      // Predicated region
      $region13: #{music_transformer_forward.76} parent=11 // pred_check
        %p172 = pneg %p110
      $region14: #{music_transformer_forward.76} parent=11 // pred_check_branch
        %174 = sbr.rel (%p172) target = $region16
      $region15: #{music_transformer_forward.76} parent=11 // pred_region
        _
      $region16: #{music_transformer_forward.76} parent=11 // pred_fallthru
        _
      // Predicated region
      $region17: #{music_transformer_forward.76} parent=11 // pred_check
        %p175 = pneg %p131
      $region18: #{music_transformer_forward.76} parent=11 // pred_check_branch
        %177 = sbr.rel (%p175) target = $region20
      $region19: #{music_transformer_forward.76} parent=11 // pred_region
        _
      $region20: #{music_transformer_forward.76} parent=11 // pred_fallthru
        _
    $region12: #{music_transformer_forward.76} parent=5 // pred_fallthru
      _
    %p178 = scmp.lt.s32.totalorder %s11, 8
    // Predicated region
    $region21: #{music_transformer_forward.76} parent=5 // pred_check
      %p179 = pneg %p178
    $region22: #{music_transformer_forward.76} parent=5 // pred_check_branch
      %181 = sbr.rel (%p179) target = $region24
    $region23: #{music_transformer_forward.76} parent=5 // pred_region
      // Predicated region
      $region25: #{music_transformer_forward.76} parent=23 // pred_check
        %p182 = pneg %p31
      $region26: #{music_transformer_forward.76} parent=23 // pred_check_branch
        %184 = sbr.rel (%p182) target = $region28
      $region27: #{music_transformer_forward.76} parent=23 // pred_region
        %p185 = scmp.lt.s32.totalorder %s11, 7
        %s186 = scalar_select %p185, %s11, 7
        %s187 = smul.addr %s186, 4
        %s188 = scalar_lea.vmem %s0, %s187
      $region28: #{music_transformer_forward.76} parent=23 // pred_fallthru
        _
      // Predicated region
      $region29: #{music_transformer_forward.76} parent=23 // pred_check
        %p189 = pneg %p57
      $region30: #{music_transformer_forward.76} parent=23 // pred_check_branch
        %191 = sbr.rel (%p189) target = $region32
      $region31: #{music_transformer_forward.76} parent=23 // pred_region
        %p192 = scmp.lt.s32.totalorder %s11, 7
        %s193 = scalar_select %p192, %s11, 7
        %s194 = smul.addr %s193, 4
        %s195 = scalar_lea.vmem %s1, %s194
      $region32: #{music_transformer_forward.76} parent=23 // pred_fallthru
        _
      // Predicated region
      $region33: #{music_transformer_forward.76} parent=23 // pred_check
        %p196 = pneg %p83
      $region34: #{music_transformer_forward.76} parent=23 // pred_check_branch
        %198 = sbr.rel (%p196) target = $region36
      $region35: #{music_transformer_forward.76} parent=23 // pred_region
        %p199 = scmp.lt.s32.totalorder %s11, 7
        %s200 = scalar_select %p199, %s11, 7
        %s201 = smul.addr %s200, 4
        %s202 = scalar_lea.vmem %s2, %s201
      $region36: #{music_transformer_forward.76} parent=23 // pred_fallthru
        _
    $region24: #{music_transformer_forward.76} parent=5 // pred_fallthru
      _
    %p203 = scmp.le.s32.totalorder 1, %s11
    %p204 = scmp.lt.s32.totalorder %s11, 9
    %p205 = pnand %p203, %p204
    %p206 = pneg %p205
    // Predicated region
    $region37: #{music_transformer_forward.76} parent=5 // pred_check
      _
    $region38: #{music_transformer_forward.76} parent=5 // pred_check_branch
      %208 = sbr.rel (%p205) target = $region40
    $region39: #{music_transformer_forward.76} parent=5 // pred_region
      %s209 = ssub.s32 %s11, 1
      %p210 = scmp.lt.s32.totalorder %s16, 7
      %s211 = scalar_select %p210, %s16, 7
      %s212 = smul.addr %s211, 4
      %s213 = scalar_lea.vmem %s0, %s212
      %p214 = pneg %p37
      %p215 = pneg %p34
      %p216 = scmp.lt.s32.totalorder %s16, 7
      %s217 = scalar_select %p216, %s16, 7
      %s218 = smul.addr %s217, 4
      %s219 = scalar_lea.vmem %s1, %s218
      %p220 = pneg %p63
      %p221 = pneg %p60
      %p222 = scmp.lt.s32.totalorder %s16, 7
      %s223 = scalar_select %p222, %s16, 7
      %s224 = smul.addr %s223, 4
      %s225 = scalar_lea.vmem %s2, %s224
      %p226 = pneg %p89
      %p227 = pneg %p86
      %p228 = pneg %p110
      %p229 = pneg %p107
      %p230 = pneg %p131
      %p231 = pneg %p128
      %p232 = pneg %p157
      %p233 = pneg %p154
      %p234 = scmp.lt.s32.totalorder %s16, 7
      %s235 = scalar_select %p234, %s16, 7
      %s236 = smul.addr %s235, 8
      %s237 = scalar_lea.vmem %s5, %s236
      %p238 = scmp.lt.s32.totalorder %s16, 7
      %s239 = scalar_select %p238, %s16, 7
      %s240 = smul.addr %s239, 4
      %s241 = scalar_lea.vmem %s0, %s240
      %p242 = scmp.lt.s32.totalorder %s16, 7
      %s243 = scalar_select %p242, %s16, 7
      %s244 = smul.addr %s243, 4
      %s245 = scalar_lea.vmem %s1, %s244
      %p246 = scmp.lt.s32.totalorder %s16, 7
      %s247 = scalar_select %p246, %s16, 7
      %s248 = smul.addr %s247, 4
      %s249 = scalar_lea.vmem %s2, %s248
      %p250 = scmp.lt.s32.totalorder %s16, 7
      %s251 = scalar_select %p250, %s16, 7
      %s252 = smul.addr %s251, 8
      %s253 = scalar_lea.vmem %s5, %s252
      %v255 = vld [vmem:[%s241] sm:$0xf]
      %v256 = vld [vmem:[%s245] sm:$0xf]
      %v257 = vld [vmem:[%s249] sm:$0xf]
      %vm258 = vcmask 64512
      %v260 = vsel %vm258, %v255, 0
      %v263 = vsel %vm258, %v256, 0
      %265 = vmatprep.subr.bf16.mxu0 0
      %266 = vmatpush1.bf16.xpose.msra.mxu0 %v263
      %267 = vmatprep.subr.bf16.mxu0 0
      %268 = vmatpush1.bf16.xpose.msra.mxu0 0
      %269 = vmatprep.subr.bf16.mxu0 0
      %270 = vmatpush1.bf16.xpose.msra.mxu0 0
      %271 = vmatprep.subr.bf16.mxu0 0
      %272 = vmatpush1.bf16.xpose.msra.mxu0 0
      %273 = vmatprep.subr.bf16.mxu0 0
      %274 = vmatpush1.bf16.xpose.msra.mxu0 0
      %275 = vmatprep.subr.bf16.mxu0 0
      %276 = vmatpush1.bf16.xpose.msra.mxu0 0
      %277 = vmatprep.subr.bf16.mxu0 0
      %278 = vmatpush1.bf16.xpose.msra.mxu0 0
      %279 = vmatprep.subr.bf16.mxu0 0
      %280 = vmatpush1.bf16.xpose.msra.mxu0 0
      %281 = vmatprep.subr.bf16.mxu0 0
      %282 = vmatpush1.bf16.xpose.msra.mxu0 0
      %283 = vmatprep.subr.bf16.mxu0 0
      %284 = vmatpush1.bf16.xpose.msra.mxu0 0
      %285 = vmatprep.subr.bf16.mxu0 0
      %286 = vmatpush1.bf16.xpose.msra.mxu0 0
      %287 = vmatprep.subr.bf16.mxu0 0
      %288 = vmatpush1.bf16.xpose.msra.mxu0 0
      %289 = vmatprep.subr.bf16.mxu0 0
      %290 = vmatpush1.bf16.xpose.msra.mxu0 0
      %291 = vmatprep.subr.bf16.mxu0 0
      %292 = vmatpush1.bf16.xpose.msra.mxu0 0
      %293 = vmatprep.subr.bf16.mxu0 0
      %294 = vmatpush1.bf16.xpose.msra.mxu0 0
      %295 = vmatprep.subr.bf16.mxu0 0
      %296 = vmatpush1.bf16.xpose.msra.mxu0 0
      %297 = vmatprep.mubr.bf16.mxu0 0
      %298 = vmatmul.mubr.bf16.gmra.mrb[0].mxu0 %v260
      %v299 = vpop.f32.mrb[0].mxu0
      %v300 = vadd.f32 0.0, %v299
      %v301 = vpop.f32.mrb[0].mxu0
      %v302 = vpop.f32.mrb[0].mxu0
      %v303 = vpop.f32.mrb[0].mxu0
      %304 = vdwg.mxu0
      %v305 = vmul.f32 %v300, 0.35355338
      %v306 = vsel %vm258, %v305, -inf
      %307 = vmax.xlane.f32.xlu0 %v306
      %v308 = vpop.xlane.xlu0 %307
      %v309 = vsub.f32 %v305, %v308
      %v310 = vmul.f32 %v309, 1.442695
      %v311 = vpow.pop %v310
      %v312 = vsel %vm258, %v311, 0.0
      %313 = vadd.xlane.f32.xlu0 %v312
      %v314 = vpop.xlane.xlu0 %313
      %v315 = vrcp.pop %v314
      %v316 = vmul.f32 %v311, %v315
      %v317 = vpack.c.bf16 %v316, %v316
      %v319 = vsel %vm258, %v317, 0
      %vm321 = vcmask 1043456
      %v323 = vsel %vm321, %v257, 0
      %325 = vmatprep.subr.bf16.mxu0 0
      %326 = vmatpush1.bf16.msra.mxu0 %v323
      %327 = vmatprep.subr.bf16.mxu0 0
      %328 = vmatpush1.bf16.msra.mxu0 0
      %329 = vmatprep.subr.bf16.mxu0 0
      %330 = vmatpush1.bf16.msra.mxu0 0
      %331 = vmatprep.subr.bf16.mxu0 0
      %332 = vmatpush1.bf16.msra.mxu0 0
      %333 = vmatprep.subr.bf16.mxu0 0
      %334 = vmatpush1.bf16.msra.mxu0 0
      %335 = vmatprep.subr.bf16.mxu0 0
      %336 = vmatpush1.bf16.msra.mxu0 0
      %337 = vmatprep.subr.bf16.mxu0 0
      %338 = vmatpush1.bf16.msra.mxu0 0
      %339 = vmatprep.subr.bf16.mxu0 0
      %340 = vmatpush1.bf16.msra.mxu0 0
      %341 = vmatprep.subr.bf16.mxu0 0
      %342 = vmatpush1.bf16.msra.mxu0 0
      %343 = vmatprep.subr.bf16.mxu0 0
      %344 = vmatpush1.bf16.msra.mxu0 0
      %345 = vmatprep.subr.bf16.mxu0 0
      %346 = vmatpush1.bf16.msra.mxu0 0
      %347 = vmatprep.subr.bf16.mxu0 0
      %348 = vmatpush1.bf16.msra.mxu0 0
      %349 = vmatprep.subr.bf16.mxu0 0
      %350 = vmatpush1.bf16.msra.mxu0 0
      %351 = vmatprep.subr.bf16.mxu0 0
      %352 = vmatpush1.bf16.msra.mxu0 0
      %353 = vmatprep.subr.bf16.mxu0 0
      %354 = vmatpush1.bf16.msra.mxu0 0
      %355 = vmatprep.subr.bf16.mxu0 0
      %356 = vmatpush1.bf16.msra.mxu0 0
      %357 = vmatprep.mubr.bf16.mxu0 0
      %358 = vmatmul.mubr.bf16.gmra.mrb[0].mxu0 %v319
      %v359 = vpop.f32.mrb[0].mxu0
      %v360 = vadd.f32 0.0, %v359
      %v361 = vpop.f32.mrb[0].mxu0
      %v362 = vpop.f32.mrb[0].mxu0
      %v363 = vpop.f32.mrb[0].mxu0
      %364 = vdwg.mxu0
      %v366 = vunpack.c.l.b16 %v255
      %v367 = vpack.c.b16 %v366, %v366
      %368 = vrot.lane.b32.xlu0 %v367, 120
      %v369 = vpop.permute.xlu0 %368
      %v371 = vunpack.c.l.b16 %v256
      %v372 = vpack.c.b16 %v371, %v371
      %373 = vrot.lane.b32.xlu0 %v372, 120
      %v374 = vpop.permute.xlu0 %373
      %v376 = vsel %vm258, %v369, 0
      %v379 = vsel %vm258, %v374, 0
      %381 = vmatprep.subr.bf16.mxu0 0
      %382 = vmatpush1.bf16.xpose.msra.mxu0 %v379
      %383 = vmatprep.subr.bf16.mxu0 0
      %384 = vmatpush1.bf16.xpose.msra.mxu0 0
      %385 = vmatprep.subr.bf16.mxu0 0
      %386 = vmatpush1.bf16.xpose.msra.mxu0 0
      %387 = vmatprep.subr.bf16.mxu0 0
      %388 = vmatpush1.bf16.xpose.msra.mxu0 0
      %389 = vmatprep.subr.bf16.mxu0 0
      %390 = vmatpush1.bf16.xpose.msra.mxu0 0
      %391 = vmatprep.subr.bf16.mxu0 0
      %392 = vmatpush1.bf16.xpose.msra.mxu0 0
      %393 = vmatprep.subr.bf16.mxu0 0
      %394 = vmatpush1.bf16.xpose.msra.mxu0 0
      %395 = vmatprep.subr.bf16.mxu0 0
      %396 = vmatpush1.bf16.xpose.msra.mxu0 0
      %397 = vmatprep.subr.bf16.mxu0 0
      %398 = vmatpush1.bf16.xpose.msra.mxu0 0
      %399 = vmatprep.subr.bf16.mxu0 0
      %400 = vmatpush1.bf16.xpose.msra.mxu0 0
      %401 = vmatprep.subr.bf16.mxu0 0
      %402 = vmatpush1.bf16.xpose.msra.mxu0 0
      %403 = vmatprep.subr.bf16.mxu0 0
      %404 = vmatpush1.bf16.xpose.msra.mxu0 0
      %405 = vmatprep.subr.bf16.mxu0 0
      %406 = vmatpush1.bf16.xpose.msra.mxu0 0
      %407 = vmatprep.subr.bf16.mxu0 0
      %408 = vmatpush1.bf16.xpose.msra.mxu0 0
      %409 = vmatprep.subr.bf16.mxu0 0
      %410 = vmatpush1.bf16.xpose.msra.mxu0 0
      %411 = vmatprep.subr.bf16.mxu0 0
      %412 = vmatpush1.bf16.xpose.msra.mxu0 0
      %413 = vmatprep.mubr.bf16.mxu0 0
      %414 = vmatmul.mubr.bf16.gmra.mrb[0].mxu0 %v376
      %v415 = vpop.f32.mrb[0].mxu0
      %v416 = vadd.f32 0.0, %v415
      %v417 = vpop.f32.mrb[0].mxu0
      %v418 = vpop.f32.mrb[0].mxu0
      %v419 = vpop.f32.mrb[0].mxu0
      %420 = vdwg.mxu0
      %v421 = vmul.f32 %v416, 0.35355338
      %v422 = vsel %vm258, %v421, -inf
      %423 = vmax.xlane.f32.xlu0 %v422
      %v424 = vpop.xlane.xlu0 %423
      %v425 = vsub.f32 %v421, %v424
      %v426 = vmul.f32 %v425, 1.442695
      %v427 = vpow.pop %v426
      %v428 = vsel %vm258, %v427, 0.0
      %429 = vadd.xlane.f32.xlu0 %v428
      %v430 = vpop.xlane.xlu0 %429
      %v431 = vrcp.pop %v430
      %v432 = vmul.f32 %v427, %v431
      %v433 = vpack.c.bf16 %v432, %v432
      %v435 = vunpack.c.l.b16 %v257
      %v436 = vpack.c.b16 %v435, %v435
      %437 = vrot.lane.b32.xlu0 %v436, 120
      %v438 = vpop.permute.xlu0 %437
      %v440 = vsel %vm258, %v433, 0
      %v443 = vsel %vm321, %v438, 0
      %445 = vmatprep.subr.bf16.mxu0 0
      %446 = vmatpush1.bf16.msra.mxu0 %v443
      %447 = vmatprep.subr.bf16.mxu0 0
      %448 = vmatpush1.bf16.msra.mxu0 0
      %449 = vmatprep.subr.bf16.mxu0 0
      %450 = vmatpush1.bf16.msra.mxu0 0
      %451 = vmatprep.subr.bf16.mxu0 0
      %452 = vmatpush1.bf16.msra.mxu0 0
      %453 = vmatprep.subr.bf16.mxu0 0
      %454 = vmatpush1.bf16.msra.mxu0 0
      %455 = vmatprep.subr.bf16.mxu0 0
      %456 = vmatpush1.bf16.msra.mxu0 0
      %457 = vmatprep.subr.bf16.mxu0 0
      %458 = vmatpush1.bf16.msra.mxu0 0
      %459 = vmatprep.subr.bf16.mxu0 0
      %460 = vmatpush1.bf16.msra.mxu0 0
      %461 = vmatprep.subr.bf16.mxu0 0
      %462 = vmatpush1.bf16.msra.mxu0 0
      %463 = vmatprep.subr.bf16.mxu0 0
      %464 = vmatpush1.bf16.msra.mxu0 0
      %465 = vmatprep.subr.bf16.mxu0 0
      %466 = vmatpush1.bf16.msra.mxu0 0
      %467 = vmatprep.subr.bf16.mxu0 0
      %468 = vmatpush1.bf16.msra.mxu0 0
      %469 = vmatprep.subr.bf16.mxu0 0
      %470 = vmatpush1.bf16.msra.mxu0 0
      %471 = vmatprep.subr.bf16.mxu0 0
      %472 = vmatpush1.bf16.msra.mxu0 0
      %473 = vmatprep.subr.bf16.mxu0 0
      %474 = vmatpush1.bf16.msra.mxu0 0
      %475 = vmatprep.subr.bf16.mxu0 0
      %476 = vmatpush1.bf16.msra.mxu0 0
      %477 = vmatprep.mubr.bf16.mxu0 0
      %478 = vmatmul.mubr.bf16.gmra.mrb[0].mxu0 %v440
      %v479 = vpop.f32.mrb[0].mxu0
      %v480 = vadd.f32 0.0, %v479
      %v481 = vpop.f32.mrb[0].mxu0
      %v482 = vpop.f32.mrb[0].mxu0
      %v483 = vpop.f32.mrb[0].mxu0
      %484 = vdwg.mxu0
      %485 = vrot.lane.b32.xlu0 %v367, 112
      %v486 = vpop.permute.xlu0 %485
      %487 = vrot.lane.b32.xlu0 %v372, 112
      %v488 = vpop.permute.xlu0 %487
      %v490 = vsel %vm258, %v486, 0
      %v493 = vsel %vm258, %v488, 0
      %495 = vmatprep.subr.bf16.mxu0 0
      %496 = vmatpush1.bf16.xpose.msra.mxu0 %v493
      %497 = vmatprep.subr.bf16.mxu0 0
      %498 = vmatpush1.bf16.xpose.msra.mxu0 0
      %499 = vmatprep.subr.bf16.mxu0 0
      %500 = vmatpush1.bf16.xpose.msra.mxu0 0
      %501 = vmatprep.subr.bf16.mxu0 0
      %502 = vmatpush1.bf16.xpose.msra.mxu0 0
      %503 = vmatprep.subr.bf16.mxu0 0
      %504 = vmatpush1.bf16.xpose.msra.mxu0 0
      %505 = vmatprep.subr.bf16.mxu0 0
      %506 = vmatpush1.bf16.xpose.msra.mxu0 0
      %507 = vmatprep.subr.bf16.mxu0 0
      %508 = vmatpush1.bf16.xpose.msra.mxu0 0
      %509 = vmatprep.subr.bf16.mxu0 0
      %510 = vmatpush1.bf16.xpose.msra.mxu0 0
      %511 = vmatprep.subr.bf16.mxu0 0
      %512 = vmatpush1.bf16.xpose.msra.mxu0 0
      %513 = vmatprep.subr.bf16.mxu0 0
      %514 = vmatpush1.bf16.xpose.msra.mxu0 0
      %515 = vmatprep.subr.bf16.mxu0 0
      %516 = vmatpush1.bf16.xpose.msra.mxu0 0
      %517 = vmatprep.subr.bf16.mxu0 0
      %518 = vmatpush1.bf16.xpose.msra.mxu0 0
      %519 = vmatprep.subr.bf16.mxu0 0
      %520 = vmatpush1.bf16.xpose.msra.mxu0 0
      %521 = vmatprep.subr.bf16.mxu0 0
      %522 = vmatpush1.bf16.xpose.msra.mxu0 0
      %523 = vmatprep.subr.bf16.mxu0 0
      %524 = vmatpush1.bf16.xpose.msra.mxu0 0
      %525 = vmatprep.subr.bf16.mxu0 0
      %526 = vmatpush1.bf16.xpose.msra.mxu0 0
      %527 = vmatprep.mubr.bf16.mxu0 0
      %528 = vmatmul.mubr.bf16.gmra.mrb[0].mxu0 %v490
      %v529 = vpop.f32.mrb[0].mxu0
      %v530 = vadd.f32 0.0, %v529
      %v531 = vpop.f32.mrb[0].mxu0
      %v532 = vpop.f32.mrb[0].mxu0
      %v533 = vpop.f32.mrb[0].mxu0
      %534 = vdwg.mxu0
      %v535 = vmul.f32 %v530, 0.35355338
      %v536 = vsel %vm258, %v535, -inf
      %537 = vmax.xlane.f32.xlu0 %v536
      %v538 = vpop.xlane.xlu0 %537
      %v539 = vsub.f32 %v535, %v538
      %v540 = vmul.f32 %v539, 1.442695
      %v541 = vpow.pop %v540
      %v542 = vsel %vm258, %v541, 0.0
      %543 = vadd.xlane.f32.xlu0 %v542
      %v544 = vpop.xlane.xlu0 %543
      %v545 = vrcp.pop %v544
      %v546 = vmul.f32 %v541, %v545
      %v547 = vpack.c.bf16 %v546, %v546
      %548 = vrot.lane.b32.xlu0 %v436, 112
      %v549 = vpop.permute.xlu0 %548
      %v551 = vsel %vm258, %v547, 0
      %v554 = vsel %vm321, %v549, 0
      %556 = vmatprep.subr.bf16.mxu0 0
      %557 = vmatpush1.bf16.msra.mxu0 %v554
      %558 = vmatprep.subr.bf16.mxu0 0
      %559 = vmatpush1.bf16.msra.mxu0 0
      %560 = vmatprep.subr.bf16.mxu0 0
      %561 = vmatpush1.bf16.msra.mxu0 0
      %562 = vmatprep.subr.bf16.mxu0 0
      %563 = vmatpush1.bf16.msra.mxu0 0
      %564 = vmatprep.subr.bf16.mxu0 0
      %565 = vmatpush1.bf16.msra.mxu0 0
      %566 = vmatprep.subr.bf16.mxu0 0
      %567 = vmatpush1.bf16.msra.mxu0 0
      %568 = vmatprep.subr.bf16.mxu0 0
      %569 = vmatpush1.bf16.msra.mxu0 0
      %570 = vmatprep.subr.bf16.mxu0 0
      %571 = vmatpush1.bf16.msra.mxu0 0
      %572 = vmatprep.subr.bf16.mxu0 0
      %573 = vmatpush1.bf16.msra.mxu0 0
      %574 = vmatprep.subr.bf16.mxu0 0
      %575 = vmatpush1.bf16.msra.mxu0 0
      %576 = vmatprep.subr.bf16.mxu0 0
      %577 = vmatpush1.bf16.msra.mxu0 0
      %578 = vmatprep.subr.bf16.mxu0 0
      %579 = vmatpush1.bf16.msra.mxu0 0
      %580 = vmatprep.subr.bf16.mxu0 0
      %581 = vmatpush1.bf16.msra.mxu0 0
      %582 = vmatprep.subr.bf16.mxu0 0
      %583 = vmatpush1.bf16.msra.mxu0 0
      %584 = vmatprep.subr.bf16.mxu0 0
      %585 = vmatpush1.bf16.msra.mxu0 0
      %586 = vmatprep.subr.bf16.mxu0 0
      %587 = vmatpush1.bf16.msra.mxu0 0
      %588 = vmatprep.mubr.bf16.mxu0 0
      %589 = vmatmul.mubr.bf16.gmra.mrb[0].mxu0 %v551
      %v590 = vpop.f32.mrb[0].mxu0
      %v591 = vadd.f32 0.0, %v590
      %v592 = vpop.f32.mrb[0].mxu0
      %v593 = vpop.f32.mrb[0].mxu0
      %v594 = vpop.f32.mrb[0].mxu0
      %595 = vdwg.mxu0
      %596 = vrot.lane.b32.xlu0 %v367, 104
      %v597 = vpop.permute.xlu0 %596
      %598 = vrot.lane.b32.xlu0 %v372, 104
      %v599 = vpop.permute.xlu0 %598
      %v601 = vsel %vm258, %v597, 0
      %v604 = vsel %vm258, %v599, 0
      %606 = vmatprep.subr.bf16.mxu0 0
      %607 = vmatpush1.bf16.xpose.msra.mxu0 %v604
      %608 = vmatprep.subr.bf16.mxu0 0
      %609 = vmatpush1.bf16.xpose.msra.mxu0 0
      %610 = vmatprep.subr.bf16.mxu0 0
      %611 = vmatpush1.bf16.xpose.msra.mxu0 0
      %612 = vmatprep.subr.bf16.mxu0 0
      %613 = vmatpush1.bf16.xpose.msra.mxu0 0
      %614 = vmatprep.subr.bf16.mxu0 0
      %615 = vmatpush1.bf16.xpose.msra.mxu0 0
      %616 = vmatprep.subr.bf16.mxu0 0
      %617 = vmatpush1.bf16.xpose.msra.mxu0 0
      %618 = vmatprep.subr.bf16.mxu0 0
      %619 = vmatpush1.bf16.xpose.msra.mxu0 0
      %620 = vmatprep.subr.bf16.mxu0 0
      %621 = vmatpush1.bf16.xpose.msra.mxu0 0
      %622 = vmatprep.subr.bf16.mxu0 0
      %623 = vmatpush1.bf16.xpose.msra.mxu0 0
      %624 = vmatprep.subr.bf16.mxu0 0
      %625 = vmatpush1.bf16.xpose.msra.mxu0 0
      %626 = vmatprep.subr.bf16.mxu0 0
      %627 = vmatpush1.bf16.xpose.msra.mxu0 0
      %628 = vmatprep.subr.bf16.mxu0 0
      %629 = vmatpush1.bf16.xpose.msra.mxu0 0
      %630 = vmatprep.subr.bf16.mxu0 0
      %631 = vmatpush1.bf16.xpose.msra.mxu0 0
      %632 = vmatprep.subr.bf16.mxu0 0
      %633 = vmatpush1.bf16.xpose.msra.mxu0 0
      %634 = vmatprep.subr.bf16.mxu0 0
      %635 = vmatpush1.bf16.xpose.msra.mxu0 0
      %636 = vmatprep.subr.bf16.mxu0 0
      %637 = vmatpush1.bf16.xpose.msra.mxu0 0
      %638 = vmatprep.mubr.bf16.mxu0 0
      %639 = vmatmul.mubr.bf16.gmra.mrb[0].mxu0 %v601
      %v640 = vpop.f32.mrb[0].mxu0
      %v641 = vadd.f32 0.0, %v640
      %v642 = vpop.f32.mrb[0].mxu0
      %v643 = vpop.f32.mrb[0].mxu0
      %v644 = vpop.f32.mrb[0].mxu0
      %645 = vdwg.mxu0
      %v646 = vmul.f32 %v641, 0.35355338
      %v647 = vsel %vm258, %v646, -inf
      %648 = vmax.xlane.f32.xlu0 %v647
      %v649 = vpop.xlane.xlu0 %648
      %v650 = vsub.f32 %v646, %v649
      %v651 = vmul.f32 %v650, 1.442695
      %v652 = vpow.pop %v651
      %v653 = vsel %vm258, %v652, 0.0
      %654 = vadd.xlane.f32.xlu0 %v653
      %v655 = vpop.xlane.xlu0 %654
      %v656 = vrcp.pop %v655
      %v657 = vmul.f32 %v652, %v656
      %v658 = vpack.c.bf16 %v657, %v657
      %659 = vrot.lane.b32.xlu0 %v436, 104
      %v660 = vpop.permute.xlu0 %659
      %v662 = vsel %vm258, %v658, 0
      %v665 = vsel %vm321, %v660, 0
      %667 = vmatprep.subr.bf16.mxu0 0
      %668 = vmatpush1.bf16.msra.mxu0 %v665
      %669 = vmatprep.subr.bf16.mxu0 0
      %670 = vmatpush1.bf16.msra.mxu0 0
      %671 = vmatprep.subr.bf16.mxu0 0
      %672 = vmatpush1.bf16.msra.mxu0 0
      %673 = vmatprep.subr.bf16.mxu0 0
      %674 = vmatpush1.bf16.msra.mxu0 0
      %675 = vmatprep.subr.bf16.mxu0 0
      %676 = vmatpush1.bf16.msra.mxu0 0
      %677 = vmatprep.subr.bf16.mxu0 0
      %678 = vmatpush1.bf16.msra.mxu0 0
      %679 = vmatprep.subr.bf16.mxu0 0
      %680 = vmatpush1.bf16.msra.mxu0 0
      %681 = vmatprep.subr.bf16.mxu0 0
      %682 = vmatpush1.bf16.msra.mxu0 0
      %683 = vmatprep.subr.bf16.mxu0 0
      %684 = vmatpush1.bf16.msra.mxu0 0
      %685 = vmatprep.subr.bf16.mxu0 0
      %686 = vmatpush1.bf16.msra.mxu0 0
      %687 = vmatprep.subr.bf16.mxu0 0
      %688 = vmatpush1.bf16.msra.mxu0 0
      %689 = vmatprep.subr.bf16.mxu0 0
      %690 = vmatpush1.bf16.msra.mxu0 0
      %691 = vmatprep.subr.bf16.mxu0 0
      %692 = vmatpush1.bf16.msra.mxu0 0
      %693 = vmatprep.subr.bf16.mxu0 0
      %694 = vmatpush1.bf16.msra.mxu0 0
      %695 = vmatprep.subr.bf16.mxu0 0
      %696 = vmatpush1.bf16.msra.mxu0 0
      %697 = vmatprep.subr.bf16.mxu0 0
      %698 = vmatpush1.bf16.msra.mxu0 0
      %699 = vmatprep.mubr.bf16.mxu0 0
      %700 = vmatmul.mubr.bf16.gmra.mrb[0].mxu0 %v662
      %v701 = vpop.f32.mrb[0].mxu0
      %v702 = vadd.f32 0.0, %v701
      %v703 = vpop.f32.mrb[0].mxu0
      %v704 = vpop.f32.mrb[0].mxu0
      %v705 = vpop.f32.mrb[0].mxu0
      %706 = vdwg.mxu0
      %708 = vrot.lane.b32.xlu0 %v480, 8
      %v709 = vpop.permute.xlu0 %708
      %712 = vrot.lane.b32.xlu0 %v591, 16
      %v713 = vpop.permute.xlu0 %712
      %716 = vrot.lane.b32.xlu0 %v702, 24
      %v717 = vpop.permute.xlu0 %716
      %v719 = vsel %vm258, %v360, %v709
      %vm720 = vcmask 130048
      %v721 = vsel %vm720, %v719, %v713
      %vm722 = vcmask 195584
      %v723 = vsel %vm722, %v721, %v717
      %v724 = vpack.c.bf16 %v723, %v723
      %v725 = vld [vmem:[%s3] sm:$0xf]
      %v726 = vld [vmem:[%s3 + $0x4] sm:$0xf]
      %v727 = vld [vmem:[%s3 + $0x8] sm:$0xf]
      %v728 = vld [vmem:[%s3 + $0xc] sm:$0xf]
      %v729 = vld [vmem:[%s4] sm:$0x1]
      %v731 = vlaneseq
      %v732 = vshrl.u32 %v731, 7
      %v733 = vsub.s32 0, %v732
      %v734 = vrot.slane %v729, %v733
      %v740 = vunpack.c.l.b16 %v725
      %v741 = vunpack.c.l.b16 %v726
      %v742 = vunpack.c.l.b16 %v727
      %v743 = vunpack.c.l.b16 %v728
      %v744 = vpack.c.b16 %v741, %v740
      %v745 = vpack.c.b16 %v743, %v742
      %vm748 = vcmask 261120
      %v750 = vsel %vm748, %v724, 0
      %752 = vmatprep.subr.bf16.mxu0 0
      %753 = vmatpush1.bf16.msra.mxu0 %v744
      %754 = vmatprep.subr.bf16.mxu0 0
      %755 = vmatpush1.bf16.msra.mxu0 %v745
      %756 = vmatprep.subr.bf16.mxu0 0
      %757 = vmatpush1.bf16.msra.mxu0 0
      %758 = vmatprep.subr.bf16.mxu0 0
      %759 = vmatpush1.bf16.msra.mxu0 0
      %760 = vmatprep.subr.bf16.mxu0 0
      %761 = vmatpush1.bf16.msra.mxu0 0
      %762 = vmatprep.subr.bf16.mxu0 0
      %763 = vmatpush1.bf16.msra.mxu0 0
      %764 = vmatprep.subr.bf16.mxu0 0
      %765 = vmatpush1.bf16.msra.mxu0 0
      %766 = vmatprep.subr.bf16.mxu0 0
      %767 = vmatpush1.bf16.msra.mxu0 0
      %768 = vmatprep.subr.bf16.mxu0 0
      %769 = vmatpush1.bf16.msra.mxu0 0
      %770 = vmatprep.subr.bf16.mxu0 0
      %771 = vmatpush1.bf16.msra.mxu0 0
      %772 = vmatprep.subr.bf16.mxu0 0
      %773 = vmatpush1.bf16.msra.mxu0 0
      %774 = vmatprep.subr.bf16.mxu0 0
      %775 = vmatpush1.bf16.msra.mxu0 0
      %776 = vmatprep.subr.bf16.mxu0 0
      %777 = vmatpush1.bf16.msra.mxu0 0
      %778 = vmatprep.subr.bf16.mxu0 0
      %779 = vmatpush1.bf16.msra.mxu0 0
      %780 = vmatprep.subr.bf16.mxu0 0
      %781 = vmatpush1.bf16.msra.mxu0 0
      %782 = vmatprep.subr.bf16.mxu0 0
      %783 = vmatpush1.bf16.msra.mxu0 0
      %784 = vmatprep.mubr.bf16.mxu0 0
      %785 = vmatmul.mubr.bf16.gmra.mrb[0].mxu0 %v750
      %v786 = vpop.f32.mrb[0].mxu0
      %v787 = vadd.f32 %v734, %v786
      %v788 = vpop.f32.mrb[0].mxu0
      %v789 = vpop.f32.mrb[0].mxu0
      %v790 = vpop.f32.mrb[0].mxu0
      %791 = vdwg.mxu0
      %792 = vst.msk [vmem:[%s253] sm:$0xff] %vm748, %v787
      %p793 = scmp.lt.s32.totalorder %s16, 7
      %s794 = scalar_select %p793, %s16, 7
      %s795 = smul.addr %s794, 8
      %s796 = scalar_lea.vmem %s5, %s795
      // Predicated region
      $region41: #{music_transformer_forward.76} parent=39 // pred_check
        %p797 = pneg %p154
      $region42: #{music_transformer_forward.76} parent=39 // pred_check_branch
        %799 = sbr.rel (%p797) target = $region44
      $region43: #{music_transformer_forward.76} parent=39 // pred_region
        _
      $region44: #{music_transformer_forward.76} parent=39 // pred_fallthru
        _
    $region40: #{music_transformer_forward.76} parent=5 // pred_fallthru
      _
    %p800 = scmp.le.s32.totalorder 2, %s11
    // Predicated region
    $region45: #{music_transformer_forward.76} parent=5 // pred_check
      %p801 = pneg %p800
    $region46: #{music_transformer_forward.76} parent=5 // pred_check_branch
      %803 = sbr.rel (%p801) target = $region48
    $region47: #{music_transformer_forward.76} parent=5 // pred_region
      %s804 = ssub.s32 %s11, 2
      // Predicated region
      $region49: #{music_transformer_forward.76} parent=47 // pred_check
        %p805 = pneg %p160
      $region50: #{music_transformer_forward.76} parent=47 // pred_check_branch
        %807 = sbr.rel (%p805) target = $region52
      $region51: #{music_transformer_forward.76} parent=47 // pred_region
        %p808 = scmp.lt.s32.totalorder %s17, 7
        %s809 = scalar_select %p808, %s17, 7
        %s810 = smul.addr %s809, 8
        %s811 = scalar_lea.vmem %s5, %s810
      $region52: #{music_transformer_forward.76} parent=47 // pred_fallthru
        _
    $region48: #{music_transformer_forward.76} parent=5 // pred_fallthru
      _
  $region6: #{music_transformer_forward.76} parent=0 // loop_footer
    %s15 = sadd.s32 1, %s11
  $region7: #{music_transformer_forward.76} parent=0 // loop_footer_branch
    %10 = sbr.rel target = $region3
  $region8: #{music_transformer_forward.76} parent=0 // loop_exit
    _

// kernel: music_transformer_forward.87
$region0: #{music_transformer_forward.87}
  #allocation0 [shape = 'u32[]', space=smem, size = 0x4, offset = 0x4, fixed_abs, tag = 'smem constant byte address 0x4 - core index']
  #allocation1 [shape = 'u32[144,128]{1,0:T(1,128)}', space=vmem, size = 0x12000, scoped, tag = 'internal scratch']
  %s0 = inlined_call_operand.vmem [shape: f32[64,32], index: 0, kind: input, shape index: {}]
  %s1 = inlined_call_operand.vmem [shape: f32[1,32], index: 1, kind: input, shape index: {}]
  %s2 = inlined_call_operand.vmem [shape: f32[1,32], index: 2, kind: input, shape index: {}]
  %s3 = inlined_call_operand.vmem [shape: f32[64,32], index: 3, kind: output, shape index: {}]
  %s4 = sld [smem:[#allocation0]]
  $region22: #{music_transformer_forward.87} parent=0
    _
  %s6 = ssub.s32 1, %s4
  %s7 = scalar_select 0, %s6, %s4
  // Predicated region
  $region2: #{music_transformer_forward.87} parent=0 // pred_check
    _
  $region3: #{music_transformer_forward.87} parent=0 // pred_check_branch
    %9 = sbr.rel (0) target = $region5
  $region4: #{music_transformer_forward.87} parent=0 // pred_region
    _
  $region5: #{music_transformer_forward.87} parent=0 // pred_fallthru
    _
  // Predicated region
  $region6: #{music_transformer_forward.87} parent=0 // pred_check
    _
  $region7: #{music_transformer_forward.87} parent=0 // pred_check_branch
    %11 = sbr.rel (0) target = $region9
  $region8: #{music_transformer_forward.87} parent=0 // pred_region
    _
  $region9: #{music_transformer_forward.87} parent=0 // pred_fallthru
    _
  // Predicated region
  $region10: #{music_transformer_forward.87} parent=0 // pred_check
    _
  $region11: #{music_transformer_forward.87} parent=0 // pred_check_branch
    %13 = sbr.rel (0) target = $region13
  $region12: #{music_transformer_forward.87} parent=0 // pred_region
    _
  $region13: #{music_transformer_forward.87} parent=0 // pred_fallthru
    _
  %v14 = vld [vmem:[%s0] sm:$0xff]
  %v15 = vld [vmem:[%s0 + $0x8] sm:$0xff]
  %v16 = vld [vmem:[%s0 + $0x10] sm:$0xff]
  %v17 = vld [vmem:[%s0 + $0x18] sm:$0xff]
  %v18 = vld [vmem:[%s0 + $0x20] sm:$0xff]
  %v19 = vld [vmem:[%s0 + $0x28] sm:$0xff]
  %v20 = vld [vmem:[%s0 + $0x30] sm:$0xff]
  %v21 = vld [vmem:[%s0 + $0x38] sm:$0xff]
  %v22 = vld [vmem:[%s1] sm:$0x1]
  %v23 = vld [vmem:[%s2] sm:$0x1]
  %vm24 = vcmask 261120
  %v25 = vsel %vm24, %v14, 0.0
  %26 = vadd.xlane.f32.xlu0 %v25
  %v27 = vpop.xlane.xlu0 %26
  %v28 = vsel %vm24, %v15, 0.0
  %29 = vadd.xlane.f32.xlu0 %v28
  %v30 = vpop.xlane.xlu0 %29
  %v31 = vsel %vm24, %v16, 0.0
  %32 = vadd.xlane.f32.xlu0 %v31
  %v33 = vpop.xlane.xlu0 %32
  %v34 = vsel %vm24, %v17, 0.0
  %35 = vadd.xlane.f32.xlu0 %v34
  %v36 = vpop.xlane.xlu0 %35
  %v37 = vsel %vm24, %v18, 0.0
  %38 = vadd.xlane.f32.xlu0 %v37
  %v39 = vpop.xlane.xlu0 %38
  %v40 = vsel %vm24, %v19, 0.0
  %41 = vadd.xlane.f32.xlu0 %v40
  %v42 = vpop.xlane.xlu0 %41
  %v43 = vsel %vm24, %v20, 0.0
  %44 = vadd.xlane.f32.xlu0 %v43
  %v45 = vpop.xlane.xlu0 %44
  %v46 = vsel %vm24, %v21, 0.0
  %47 = vadd.xlane.f32.xlu0 %v46
  %v48 = vpop.xlane.xlu0 %47
  %v49 = vrcp.pop 32.0
  %v50 = vmul.f32 %v27, %v49
  %v51 = vmul.f32 %v30, %v49
  %v52 = vmul.f32 %v33, %v49
  %v53 = vmul.f32 %v36, %v49
  %v54 = vmul.f32 %v39, %v49
  %v55 = vmul.f32 %v42, %v49
  %v56 = vmul.f32 %v45, %v49
  %v57 = vmul.f32 %v48, %v49
  %v58 = vsub.f32 %v14, %v50
  %v59 = vsub.f32 %v15, %v51
  %v60 = vsub.f32 %v16, %v52
  %v61 = vsub.f32 %v17, %v53
  %v62 = vsub.f32 %v18, %v54
  %v63 = vsub.f32 %v19, %v55
  %v64 = vsub.f32 %v20, %v56
  %v65 = vsub.f32 %v21, %v57
  %v66 = vmul.f32 %v58, %v58
  %v67 = vmul.f32 %v59, %v59
  %v68 = vmul.f32 %v60, %v60
  %v69 = vmul.f32 %v61, %v61
  %v70 = vmul.f32 %v62, %v62
  %v71 = vmul.f32 %v63, %v63
  %v72 = vmul.f32 %v64, %v64
  %v73 = vmul.f32 %v65, %v65
  %v74 = vsel %vm24, %v66, 0.0
  %75 = vadd.xlane.f32.xlu0 %v74
  %v76 = vpop.xlane.xlu0 %75
  %v77 = vsel %vm24, %v67, 0.0
  %78 = vadd.xlane.f32.xlu0 %v77
  %v79 = vpop.xlane.xlu0 %78
  %v80 = vsel %vm24, %v68, 0.0
  %81 = vadd.xlane.f32.xlu0 %v80
  %v82 = vpop.xlane.xlu0 %81
  %v83 = vsel %vm24, %v69, 0.0
  %84 = vadd.xlane.f32.xlu0 %v83
  %v85 = vpop.xlane.xlu0 %84
  %v86 = vsel %vm24, %v70, 0.0
  %87 = vadd.xlane.f32.xlu0 %v86
  %v88 = vpop.xlane.xlu0 %87
  %v89 = vsel %vm24, %v71, 0.0
  %90 = vadd.xlane.f32.xlu0 %v89
  %v91 = vpop.xlane.xlu0 %90
  %v92 = vsel %vm24, %v72, 0.0
  %93 = vadd.xlane.f32.xlu0 %v92
  %v94 = vpop.xlane.xlu0 %93
  %v95 = vsel %vm24, %v73, 0.0
  %96 = vadd.xlane.f32.xlu0 %v95
  %v97 = vpop.xlane.xlu0 %96
  %v98 = vmul.f32 %v76, %v49
  %v99 = vmul.f32 %v79, %v49
  %v100 = vmul.f32 %v82, %v49
  %v101 = vmul.f32 %v85, %v49
  %v102 = vmul.f32 %v88, %v49
  %v103 = vmul.f32 %v91, %v49
  %v104 = vmul.f32 %v94, %v49
  %v105 = vmul.f32 %v97, %v49
  %v106 = vadd.f32 %v98, 1e-05
  %v107 = vadd.f32 %v99, 1e-05
  %v108 = vadd.f32 %v100, 1e-05
  %v109 = vadd.f32 %v101, 1e-05
  %v110 = vadd.f32 %v102, 1e-05
  %v111 = vadd.f32 %v103, 1e-05
  %v112 = vadd.f32 %v104, 1e-05
  %v113 = vadd.f32 %v105, 1e-05
  %v114 = vrsqrt.pop %v106
  %v115 = vrsqrt.pop %v107
  %v116 = vrsqrt.pop %v108
  %v117 = vrsqrt.pop %v109
  %v118 = vrsqrt.pop %v110
  %v119 = vrsqrt.pop %v111
  %v120 = vrsqrt.pop %v112
  %v121 = vrsqrt.pop %v113
  %v122 = vmul.f32 %v58, %v114
  %v123 = vmul.f32 %v59, %v115
  %v124 = vmul.f32 %v60, %v116
  %v125 = vmul.f32 %v61, %v117
  %v126 = vmul.f32 %v62, %v118
  %v127 = vmul.f32 %v63, %v119
  %v128 = vmul.f32 %v64, %v120
  %v129 = vmul.f32 %v65, %v121
  %v131 = vlaneseq
  %v132 = vshrl.u32 %v131, 7
  %v133 = vsub.s32 0, %v132
  %v134 = vrot.slane %v22, %v133
  %v136 = vmul.f32 %v122, %v134
  %v137 = vmul.f32 %v123, %v134
  %v138 = vmul.f32 %v124, %v134
  %v139 = vmul.f32 %v125, %v134
  %v140 = vmul.f32 %v126, %v134
  %v141 = vmul.f32 %v127, %v134
  %v142 = vmul.f32 %v128, %v134
  %v143 = vmul.f32 %v129, %v134
  %v145 = vlaneseq
  %v146 = vshrl.u32 %v145, 7
  %v147 = vsub.s32 0, %v146
  %v148 = vrot.slane %v23, %v147
  %v150 = vadd.f32 %v136, %v148
  %v151 = vadd.f32 %v137, %v148
  %v152 = vadd.f32 %v138, %v148
  %v153 = vadd.f32 %v139, %v148
  %v154 = vadd.f32 %v140, %v148
  %v155 = vadd.f32 %v141, %v148
  %v156 = vadd.f32 %v142, %v148
  %v157 = vadd.f32 %v143, %v148
  %158 = vst.msk [vmem:[%s3] sm:$0xff] %vm24, %v150
  %159 = vst.msk [vmem:[%s3 + $0x8] sm:$0xff] %vm24, %v151
  %160 = vst.msk [vmem:[%s3 + $0x10] sm:$0xff] %vm24, %v152
  %161 = vst.msk [vmem:[%s3 + $0x18] sm:$0xff] %vm24, %v153
  %162 = vst.msk [vmem:[%s3 + $0x20] sm:$0xff] %vm24, %v154
  %163 = vst.msk [vmem:[%s3 + $0x28] sm:$0xff] %vm24, %v155
  %164 = vst.msk [vmem:[%s3 + $0x30] sm:$0xff] %vm24, %v156
  %165 = vst.msk [vmem:[%s3 + $0x38] sm:$0xff] %vm24, %v157
  // Predicated region
  $region14: #{music_transformer_forward.87} parent=0 // pred_check
    _
  $region15: #{music_transformer_forward.87} parent=0 // pred_check_branch
    %167 = sbr.rel (0) target = $region17
  $region16: #{music_transformer_forward.87} parent=0 // pred_region
    _
  $region17: #{music_transformer_forward.87} parent=0 // pred_fallthru
    _
  // Predicated region
  $region18: #{music_transformer_forward.87} parent=0 // pred_check
    _
  $region19: #{music_transformer_forward.87} parent=0 // pred_check_branch
    %169 = sbr.rel (0) target = $region21
  $region20: #{music_transformer_forward.87} parent=0 // pred_region
    _
  $region21: #{music_transformer_forward.87} parent=0 // pred_fallthru
    _

// kernel: music_transformer_forward.92
$region0: #{music_transformer_forward.92}
  #allocation0 [shape = 'u32[]', space=smem, size = 0x4, offset = 0x4, fixed_abs, tag = 'smem constant byte address 0x4 - core index']
  #allocation1 [shape = 'u32[144,128]{1,0:T(1,128)}', space=vmem, size = 0x12000, scoped, tag = 'internal scratch']
  %s0 = inlined_call_operand.vmem [shape: bf16[64,32], index: 0, kind: input, shape index: {}]
  %s1 = inlined_call_operand.vmem [shape: bf16[32,64], index: 1, kind: input, shape index: {}]
  %s2 = inlined_call_operand.vmem [shape: f32[1,64], index: 2, kind: input, shape index: {}]
  %s3 = inlined_call_operand.vmem [shape: f32[64,64], index: 3, kind: output, shape index: {}]
  %s4 = sld [smem:[#allocation0]]
  $region30: #{music_transformer_forward.92} parent=0
    _
  %s6 = ssub.s32 1, %s4
  %s7 = scalar_select 0, %s6, %s4
  // Predicated region
  $region2: #{music_transformer_forward.92} parent=0 // pred_check
    _
  $region3: #{music_transformer_forward.92} parent=0 // pred_check_branch
    %9 = sbr.rel (0) target = $region5
  $region4: #{music_transformer_forward.92} parent=0 // pred_region
    _
  $region5: #{music_transformer_forward.92} parent=0 // pred_fallthru
    _
  // Predicated region
  $region6: #{music_transformer_forward.92} parent=0 // pred_check
    _
  $region7: #{music_transformer_forward.92} parent=0 // pred_check_branch
    %11 = sbr.rel (0) target = $region9
  $region8: #{music_transformer_forward.92} parent=0 // pred_region
    _
  $region9: #{music_transformer_forward.92} parent=0 // pred_fallthru
    _
  // Predicated region
  $region10: #{music_transformer_forward.92} parent=0 // pred_check
    _
  $region11: #{music_transformer_forward.92} parent=0 // pred_check_branch
    %13 = sbr.rel (0) target = $region13
  $region12: #{music_transformer_forward.92} parent=0 // pred_region
    _
  $region13: #{music_transformer_forward.92} parent=0 // pred_fallthru
    _
  %p15 = scmp.eq.s32.totalorder 0, 0
  // Predicated region
  $region14: #{music_transformer_forward.92} parent=0 // pred_check
    %p16 = pneg %p15
  $region15: #{music_transformer_forward.92} parent=0 // pred_check_branch
    %18 = sbr.rel (%p16) target = $region17
  $region16: #{music_transformer_forward.92} parent=0 // pred_region
    %vm19 = vcmask 523264
    %20 = vst.msk [vmem:[%s3] sm:$0xff] %vm19, 0.0
    %21 = vst.msk [vmem:[%s3 + $0x8] sm:$0xff] %vm19, 0.0
    %22 = vst.msk [vmem:[%s3 + $0x10] sm:$0xff] %vm19, 0.0
    %23 = vst.msk [vmem:[%s3 + $0x18] sm:$0xff] %vm19, 0.0
    %24 = vst.msk [vmem:[%s3 + $0x20] sm:$0xff] %vm19, 0.0
    %25 = vst.msk [vmem:[%s3 + $0x28] sm:$0xff] %vm19, 0.0
    %26 = vst.msk [vmem:[%s3 + $0x30] sm:$0xff] %vm19, 0.0
    %27 = vst.msk [vmem:[%s3 + $0x38] sm:$0xff] %vm19, 0.0
  $region17: #{music_transformer_forward.92} parent=0 // pred_fallthru
    _
  %v28 = vld [vmem:[%s3] sm:$0xff]
  %v29 = vld [vmem:[%s3 + $0x8] sm:$0xff]
  %v30 = vld [vmem:[%s3 + $0x10] sm:$0xff]
  %v31 = vld [vmem:[%s3 + $0x18] sm:$0xff]
  %v32 = vld [vmem:[%s3 + $0x20] sm:$0xff]
  %v33 = vld [vmem:[%s3 + $0x28] sm:$0xff]
  %v34 = vld [vmem:[%s3 + $0x30] sm:$0xff]
  %v35 = vld [vmem:[%s3 + $0x38] sm:$0xff]
  %v36 = vld [vmem:[%s0] sm:$0xf]
  %v37 = vld [vmem:[%s0 + $0x4] sm:$0xf]
  %v38 = vld [vmem:[%s0 + $0x8] sm:$0xf]
  %v39 = vld [vmem:[%s0 + $0xc] sm:$0xf]
  %v40 = vld [vmem:[%s0 + $0x10] sm:$0xf]
  %v41 = vld [vmem:[%s0 + $0x14] sm:$0xf]
  %v42 = vld [vmem:[%s0 + $0x18] sm:$0xf]
  %v43 = vld [vmem:[%s0 + $0x1c] sm:$0xf]
  %v44 = vld [vmem:[%s1] sm:$0xf]
  %v45 = vld [vmem:[%s1 + $0x4] sm:$0xf]
  %v46 = vld [vmem:[%s1 + $0x8] sm:$0xf]
  %v47 = vld [vmem:[%s1 + $0xc] sm:$0xf]
  %v56 = vunpack.c.l.b16 %v36
  %v57 = vunpack.c.l.b16 %v37
  %v58 = vunpack.c.l.b16 %v38
  %v59 = vunpack.c.l.b16 %v39
  %v60 = vunpack.c.l.b16 %v40
  %v61 = vunpack.c.l.b16 %v41
  %v62 = vunpack.c.l.b16 %v42
  %v63 = vunpack.c.l.b16 %v43
  %v64 = vpack.c.b16 %v57, %v56
  %v65 = vpack.c.b16 %v59, %v58
  %v66 = vpack.c.b16 %v61, %v60
  %v67 = vpack.c.b16 %v63, %v62
  %v72 = vunpack.c.l.b16 %v44
  %v73 = vunpack.c.l.b16 %v45
  %v74 = vunpack.c.l.b16 %v46
  %v75 = vunpack.c.l.b16 %v47
  %v76 = vpack.c.b16 %v73, %v72
  %v77 = vpack.c.b16 %v75, %v74
  %vm80 = vcmask 261120
  %v82 = vsel %vm80, %v64, 0
  %v85 = vsel %vm80, %v65, 0
  %v88 = vsel %vm80, %v66, 0
  %v91 = vsel %vm80, %v67, 0
  %93 = vmatprep.subr.bf16.mxu0 0
  %94 = vmatpush1.bf16.msra.mxu0 %v76
  %95 = vmatprep.subr.bf16.mxu0 0
  %96 = vmatpush1.bf16.msra.mxu0 %v77
  %97 = vmatprep.subr.bf16.mxu0 0
  %98 = vmatpush1.bf16.msra.mxu0 0
  %99 = vmatprep.subr.bf16.mxu0 0
  %100 = vmatpush1.bf16.msra.mxu0 0
  %101 = vmatprep.subr.bf16.mxu0 0
  %102 = vmatpush1.bf16.msra.mxu0 0
  %103 = vmatprep.subr.bf16.mxu0 0
  %104 = vmatpush1.bf16.msra.mxu0 0
  %105 = vmatprep.subr.bf16.mxu0 0
  %106 = vmatpush1.bf16.msra.mxu0 0
  %107 = vmatprep.subr.bf16.mxu0 0
  %108 = vmatpush1.bf16.msra.mxu0 0
  %109 = vmatprep.subr.bf16.mxu0 0
  %110 = vmatpush1.bf16.msra.mxu0 0
  %111 = vmatprep.subr.bf16.mxu0 0
  %112 = vmatpush1.bf16.msra.mxu0 0
  %113 = vmatprep.subr.bf16.mxu0 0
  %114 = vmatpush1.bf16.msra.mxu0 0
  %115 = vmatprep.subr.bf16.mxu0 0
  %116 = vmatpush1.bf16.msra.mxu0 0
  %117 = vmatprep.subr.bf16.mxu0 0
  %118 = vmatpush1.bf16.msra.mxu0 0
  %119 = vmatprep.subr.bf16.mxu0 0
  %120 = vmatpush1.bf16.msra.mxu0 0
  %121 = vmatprep.subr.bf16.mxu0 0
  %122 = vmatpush1.bf16.msra.mxu0 0
  %123 = vmatprep.subr.bf16.mxu0 0
  %124 = vmatpush1.bf16.msra.mxu0 0
  %125 = vmatprep.mubr.bf16.mxu0 0
  %126 = vmatmul.mubr.bf16.gmra.mrb[0].mxu0 %v82
  %v127 = vpop.f32.mrb[0].mxu0
  %v128 = vadd.f32 0.0, %v127
  %v129 = vpop.f32.mrb[0].mxu0
  %v130 = vpop.f32.mrb[0].mxu0
  %v131 = vadd.f32 0.0, %v130
  %v132 = vpop.f32.mrb[0].mxu0
  %133 = vmatprep.mubr.bf16.mxu0 0
  %134 = vmatmul.mubr.bf16.gmra.mrb[0].mxu0 %v85
  %v135 = vpop.f32.mrb[0].mxu0
  %v136 = vadd.f32 0.0, %v135
  %v137 = vpop.f32.mrb[0].mxu0
  %v138 = vpop.f32.mrb[0].mxu0
  %v139 = vadd.f32 0.0, %v138
  %v140 = vpop.f32.mrb[0].mxu0
  %141 = vmatprep.mubr.bf16.mxu0 0
  %142 = vmatmul.mubr.bf16.gmra.mrb[0].mxu0 %v88
  %v143 = vpop.f32.mrb[0].mxu0
  %v144 = vadd.f32 0.0, %v143
  %v145 = vpop.f32.mrb[0].mxu0
  %v146 = vpop.f32.mrb[0].mxu0
  %v147 = vadd.f32 0.0, %v146
  %v148 = vpop.f32.mrb[0].mxu0
  %149 = vmatprep.mubr.bf16.mxu0 0
  %150 = vmatmul.mubr.bf16.gmra.mrb[0].mxu0 %v91
  %v151 = vpop.f32.mrb[0].mxu0
  %v152 = vadd.f32 0.0, %v151
  %v153 = vpop.f32.mrb[0].mxu0
  %v154 = vpop.f32.mrb[0].mxu0
  %v155 = vadd.f32 0.0, %v154
  %v156 = vpop.f32.mrb[0].mxu0
  %157 = vdwg.mxu0
  %v158 = vadd.f32 %v28, %v128
  %v159 = vadd.f32 %v29, %v131
  %v160 = vadd.f32 %v30, %v136
  %v161 = vadd.f32 %v31, %v139
  %v162 = vadd.f32 %v32, %v144
  %v163 = vadd.f32 %v33, %v147
  %v164 = vadd.f32 %v34, %v152
  %v165 = vadd.f32 %v35, %v155
  %vm166 = vcmask 523264
  %167 = vst.msk [vmem:[%s3] sm:$0xff] %vm166, %v158
  %168 = vst.msk [vmem:[%s3 + $0x8] sm:$0xff] %vm166, %v159
  %169 = vst.msk [vmem:[%s3 + $0x10] sm:$0xff] %vm166, %v160
  %170 = vst.msk [vmem:[%s3 + $0x18] sm:$0xff] %vm166, %v161
  %171 = vst.msk [vmem:[%s3 + $0x20] sm:$0xff] %vm166, %v162
  %172 = vst.msk [vmem:[%s3 + $0x28] sm:$0xff] %vm166, %v163
  %173 = vst.msk [vmem:[%s3 + $0x30] sm:$0xff] %vm166, %v164
  %174 = vst.msk [vmem:[%s3 + $0x38] sm:$0xff] %vm166, %v165
  // Predicated region
  $region18: #{music_transformer_forward.92} parent=0 // pred_check
    %p175 = pneg %p15
  $region19: #{music_transformer_forward.92} parent=0 // pred_check_branch
    %177 = sbr.rel (%p175) target = $region21
  $region20: #{music_transformer_forward.92} parent=0 // pred_region
    %v178 = vld [vmem:[%s3] sm:$0xff]
    %v179 = vld [vmem:[%s3 + $0x8] sm:$0xff]
    %v180 = vld [vmem:[%s3 + $0x10] sm:$0xff]
    %v181 = vld [vmem:[%s3 + $0x18] sm:$0xff]
    %v182 = vld [vmem:[%s3 + $0x20] sm:$0xff]
    %v183 = vld [vmem:[%s3 + $0x28] sm:$0xff]
    %v184 = vld [vmem:[%s3 + $0x30] sm:$0xff]
    %v185 = vld [vmem:[%s3 + $0x38] sm:$0xff]
    %v186 = vld [vmem:[%s2] sm:$0x1]
    %v188 = vlaneseq
    %v189 = vshrl.u32 %v188, 7
    %v190 = vsub.s32 0, %v189
    %v191 = vrot.slane %v186, %v190
    %v193 = vadd.f32 %v178, %v191
    %v194 = vadd.f32 %v179, %v191
    %v195 = vadd.f32 %v180, %v191
    %v196 = vadd.f32 %v181, %v191
    %v197 = vadd.f32 %v182, %v191
    %v198 = vadd.f32 %v183, %v191
    %v199 = vadd.f32 %v184, %v191
    %v200 = vadd.f32 %v185, %v191
    %201 = vst.msk [vmem:[%s3] sm:$0xff] %vm166, %v193
    %202 = vst.msk [vmem:[%s3 + $0x8] sm:$0xff] %vm166, %v194
    %203 = vst.msk [vmem:[%s3 + $0x10] sm:$0xff] %vm166, %v195
    %204 = vst.msk [vmem:[%s3 + $0x18] sm:$0xff] %vm166, %v196
    %205 = vst.msk [vmem:[%s3 + $0x20] sm:$0xff] %vm166, %v197
    %206 = vst.msk [vmem:[%s3 + $0x28] sm:$0xff] %vm166, %v198
    %207 = vst.msk [vmem:[%s3 + $0x30] sm:$0xff] %vm166, %v199
    %208 = vst.msk [vmem:[%s3 + $0x38] sm:$0xff] %vm166, %v200
  $region21: #{music_transformer_forward.92} parent=0 // pred_fallthru
    _
  // Predicated region
  $region22: #{music_transformer_forward.92} parent=0 // pred_check
    _
  $region23: #{music_transformer_forward.92} parent=0 // pred_check_branch
    %210 = sbr.rel (0) target = $region25
  $region24: #{music_transformer_forward.92} parent=0 // pred_region
    _
  $region25: #{music_transformer_forward.92} parent=0 // pred_fallthru
    _
  // Predicated region
  $region26: #{music_transformer_forward.92} parent=0 // pred_check
    _
  $region27: #{music_transformer_forward.92} parent=0 // pred_check_branch
    %212 = sbr.rel (0) target = $region29
  $region28: #{music_transformer_forward.92} parent=0 // pred_region
    _
  $region29: #{music_transformer_forward.92} parent=0 // pred_fallthru
    _

// kernel: music_transformer_forward.79
$region0: #{music_transformer_forward.79}
  #allocation0 [shape = 'u32[]', space=smem, size = 0x4, offset = 0x4, fixed_abs, tag = 'smem constant byte address 0x4 - core index']
  #allocation1 [shape = 'u32[144,128]{1,0:T(1,128)}', space=vmem, size = 0x12000, scoped, tag = 'internal scratch']
  %s0 = inlined_call_operand.vmem [shape: bf16[64,2048], index: 0, kind: input, shape index: {}]
  %s1 = inlined_call_operand.vmem [shape: bf16[2048,32], index: 1, kind: input, shape index: {}]
  %s2 = inlined_call_operand.vmem [shape: f32[1,32], index: 2, kind: input, shape index: {}]
  %s3 = inlined_call_operand.vmem [shape: f32[64,32], index: 3, kind: output, shape index: {}]
  %s4 = sld [smem:[#allocation0]]
  $region76: #{music_transformer_forward.79} parent=0
    _
  %s6 = ssub.s32 1, %s4
  %s7 = scalar_select 0, %s6, %s4
  $region1: #{music_transformer_forward.79} parent=0
    #allocation2 [shape = 'u8[131072]{0}', space=vmem, size = 0x20000, scoped, tag = 'input window, operand 0']
    loop: start=0, step=1, limit=6
    $region2: #{music_transformer_forward.79} parent=1 // loop_pre_header
      _
    $region3: #{music_transformer_forward.79} parent=1 // loop_header
      %s9 = sphi 0, %s13
      %p10 = scmp.ge.s32.totalorder %s9, 6
      %s16 = sphi 0, %s35
      %s17 = sphi 0, %s31
      %s18 = sphi 0, %s27
      %s19 = sphi 0, %s16
      %s20 = sphi 0, %s17
      %s21 = sphi 0, %s18
      %s22 = sphi 0, %s19
      %s23 = sphi 0, %s20
      %s24 = sphi 0, %s21
      %s40 = sphi 0, %s42
      %s43 = sphi 0, %s40
      %s44 = sphi 0, %s43
      %s60 = sphi 0, %s44
      %s68 = sphi 0, %s70
      %s71 = sphi 0, %s68
      %s72 = sphi 0, %s71
      %s88 = sphi 0, %s72
      %s94 = sphi 0, %s96
      %s97 = sphi 0, %s94
      %s98 = sphi 0, %s97
      %s114 = sphi 0, %s98
      %s122 = sphi 0, %s124
      %s125 = sphi 0, %s122
      %s126 = sphi 0, %s125
      %s142 = sphi 0, %s126
    $region4: #{music_transformer_forward.79} parent=1 // loop_header_branch
      %12 = sbr.rel (%p10) target = $region8
    $region5: #{music_transformer_forward.79} parent=1 // loop_body
      %s14 = ssub.s32 %s9, 1
      %s15 = ssub.s32 %s9, 2
      %s25 = sadd.s32 1, %s18
      %p26 = scmp.ge.s32.totalorder %s25, 4
      %s27 = scalar_select %p26, 0, %s25
      %s28 = sadd.s32 1, %s17
      %s29 = scalar_select %p26, %s28, %s17
      %p30 = scmp.ge.s32.totalorder %s29, 1
      %s31 = scalar_select %p30, 0, %s29
      %s32 = sadd.s32 1, %s16
      %s33 = scalar_select %p30, %s32, %s16
      %p34 = scmp.ge.s32.totalorder %s33, 1
      %s35 = scalar_select %p34, 0, %s33
      %s36 = ssub.s32 %s16, %s35
      %s37 = ssub.s32 %s18, %s27
      %s38 = sor.u32 %s36, %s37
      %p39 = scmp.eq.s32.totalorder %s38, 0
      %s41 = sadd.s32 %s40, 1
      %s42 = scalar_select %p39, %s40, %s41
      %p45 = pneg %p39
      %p46 = scmp.eq.s32.totalorder %s9, 3
      %p47 = por %p45, %p46
      %p48 = scmp.ne.s32.totalorder %s40, %s43
      %p49 = scmp.eq.s32.totalorder %s9, 0
      %p50 = por %p48, %p49
      %p51 = scmp.ne.s32.totalorder %s40, %s43
      %p52 = scmp.eq.s32.totalorder %s14, 3
      %p53 = por %p51, %p52
      %p54 = scmp.ne.s32.totalorder %s43, %s44
      %p55 = scmp.eq.s32.totalorder %s14, 0
      %p56 = por %p54, %p55
      %p57 = scmp.ne.s32.totalorder %s43, %s44
      %p58 = scmp.eq.s32.totalorder %s15, 3
      %p59 = por %p57, %p58
      %p61 = scmp.ne.s32.totalorder %s44, %s60
      %p62 = scmp.eq.s32.totalorder %s15, 0
      %p63 = por %p61, %p62
      %s64 = ssub.s32 %s18, %s27
      %s65 = ssub.s32 %s17, %s31
      %s66 = sor.u32 %s64, %s65
      %p67 = scmp.eq.s32.totalorder %s66, 0
      %s69 = sadd.s32 %s68, 1
      %s70 = scalar_select %p67, %s68, %s69
      %p73 = pneg %p67
      %p74 = scmp.eq.s32.totalorder %s9, 3
      %p75 = por %p73, %p74
      %p76 = scmp.ne.s32.totalorder %s68, %s71
      %p77 = scmp.eq.s32.totalorder %s9, 0
      %p78 = por %p76, %p77
      %p79 = scmp.ne.s32.totalorder %s68, %s71
      %p80 = scmp.eq.s32.totalorder %s14, 3
      %p81 = por %p79, %p80
      %p82 = scmp.ne.s32.totalorder %s71, %s72
      %p83 = scmp.eq.s32.totalorder %s14, 0
      %p84 = por %p82, %p83
      %p85 = scmp.ne.s32.totalorder %s71, %s72
      %p86 = scmp.eq.s32.totalorder %s15, 3
      %p87 = por %p85, %p86
      %p89 = scmp.ne.s32.totalorder %s72, %s88
      %p90 = scmp.eq.s32.totalorder %s15, 0
      %p91 = por %p89, %p90
      %s92 = ssub.s32 %s17, %s31
      %p93 = scmp.eq.s32.totalorder %s92, 0
      %s95 = sadd.s32 %s94, 1
      %s96 = scalar_select %p93, %s94, %s95
      %p99 = pneg %p93
      %p100 = scmp.eq.s32.totalorder %s9, 3
      %p101 = por %p99, %p100
      %p102 = scmp.ne.s32.totalorder %s94, %s97
      %p103 = scmp.eq.s32.totalorder %s9, 0
      %p104 = por %p102, %p103
      %p105 = scmp.ne.s32.totalorder %s94, %s97
      %p106 = scmp.eq.s32.totalorder %s14, 3
      %p107 = por %p105, %p106
      %p108 = scmp.ne.s32.totalorder %s97, %s98
      %p109 = scmp.eq.s32.totalorder %s14, 0
      %p110 = por %p108, %p109
      %p111 = scmp.ne.s32.totalorder %s97, %s98
      %p112 = scmp.eq.s32.totalorder %s15, 3
      %p113 = por %p111, %p112
      %p115 = scmp.ne.s32.totalorder %s98, %s114
      %p116 = scmp.eq.s32.totalorder %s15, 0
      %p117 = por %p115, %p116
      %s118 = ssub.s32 %s16, %s35
      %s119 = ssub.s32 %s17, %s31
      %s120 = sor.u32 %s118, %s119
      %p121 = scmp.eq.s32.totalorder %s120, 0
      %s123 = sadd.s32 %s122, 1
      %s124 = scalar_select %p121, %s122, %s123
      %p127 = pneg %p121
      %p128 = scmp.eq.s32.totalorder %s9, 3
      %p129 = por %p127, %p128
      %p130 = scmp.ne.s32.totalorder %s122, %s125
      %p131 = scmp.eq.s32.totalorder %s9, 0
      %p132 = por %p130, %p131
      %p133 = scmp.ne.s32.totalorder %s122, %s125
      %p134 = scmp.eq.s32.totalorder %s14, 3
      %p135 = por %p133, %p134
      %p136 = scmp.ne.s32.totalorder %s125, %s126
      %p137 = scmp.eq.s32.totalorder %s14, 0
      %p138 = por %p136, %p137
      %p139 = scmp.ne.s32.totalorder %s125, %s126
      %p140 = scmp.eq.s32.totalorder %s15, 3
      %p141 = por %p139, %p140
      %p143 = scmp.ne.s32.totalorder %s126, %s142
      %p144 = scmp.eq.s32.totalorder %s15, 0
      %p145 = por %p143, %p144
      %p146 = scmp.le.s32.totalorder 1, %s9
      %p147 = scmp.lt.s32.totalorder %s9, 5
      %p148 = pnand %p146, %p147
      %p149 = pneg %p148
      // Predicated region
      $region9: #{music_transformer_forward.79} parent=5 // pred_check
        _
      $region10: #{music_transformer_forward.79} parent=5 // pred_check_branch
        %151 = sbr.rel (%p148) target = $region12
      $region11: #{music_transformer_forward.79} parent=5 // pred_region
        %s152 = ssub.s32 %s9, 1
        // Predicated region
        $region13: #{music_transformer_forward.79} parent=11 // pred_check
          %p153 = pneg %p110
        $region14: #{music_transformer_forward.79} parent=11 // pred_check_branch
          %155 = sbr.rel (%p153) target = $region16
        $region15: #{music_transformer_forward.79} parent=11 // pred_region
          %p156 = scmp.lt.s32.totalorder %s20, 0
          %s157 = scalar_select %p156, %s20, 0
          %s158 = scalar_lea.vmem %s2, %s157
        $region16: #{music_transformer_forward.79} parent=11 // pred_fallthru
          _
      $region12: #{music_transformer_forward.79} parent=5 // pred_fallthru
        _
      %p159 = scmp.lt.s32.totalorder %s9, 4
      // Predicated region
      $region17: #{music_transformer_forward.79} parent=5 // pred_check
        %p160 = pneg %p159
      $region18: #{music_transformer_forward.79} parent=5 // pred_check_branch
        %162 = sbr.rel (%p160) target = $region20
      $region19: #{music_transformer_forward.79} parent=5 // pred_region
        // Predicated region
        $region21: #{music_transformer_forward.79} parent=19 // pred_check
          %p163 = pneg %p50
        $region22: #{music_transformer_forward.79} parent=19 // pred_check_branch
          %165 = sbr.rel (%p163) target = $region24
        $region23: #{music_transformer_forward.79} parent=19 // pred_region
          %s166 = sand.u32 %s40, 1
          %s167 = sand.u32 %s40, 1
          %s168 = smul.addr %s167, 128
          %s169 = scalar_lea.vmem [#allocation2], %s168
          %s170 = smul.u32 8, %s16
          %s171 = smul.u32 4, %s18
          %s172 = smul.addr %s170, 16
          %s173 = sadd.s32 %s171, %s172
          %s174 = smul.addr %s173, 4
          %s175 = scalar_lea.vmem %s0, %s174
          // Predicated region
          $region25: #{music_transformer_forward.79} parent=23 // pred_check
            _
          $region26: #{music_transformer_forward.79} parent=23 // pred_check_branch
            %177 = sbr.rel (0) target = $region28
          $region27: #{music_transformer_forward.79} parent=23 // pred_region
            // Predicated region
            $region29: #{music_transformer_forward.79} parent=27 // pred_check
              _
            $region30: #{music_transformer_forward.79} parent=27 // pred_check_branch
              %179 = sbr.rel (0) target = $region32
            $region31: #{music_transformer_forward.79} parent=27 // pred_region
              loop: start=0, step=1, limit=1
              $region33: #{music_transformer_forward.79} parent=31 // loop_pre_header
                _
              $region34: #{music_transformer_forward.79} parent=31 // loop_header
                %s181 = sphi 0, %s185
                %p182 = scmp.ge.s32.totalorder %s181, 1
                %s186 = sphi %s175, %s175
                %s187 = sphi %s169, %s169
              $region35: #{music_transformer_forward.79} parent=31 // loop_header_branch
                %184 = sbr.rel (%p182) target = $region39
              $region36: #{music_transformer_forward.79} parent=31 // loop_body
                %v188 = vld [vmem:[%s186] sm:$0xff]
                %189 = vst [vmem:[%s187] sm:$0xff] %v188
                %v190 = vld [vmem:[%s186 + $0x8] sm:$0xff]
                %191 = vst [vmem:[%s187 + $0x8] sm:$0xff] %v190
                %v192 = vld [vmem:[%s186 + $0x40] sm:$0xff]
                %193 = vst [vmem:[%s187 + $0x10] sm:$0xff] %v192
                %v194 = vld [vmem:[%s186 + $0x48] sm:$0xff]
                %195 = vst [vmem:[%s187 + $0x18] sm:$0xff] %v194
                %v196 = vld [vmem:[%s186 + $0x80] sm:$0xff]
                %197 = vst [vmem:[%s187 + $0x20] sm:$0xff] %v196
                %v198 = vld [vmem:[%s186 + $0x88] sm:$0xff]
                %199 = vst [vmem:[%s187 + $0x28] sm:$0xff] %v198
                %v200 = vld [vmem:[%s186 + $0xc0] sm:$0xff]
                %201 = vst [vmem:[%s187 + $0x30] sm:$0xff] %v200
                %v202 = vld [vmem:[%s186 + $0xc8] sm:$0xff]
                %203 = vst [vmem:[%s187 + $0x38] sm:$0xff] %v202
                %v204 = vld [vmem:[%s186 + $0x100] sm:$0xff]
                %205 = vst [vmem:[%s187 + $0x40] sm:$0xff] %v204
                %v206 = vld [vmem:[%s186 + $0x108] sm:$0xff]
                %207 = vst [vmem:[%s187 + $0x48] sm:$0xff] %v206
                %v208 = vld [vmem:[%s186 + $0x140] sm:$0xff]
                %209 = vst [vmem:[%s187 + $0x50] sm:$0xff] %v208
                %v210 = vld [vmem:[%s186 + $0x148] sm:$0xff]
                %211 = vst [vmem:[%s187 + $0x58] sm:$0xff] %v210
                %v212 = vld [vmem:[%s186 + $0x180] sm:$0xff]
                %213 = vst [vmem:[%s187 + $0x60] sm:$0xff] %v212
                %v214 = vld [vmem:[%s186 + $0x188] sm:$0xff]
                %215 = vst [vmem:[%s187 + $0x68] sm:$0xff] %v214
                %v216 = vld [vmem:[%s186 + $0x1c0] sm:$0xff]
                %217 = vst [vmem:[%s187 + $0x70] sm:$0xff] %v216
                %v218 = vld [vmem:[%s186 + $0x1c8] sm:$0xff]
                %219 = vst [vmem:[%s187 + $0x78] sm:$0xff] %v218
              $region37: #{music_transformer_forward.79} parent=31 // loop_footer
                %s185 = sadd.s32 1, %s181
              $region38: #{music_transformer_forward.79} parent=31 // loop_footer_branch
                %180 = sbr.rel target = $region34
              $region39: #{music_transformer_forward.79} parent=31 // loop_exit
                _
            $region32: #{music_transformer_forward.79} parent=27 // pred_fallthru
              _
            // Predicated region
            $region40: #{music_transformer_forward.79} parent=27 // pred_check
              _
            $region41: #{music_transformer_forward.79} parent=27 // pred_check_branch
              %221 = sbr.rel target = $region43
            $region42: #{music_transformer_forward.79} parent=27 // pred_region
              _
            $region43: #{music_transformer_forward.79} parent=27 // pred_fallthru
              _
          $region28: #{music_transformer_forward.79} parent=23 // pred_fallthru
            _
          %222 = vnop
        $region24: #{music_transformer_forward.79} parent=19 // pred_fallthru
          _
        // Predicated region
        $region44: #{music_transformer_forward.79} parent=19 // pred_check
          %p223 = pneg %p78
        $region45: #{music_transformer_forward.79} parent=19 // pred_check_branch
          %225 = sbr.rel (%p223) target = $region47
        $region46: #{music_transformer_forward.79} parent=19 // pred_region
          %s226 = smul.u32 64, %s18
          %p227 = scmp.lt.s32.totalorder %s226, 255
          %s228 = scalar_select %p227, %s226, 255
          %p229 = scmp.lt.s32.totalorder %s17, 0
          %s230 = scalar_select %p229, %s17, 0
          %s231 = sadd.s32 %s230, %s228
          %s232 = smul.addr %s231, 4
          %s233 = scalar_lea.vmem %s1, %s232
          %s234 = smul.u32 64, %s18
        $region47: #{music_transformer_forward.79} parent=19 // pred_fallthru
          _
      $region20: #{music_transformer_forward.79} parent=5 // pred_fallthru
        _
      %p235 = scmp.le.s32.totalorder 1, %s9
      %p236 = scmp.lt.s32.totalorder %s9, 5
      %p237 = pnand %p235, %p236
      %p238 = pneg %p237
      // Predicated region
      $region48: #{music_transformer_forward.79} parent=5 // pred_check
        _
      $region49: #{music_transformer_forward.79} parent=5 // pred_check_branch
        %240 = sbr.rel (%p237) target = $region51
      $region50: #{music_transformer_forward.79} parent=5 // pred_region
        %s241 = ssub.s32 %s9, 1
        %s242 = sand.u32 %s43, 1
        %s243 = sand.u32 %s43, 1
        %s244 = smul.addr %s243, 128
        %s245 = scalar_lea.vmem [#allocation2], %s244
        // Predicated region
        $region52: #{music_transformer_forward.79} parent=50 // pred_check
          %p246 = pneg %p56
        $region53: #{music_transformer_forward.79} parent=50 // pred_check_branch
          %248 = sbr.rel (%p246) target = $region55
        $region54: #{music_transformer_forward.79} parent=50 // pred_region
          _
        $region55: #{music_transformer_forward.79} parent=50 // pred_fallthru
          _
        %s249 = sand.u32 %s43, 1
        %s250 = sand.u32 %s43, 1
        %s251 = smul.addr %s250, 128
        %s252 = scalar_lea.vmem [#allocation2], %s251
        %p253 = pneg %p56
        %p254 = pneg %p53
        %s255 = smul.u32 64, %s21
        %p256 = scmp.lt.s32.totalorder %s255, 255
        %s257 = scalar_select %p256, %s255, 255
        %p258 = scmp.lt.s32.totalorder %s20, 0
        %s259 = scalar_select %p258, %s20, 0
        %s260 = sadd.s32 %s259, %s257
        %s261 = smul.addr %s260, 4
        %s262 = scalar_lea.vmem %s1, %s261
        %p263 = pneg %p84
        %p264 = pneg %p81
        %p265 = scmp.lt.s32.totalorder %s20, 0
        %s266 = scalar_select %p265, %s20, 0
        %s267 = scalar_lea.vmem %s2, %s266
        %p268 = pneg %p110
        %p269 = pneg %p107
        %p270 = pneg %p138
        %p271 = pneg %p135
        %s272 = smul.u32 8, %s19
        %p273 = scmp.lt.s32.totalorder %s272, 7
        %s274 = scalar_select %p273, %s272, 7
        %p275 = scmp.lt.s32.totalorder %s20, 0
        %s276 = scalar_select %p275, %s20, 0
        %s277 = sadd.s32 %s276, %s274
        %s278 = smul.addr %s277, 8
        %s279 = scalar_lea.vmem %s3, %s278
        %s280 = smul.u32 8, %s19
        %s281 = smul.u32 4, %s21
        %s282 = smul.u32 64, %s21
        %p283 = scmp.lt.s32.totalorder %s282, 255
        %s284 = scalar_select %p283, %s282, 255
        %p285 = scmp.lt.s32.totalorder %s20, 0
        %s286 = scalar_select %p285, %s20, 0
        %s287 = sadd.s32 %s286, %s284
        %s288 = smul.addr %s287, 4
        %s289 = scalar_lea.vmem %s1, %s288
        %s290 = smul.u32 64, %s21
        %p291 = scmp.lt.s32.totalorder %s20, 0
        %s292 = scalar_select %p291, %s20, 0
        %s293 = scalar_lea.vmem %s2, %s292
        %s294 = smul.u32 8, %s19
        %p295 = scmp.lt.s32.totalorder %s294, 7
        %s296 = scalar_select %p295, %s294, 7
        %p297 = scmp.lt.s32.totalorder %s20, 0
        %s298 = scalar_select %p297, %s20, 0
        %s299 = sadd.s32 %s298, %s296
        %s300 = smul.addr %s299, 8
        %s301 = scalar_lea.vmem %s3, %s300
        %s302 = smul.u32 8, %s19
        %p304 = scmp.eq.s32.totalorder %s21, 0
        // Predicated region
        $region56: #{music_transformer_forward.79} parent=50 // pred_check
          %p305 = pneg %p304
        $region57: #{music_transformer_forward.79} parent=50 // pred_check_branch
          %307 = sbr.rel (%p305) target = $region59
        $region58: #{music_transformer_forward.79} parent=50 // pred_region
          %vm308 = vcmask 261120
          %309 = vst.msk [vmem:[%s301] sm:$0xff] %vm308, 0.0
          %310 = vst.msk [vmem:[%s301 + $0x8] sm:$0xff] %vm308, 0.0
          %311 = vst.msk [vmem:[%s301 + $0x10] sm:$0xff] %vm308, 0.0
          %312 = vst.msk [vmem:[%s301 + $0x18] sm:$0xff] %vm308, 0.0
          %313 = vst.msk [vmem:[%s301 + $0x20] sm:$0xff] %vm308, 0.0
          %314 = vst.msk [vmem:[%s301 + $0x28] sm:$0xff] %vm308, 0.0
          %315 = vst.msk [vmem:[%s301 + $0x30] sm:$0xff] %vm308, 0.0
          %316 = vst.msk [vmem:[%s301 + $0x38] sm:$0xff] %vm308, 0.0
        $region59: #{music_transformer_forward.79} parent=50 // pred_fallthru
          _
        %v317 = vld [vmem:[%s301] sm:$0xff]
        %v318 = vld [vmem:[%s301 + $0x8] sm:$0xff]
        %v319 = vld [vmem:[%s301 + $0x10] sm:$0xff]
        %v320 = vld [vmem:[%s301 + $0x18] sm:$0xff]
        %v321 = vld [vmem:[%s301 + $0x20] sm:$0xff]
        %v322 = vld [vmem:[%s301 + $0x28] sm:$0xff]
        %v323 = vld [vmem:[%s301 + $0x30] sm:$0xff]
        %v324 = vld [vmem:[%s301 + $0x38] sm:$0xff]
        %v325 = vld [vmem:[%s245] sm:$0xff]
        %v326 = vld [vmem:[%s245 + $0x8] sm:$0xff]
        %v327 = vld [vmem:[%s245 + $0x10] sm:$0xff]
        %v328 = vld [vmem:[%s245 + $0x18] sm:$0xff]
        %v329 = vld [vmem:[%s245 + $0x20] sm:$0xff]
        %v330 = vld [vmem:[%s245 + $0x28] sm:$0xff]
        %v331 = vld [vmem:[%s245 + $0x30] sm:$0xff]
        %v332 = vld [vmem:[%s245 + $0x38] sm:$0xff]
        %v333 = vld [vmem:[%s245 + $0x40] sm:$0xff]
        %v334 = vld [vmem:[%s245 + $0x48] sm:$0xff]
        %v335 = vld [vmem:[%s245 + $0x50] sm:$0xff]
        %v336 = vld [vmem:[%s245 + $0x58] sm:$0xff]
        %v337 = vld [vmem:[%s245 + $0x60] sm:$0xff]
        %v338 = vld [vmem:[%s245 + $0x68] sm:$0xff]
        %v339 = vld [vmem:[%s245 + $0x70] sm:$0xff]
        %v340 = vld [vmem:[%s245 + $0x78] sm:$0xff]
        %v341 = vld [vmem:[%s289] sm:$0xf]
        %v342 = vld [vmem:[%s289 + $0x4] sm:$0xf]
        %v343 = vld [vmem:[%s289 + $0x8] sm:$0xf]
        %v344 = vld [vmem:[%s289 + $0xc] sm:$0xf]
        %v345 = vld [vmem:[%s289 + $0x10] sm:$0xf]
        %v346 = vld [vmem:[%s289 + $0x14] sm:$0xf]
        %v347 = vld [vmem:[%s289 + $0x18] sm:$0xf]
        %v348 = vld [vmem:[%s289 + $0x1c] sm:$0xf]
        %v349 = vld [vmem:[%s289 + $0x20] sm:$0xf]
        %v350 = vld [vmem:[%s289 + $0x24] sm:$0xf]
        %v351 = vld [vmem:[%s289 + $0x28] sm:$0xf]
        %v352 = vld [vmem:[%s289 + $0x2c] sm:$0xf]
        %v353 = vld [vmem:[%s289 + $0x30] sm:$0xf]
        %v354 = vld [vmem:[%s289 + $0x34] sm:$0xf]
        %v355 = vld [vmem:[%s289 + $0x38] sm:$0xf]
        %v356 = vld [vmem:[%s289 + $0x3c] sm:$0xf]
        %v357 = vld [vmem:[%s289 + $0x40] sm:$0xf]
        %v358 = vld [vmem:[%s289 + $0x44] sm:$0xf]
        %v359 = vld [vmem:[%s289 + $0x48] sm:$0xf]
        %v360 = vld [vmem:[%s289 + $0x4c] sm:$0xf]
        %v361 = vld [vmem:[%s289 + $0x50] sm:$0xf]
        %v362 = vld [vmem:[%s289 + $0x54] sm:$0xf]
        %v363 = vld [vmem:[%s289 + $0x58] sm:$0xf]
        %v364 = vld [vmem:[%s289 + $0x5c] sm:$0xf]
        %v365 = vld [vmem:[%s289 + $0x60] sm:$0xf]
        %v366 = vld [vmem:[%s289 + $0x64] sm:$0xf]
        %v367 = vld [vmem:[%s289 + $0x68] sm:$0xf]
        %v368 = vld [vmem:[%s289 + $0x6c] sm:$0xf]
        %v369 = vld [vmem:[%s289 + $0x70] sm:$0xf]
        %v370 = vld [vmem:[%s289 + $0x74] sm:$0xf]
        %v371 = vld [vmem:[%s289 + $0x78] sm:$0xf]
        %v372 = vld [vmem:[%s289 + $0x7c] sm:$0xf]
        %v373 = vld [vmem:[%s289 + $0x80] sm:$0xf]
        %v374 = vld [vmem:[%s289 + $0x84] sm:$0xf]
        %v375 = vld [vmem:[%s289 + $0x88] sm:$0xf]
        %v376 = vld [vmem:[%s289 + $0x8c] sm:$0xf]
        %v377 = vld [vmem:[%s289 + $0x90] sm:$0xf]
        %v378 = vld [vmem:[%s289 + $0x94] sm:$0xf]
        %v379 = vld [vmem:[%s289 + $0x98] sm:$0xf]
        %v380 = vld [vmem:[%s289 + $0x9c] sm:$0xf]
        %v381 = vld [vmem:[%s289 + $0xa0] sm:$0xf]
        %v382 = vld [vmem:[%s289 + $0xa4] sm:$0xf]
        %v383 = vld [vmem:[%s289 + $0xa8] sm:$0xf]
        %v384 = vld [vmem:[%s289 + $0xac] sm:$0xf]
        %v385 = vld [vmem:[%s289 + $0xb0] sm:$0xf]
        %v386 = vld [vmem:[%s289 + $0xb4] sm:$0xf]
        %v387 = vld [vmem:[%s289 + $0xb8] sm:$0xf]
        %v388 = vld [vmem:[%s289 + $0xbc] sm:$0xf]
        %v389 = vld [vmem:[%s289 + $0xc0] sm:$0xf]
        %v390 = vld [vmem:[%s289 + $0xc4] sm:$0xf]
        %v391 = vld [vmem:[%s289 + $0xc8] sm:$0xf]
        %v392 = vld [vmem:[%s289 + $0xcc] sm:$0xf]
        %v393 = vld [vmem:[%s289 + $0xd0] sm:$0xf]
        %v394 = vld [vmem:[%s289 + $0xd4] sm:$0xf]
        %v395 = vld [vmem:[%s289 + $0xd8] sm:$0xf]
        %v396 = vld [vmem:[%s289 + $0xdc] sm:$0xf]
        %v397 = vld [vmem:[%s289 + $0xe0] sm:$0xf]
        %v398 = vld [vmem:[%s289 + $0xe4] sm:$0xf]
        %v399 = vld [vmem:[%s289 + $0xe8] sm:$0xf]
        %v400 = vld [vmem:[%s289 + $0xec] sm:$0xf]
        %v401 = vld [vmem:[%s289 + $0xf0] sm:$0xf]
        %v402 = vld [vmem:[%s289 + $0xf4] sm:$0xf]
        %v403 = vld [vmem:[%s289 + $0xf8] sm:$0xf]
        %v404 = vld [vmem:[%s289 + $0xfc] sm:$0xf]
        %v421 = vunpack.c.l.b16 %v325
        %v422 = vunpack.c.h.b16 %v325
        %v423 = vunpack.c.l.b16 %v326
        %v424 = vunpack.c.h.b16 %v326
        %v425 = vunpack.c.l.b16 %v327
        %v426 = vunpack.c.h.b16 %v327
        %v427 = vunpack.c.l.b16 %v328
        %v428 = vunpack.c.h.b16 %v328
        %v429 = vunpack.c.l.b16 %v329
        %v430 = vunpack.c.h.b16 %v329
        %v431 = vunpack.c.l.b16 %v330
        %v432 = vunpack.c.h.b16 %v330
        %v433 = vunpack.c.l.b16 %v331
        %v434 = vunpack.c.h.b16 %v331
        %v435 = vunpack.c.l.b16 %v332
        %v436 = vunpack.c.h.b16 %v332
        %v437 = vunpack.c.l.b16 %v333
        %v438 = vunpack.c.h.b16 %v333
        %v439 = vunpack.c.l.b16 %v334
        %v440 = vunpack.c.h.b16 %v334
        %v441 = vunpack.c.l.b16 %v335
        %v442 = vunpack.c.h.b16 %v335
        %v443 = vunpack.c.l.b16 %v336
        %v444 = vunpack.c.h.b16 %v336
        %v445 = vunpack.c.l.b16 %v337
        %v446 = vunpack.c.h.b16 %v337
        %v447 = vunpack.c.l.b16 %v338
        %v448 = vunpack.c.h.b16 %v338
        %v449 = vunpack.c.l.b16 %v339
        %v450 = vunpack.c.h.b16 %v339
        %v451 = vunpack.c.l.b16 %v340
        %v452 = vunpack.c.h.b16 %v340
        %v453 = vpack.c.b16 %v425, %v421
        %v454 = vpack.c.b16 %v426, %v422
        %v455 = vpack.c.b16 %v427, %v423
        %v456 = vpack.c.b16 %v428, %v424
        %v457 = vpack.c.b16 %v433, %v429
        %v458 = vpack.c.b16 %v434, %v430
        %v459 = vpack.c.b16 %v435, %v431
        %v460 = vpack.c.b16 %v436, %v432
        %v461 = vpack.c.b16 %v441, %v437
        %v462 = vpack.c.b16 %v442, %v438
        %v463 = vpack.c.b16 %v443, %v439
        %v464 = vpack.c.b16 %v444, %v440
        %v465 = vpack.c.b16 %v449, %v445
        %v466 = vpack.c.b16 %v450, %v446
        %v467 = vpack.c.b16 %v451, %v447
        %v468 = vpack.c.b16 %v452, %v448
        %v549 = vunpack.c.l.b16 %v341
        %v550 = vunpack.c.l.b16 %v342
        %v551 = vunpack.c.l.b16 %v343
        %v552 = vunpack.c.l.b16 %v344
        %v553 = vunpack.c.l.b16 %v345
        %v554 = vunpack.c.l.b16 %v346
        %v555 = vunpack.c.l.b16 %v347
        %v556 = vunpack.c.l.b16 %v348
        %v557 = vunpack.c.l.b16 %v349
        %v558 = vunpack.c.l.b16 %v350
        %v559 = vunpack.c.l.b16 %v351
        %v560 = vunpack.c.l.b16 %v352
        %v561 = vunpack.c.l.b16 %v353
        %v562 = vunpack.c.l.b16 %v354
        %v563 = vunpack.c.l.b16 %v355
        %v564 = vunpack.c.l.b16 %v356
        %v565 = vunpack.c.l.b16 %v357
        %v566 = vunpack.c.l.b16 %v358
        %v567 = vunpack.c.l.b16 %v359
        %v568 = vunpack.c.l.b16 %v360
        %v569 = vunpack.c.l.b16 %v361
        %v570 = vunpack.c.l.b16 %v362
        %v571 = vunpack.c.l.b16 %v363
        %v572 = vunpack.c.l.b16 %v364
        %v573 = vunpack.c.l.b16 %v365
        %v574 = vunpack.c.l.b16 %v366
        %v575 = vunpack.c.l.b16 %v367
        %v576 = vunpack.c.l.b16 %v368
        %v577 = vunpack.c.l.b16 %v369
        %v578 = vunpack.c.l.b16 %v370
        %v579 = vunpack.c.l.b16 %v371
        %v580 = vunpack.c.l.b16 %v372
        %v581 = vunpack.c.l.b16 %v373
        %v582 = vunpack.c.l.b16 %v374
        %v583 = vunpack.c.l.b16 %v375
        %v584 = vunpack.c.l.b16 %v376
        %v585 = vunpack.c.l.b16 %v377
        %v586 = vunpack.c.l.b16 %v378
        %v587 = vunpack.c.l.b16 %v379
        %v588 = vunpack.c.l.b16 %v380
        %v589 = vunpack.c.l.b16 %v381
        %v590 = vunpack.c.l.b16 %v382
        %v591 = vunpack.c.l.b16 %v383
        %v592 = vunpack.c.l.b16 %v384
        %v593 = vunpack.c.l.b16 %v385
        %v594 = vunpack.c.l.b16 %v386
        %v595 = vunpack.c.l.b16 %v387
        %v596 = vunpack.c.l.b16 %v388
        %v597 = vunpack.c.l.b16 %v389
        %v598 = vunpack.c.l.b16 %v390
        %v599 = vunpack.c.l.b16 %v391
        %v600 = vunpack.c.l.b16 %v392
        %v601 = vunpack.c.l.b16 %v393
        %v602 = vunpack.c.l.b16 %v394
        %v603 = vunpack.c.l.b16 %v395
        %v604 = vunpack.c.l.b16 %v396
        %v605 = vunpack.c.l.b16 %v397
        %v606 = vunpack.c.l.b16 %v398
        %v607 = vunpack.c.l.b16 %v399
        %v608 = vunpack.c.l.b16 %v400
        %v609 = vunpack.c.l.b16 %v401
        %v610 = vunpack.c.l.b16 %v402
        %v611 = vunpack.c.l.b16 %v403
        %v612 = vunpack.c.l.b16 %v404
        %v613 = vpack.c.b16 %v550, %v549
        %v614 = vpack.c.b16 %v552, %v551
        %v615 = vpack.c.b16 %v554, %v553
        %v616 = vpack.c.b16 %v556, %v555
        %v617 = vpack.c.b16 %v558, %v557
        %v618 = vpack.c.b16 %v560, %v559
        %v619 = vpack.c.b16 %v562, %v561
        %v620 = vpack.c.b16 %v564, %v563
        %v621 = vpack.c.b16 %v566, %v565
        %v622 = vpack.c.b16 %v568, %v567
        %v623 = vpack.c.b16 %v570, %v569
        %v624 = vpack.c.b16 %v572, %v571
        %v625 = vpack.c.b16 %v574, %v573
        %v626 = vpack.c.b16 %v576, %v575
        %v627 = vpack.c.b16 %v578, %v577
        %v628 = vpack.c.b16 %v580, %v579
        %v629 = vpack.c.b16 %v582, %v581
        %v630 = vpack.c.b16 %v584, %v583
        %v631 = vpack.c.b16 %v586, %v585
        %v632 = vpack.c.b16 %v588, %v587
        %v633 = vpack.c.b16 %v590, %v589
        %v634 = vpack.c.b16 %v592, %v591
        %v635 = vpack.c.b16 %v594, %v593
        %v636 = vpack.c.b16 %v596, %v595
        %v637 = vpack.c.b16 %v598, %v597
        %v638 = vpack.c.b16 %v600, %v599
        %v639 = vpack.c.b16 %v602, %v601
        %v640 = vpack.c.b16 %v604, %v603
        %v641 = vpack.c.b16 %v606, %v605
        %v642 = vpack.c.b16 %v608, %v607
        %v643 = vpack.c.b16 %v610, %v609
        %v644 = vpack.c.b16 %v612, %v611
        %677 = vmatprep.subr.bf16.mxu0 0
        %678 = vmatpush1.bf16.msra.mxu0 %v613
        %679 = vmatprep.subr.bf16.mxu0 0
        %680 = vmatpush1.bf16.msra.mxu0 %v614
        %681 = vmatprep.subr.bf16.mxu0 0
        %682 = vmatpush1.bf16.msra.mxu0 %v615
        %683 = vmatprep.subr.bf16.mxu0 0
        %684 = vmatpush1.bf16.msra.mxu0 %v616
        %685 = vmatprep.subr.bf16.mxu0 0
        %686 = vmatpush1.bf16.msra.mxu0 %v617
        %687 = vmatprep.subr.bf16.mxu0 0
        %688 = vmatpush1.bf16.msra.mxu0 %v618
        %689 = vmatprep.subr.bf16.mxu0 0
        %690 = vmatpush1.bf16.msra.mxu0 %v619
        %691 = vmatprep.subr.bf16.mxu0 0
        %692 = vmatpush1.bf16.msra.mxu0 %v620
        %693 = vmatprep.subr.bf16.mxu0 0
        %694 = vmatpush1.bf16.msra.mxu0 %v621
        %695 = vmatprep.subr.bf16.mxu0 0
        %696 = vmatpush1.bf16.msra.mxu0 %v622
        %697 = vmatprep.subr.bf16.mxu0 0
        %698 = vmatpush1.bf16.msra.mxu0 %v623
        %699 = vmatprep.subr.bf16.mxu0 0
        %700 = vmatpush1.bf16.msra.mxu0 %v624
        %701 = vmatprep.subr.bf16.mxu0 0
        %702 = vmatpush1.bf16.msra.mxu0 %v625
        %703 = vmatprep.subr.bf16.mxu0 0
        %704 = vmatpush1.bf16.msra.mxu0 %v626
        %705 = vmatprep.subr.bf16.mxu0 0
        %706 = vmatpush1.bf16.msra.mxu0 %v627
        %707 = vmatprep.subr.bf16.mxu0 0
        %708 = vmatpush1.bf16.msra.mxu0 %v628
        %709 = vmatprep.mubr.bf16.mxu0 %v454
        %710 = vmatmul.mubr.bf16.gmra.mrb[0].mxu0 %v453
        %v711 = vpop.f32.mrb[0].mxu0
        %v712 = vadd.f32 0.0, %v711
        %v713 = vpop.f32.mrb[0].mxu0
        %v714 = vpop.f32.mrb[0].mxu0
        %v715 = vadd.f32 0.0, %v714
        %v716 = vpop.f32.mrb[0].mxu0
        %717 = vmatprep.mubr.bf16.mxu0 %v458
        %718 = vmatmul.mubr.bf16.gmra.mrb[0].mxu0 %v457
        %v719 = vpop.f32.mrb[0].mxu0
        %v720 = vadd.f32 0.0, %v719
        %v721 = vpop.f32.mrb[0].mxu0
        %v722 = vpop.f32.mrb[0].mxu0
        %v723 = vadd.f32 0.0, %v722
        %v724 = vpop.f32.mrb[0].mxu0
        %725 = vmatprep.mubr.bf16.mxu0 %v462
        %726 = vmatmul.mubr.bf16.gmra.mrb[0].mxu0 %v461
        %v727 = vpop.f32.mrb[0].mxu0
        %v728 = vadd.f32 0.0, %v727
        %v729 = vpop.f32.mrb[0].mxu0
        %v730 = vpop.f32.mrb[0].mxu0
        %v731 = vadd.f32 0.0, %v730
        %v732 = vpop.f32.mrb[0].mxu0
        %733 = vmatprep.mubr.bf16.mxu0 %v466
        %734 = vmatmul.mubr.bf16.gmra.mrb[0].mxu0 %v465
        %v735 = vpop.f32.mrb[0].mxu0
        %v736 = vadd.f32 0.0, %v735
        %v737 = vpop.f32.mrb[0].mxu0
        %v738 = vpop.f32.mrb[0].mxu0
        %v739 = vadd.f32 0.0, %v738
        %v740 = vpop.f32.mrb[0].mxu0
        %741 = vdwg.mxu0
        %742 = vmatprep.subr.bf16.mxu0 0
        %743 = vmatpush1.bf16.msra.mxu0 %v629
        %744 = vmatprep.subr.bf16.mxu0 0
        %745 = vmatpush1.bf16.msra.mxu0 %v630
        %746 = vmatprep.subr.bf16.mxu0 0
        %747 = vmatpush1.bf16.msra.mxu0 %v631
        %748 = vmatprep.subr.bf16.mxu0 0
        %749 = vmatpush1.bf16.msra.mxu0 %v632
        %750 = vmatprep.subr.bf16.mxu0 0
        %751 = vmatpush1.bf16.msra.mxu0 %v633
        %752 = vmatprep.subr.bf16.mxu0 0
        %753 = vmatpush1.bf16.msra.mxu0 %v634
        %754 = vmatprep.subr.bf16.mxu0 0
        %755 = vmatpush1.bf16.msra.mxu0 %v635
        %756 = vmatprep.subr.bf16.mxu0 0
        %757 = vmatpush1.bf16.msra.mxu0 %v636
        %758 = vmatprep.subr.bf16.mxu0 0
        %759 = vmatpush1.bf16.msra.mxu0 %v637
        %760 = vmatprep.subr.bf16.mxu0 0
        %761 = vmatpush1.bf16.msra.mxu0 %v638
        %762 = vmatprep.subr.bf16.mxu0 0
        %763 = vmatpush1.bf16.msra.mxu0 %v639
        %764 = vmatprep.subr.bf16.mxu0 0
        %765 = vmatpush1.bf16.msra.mxu0 %v640
        %766 = vmatprep.subr.bf16.mxu0 0
        %767 = vmatpush1.bf16.msra.mxu0 %v641
        %768 = vmatprep.subr.bf16.mxu0 0
        %769 = vmatpush1.bf16.msra.mxu0 %v642
        %770 = vmatprep.subr.bf16.mxu0 0
        %771 = vmatpush1.bf16.msra.mxu0 %v643
        %772 = vmatprep.subr.bf16.mxu0 0
        %773 = vmatpush1.bf16.msra.mxu0 %v644
        %774 = vmatprep.mubr.bf16.mxu0 %v456
        %775 = vmatmul.mubr.bf16.gmra.mrb[0].mxu0 %v455
        %v776 = vpop.f32.mrb[0].mxu0
        %v777 = vadd.f32 %v712, %v776
        %v778 = vpop.f32.mrb[0].mxu0
        %v779 = vpop.f32.mrb[0].mxu0
        %v780 = vadd.f32 %v715, %v779
        %v781 = vpop.f32.mrb[0].mxu0
        %782 = vmatprep.mubr.bf16.mxu0 %v460
        %783 = vmatmul.mubr.bf16.gmra.mrb[0].mxu0 %v459
        %v784 = vpop.f32.mrb[0].mxu0
        %v785 = vadd.f32 %v720, %v784
        %v786 = vpop.f32.mrb[0].mxu0
        %v787 = vpop.f32.mrb[0].mxu0
        %v788 = vadd.f32 %v723, %v787
        %v789 = vpop.f32.mrb[0].mxu0
        %790 = vmatprep.mubr.bf16.mxu0 %v464
        %791 = vmatmul.mubr.bf16.gmra.mrb[0].mxu0 %v463
        %v792 = vpop.f32.mrb[0].mxu0
        %v793 = vadd.f32 %v728, %v792
        %v794 = vpop.f32.mrb[0].mxu0
        %v795 = vpop.f32.mrb[0].mxu0
        %v796 = vadd.f32 %v731, %v795
        %v797 = vpop.f32.mrb[0].mxu0
        %798 = vmatprep.mubr.bf16.mxu0 %v468
        %799 = vmatmul.mubr.bf16.gmra.mrb[0].mxu0 %v467
        %v800 = vpop.f32.mrb[0].mxu0
        %v801 = vadd.f32 %v736, %v800
        %v802 = vpop.f32.mrb[0].mxu0
        %v803 = vpop.f32.mrb[0].mxu0
        %v804 = vadd.f32 %v739, %v803
        %v805 = vpop.f32.mrb[0].mxu0
        %806 = vdwg.mxu0
        %v807 = vadd.f32 %v317, %v777
        %v808 = vadd.f32 %v318, %v780
        %v809 = vadd.f32 %v319, %v785
        %v810 = vadd.f32 %v320, %v788
        %v811 = vadd.f32 %v321, %v793
        %v812 = vadd.f32 %v322, %v796
        %v813 = vadd.f32 %v323, %v801
        %v814 = vadd.f32 %v324, %v804
        %vm815 = vcmask 261120
        %816 = vst.msk [vmem:[%s301] sm:$0xff] %vm815, %v807
        %817 = vst.msk [vmem:[%s301 + $0x8] sm:$0xff] %vm815, %v808
        %818 = vst.msk [vmem:[%s301 + $0x10] sm:$0xff] %vm815, %v809
        %819 = vst.msk [vmem:[%s301 + $0x18] sm:$0xff] %vm815, %v810
        %820 = vst.msk [vmem:[%s301 + $0x20] sm:$0xff] %vm815, %v811
        %821 = vst.msk [vmem:[%s301 + $0x28] sm:$0xff] %vm815, %v812
        %822 = vst.msk [vmem:[%s301 + $0x30] sm:$0xff] %vm815, %v813
        %823 = vst.msk [vmem:[%s301 + $0x38] sm:$0xff] %vm815, %v814
        %p824 = scmp.eq.s32.totalorder %s21, 3
        // Predicated region
        $region60: #{music_transformer_forward.79} parent=50 // pred_check
          %p825 = pneg %p824
        $region61: #{music_transformer_forward.79} parent=50 // pred_check_branch
          %827 = sbr.rel (%p825) target = $region63
        $region62: #{music_transformer_forward.79} parent=50 // pred_region
          %v828 = vld [vmem:[%s301] sm:$0xff]
          %v829 = vld [vmem:[%s301 + $0x8] sm:$0xff]
          %v830 = vld [vmem:[%s301 + $0x10] sm:$0xff]
          %v831 = vld [vmem:[%s301 + $0x18] sm:$0xff]
          %v832 = vld [vmem:[%s301 + $0x20] sm:$0xff]
          %v833 = vld [vmem:[%s301 + $0x28] sm:$0xff]
          %v834 = vld [vmem:[%s301 + $0x30] sm:$0xff]
          %v835 = vld [vmem:[%s301 + $0x38] sm:$0xff]
          %v836 = vld [vmem:[%s293] sm:$0x1]
          %v838 = vlaneseq
          %v839 = vshrl.u32 %v838, 7
          %v840 = vsub.s32 0, %v839
          %v841 = vrot.slane %v836, %v840
          %v843 = vadd.f32 %v828, %v841
          %v844 = vadd.f32 %v829, %v841
          %v845 = vadd.f32 %v830, %v841
          %v846 = vadd.f32 %v831, %v841
          %v847 = vadd.f32 %v832, %v841
          %v848 = vadd.f32 %v833, %v841
          %v849 = vadd.f32 %v834, %v841
          %v850 = vadd.f32 %v835, %v841
          %851 = vst.msk [vmem:[%s301] sm:$0xff] %vm815, %v843
          %852 = vst.msk [vmem:[%s301 + $0x8] sm:$0xff] %vm815, %v844
          %853 = vst.msk [vmem:[%s301 + $0x10] sm:$0xff] %vm815, %v845
          %854 = vst.msk [vmem:[%s301 + $0x18] sm:$0xff] %vm815, %v846
          %855 = vst.msk [vmem:[%s301 + $0x20] sm:$0xff] %vm815, %v847
          %856 = vst.msk [vmem:[%s301 + $0x28] sm:$0xff] %vm815, %v848
          %857 = vst.msk [vmem:[%s301 + $0x30] sm:$0xff] %vm815, %v849
          %858 = vst.msk [vmem:[%s301 + $0x38] sm:$0xff] %vm815, %v850
        $region63: #{music_transformer_forward.79} parent=50 // pred_fallthru
          _
        %s859 = smul.u32 8, %s19
        %p860 = scmp.lt.s32.totalorder %s859, 7
        %s861 = scalar_select %p860, %s859, 7
        %p862 = scmp.lt.s32.totalorder %s20, 0
        %s863 = scalar_select %p862, %s20, 0
        %s864 = sadd.s32 %s863, %s861
        %s865 = smul.addr %s864, 8
        %s866 = scalar_lea.vmem %s3, %s865
        // Predicated region
        $region64: #{music_transformer_forward.79} parent=50 // pred_check
          %p867 = pneg %p135
        $region65: #{music_transformer_forward.79} parent=50 // pred_check_branch
          %869 = sbr.rel (%p867) target = $region67
        $region66: #{music_transformer_forward.79} parent=50 // pred_region
          %s870 = smul.u32 8, %s19
        $region67: #{music_transformer_forward.79} parent=50 // pred_fallthru
          _
        // Predicated region
        $region68: #{music_transformer_forward.79} parent=50 // pred_check
          %p871 = pneg %p135
        $region69: #{music_transformer_forward.79} parent=50 // pred_check_branch
          %873 = sbr.rel (%p871) target = $region71
        $region70: #{music_transformer_forward.79} parent=50 // pred_region
          %s874 = smul.u32 8, %s19
          %p875 = scmp.lt.s32.totalorder %s874, 7
          %s876 = scalar_select %p875, %s874, 7
          %p877 = scmp.lt.s32.totalorder %s20, 0
          %s878 = scalar_select %p877, %s20, 0
          %s879 = sadd.s32 %s878, %s876
          %s880 = smul.addr %s879, 8
          %s881 = scalar_lea.vmem %s3, %s880
        $region71: #{music_transformer_forward.79} parent=50 // pred_fallthru
          _
      $region51: #{music_transformer_forward.79} parent=5 // pred_fallthru
        _
      %p882 = scmp.le.s32.totalorder 2, %s9
      // Predicated region
      $region72: #{music_transformer_forward.79} parent=5 // pred_check
        %p883 = pneg %p882
      $region73: #{music_transformer_forward.79} parent=5 // pred_check_branch
        %885 = sbr.rel (%p883) target = $region75
      $region74: #{music_transformer_forward.79} parent=5 // pred_region
        %s886 = ssub.s32 %s9, 2
      $region75: #{music_transformer_forward.79} parent=5 // pred_fallthru
        _
    $region6: #{music_transformer_forward.79} parent=1 // loop_footer
      %s13 = sadd.s32 1, %s9
    $region7: #{music_transformer_forward.79} parent=1 // loop_footer_branch
      %8 = sbr.rel target = $region3
    $region8: #{music_transformer_forward.79} parent=1 // loop_exit
      _

// kernel: music_transformer_forward.91
$region0: #{music_transformer_forward.91}
  #allocation0 [shape = 'u32[]', space=smem, size = 0x4, offset = 0x4, fixed_abs, tag = 'smem constant byte address 0x4 - core index']
  #allocation1 [shape = 'u32[144,128]{1,0:T(1,128)}', space=vmem, size = 0x12000, scoped, tag = 'internal scratch']
  %s0 = inlined_call_operand.vmem [shape: bf16[64,32], index: 0, kind: input, shape index: {}]
  %s1 = inlined_call_operand.vmem [shape: bf16[32,32], index: 1, kind: input, shape index: {}]
  %s2 = inlined_call_operand.vmem [shape: f32[1,32], index: 2, kind: input, shape index: {}]
  %s3 = inlined_call_operand.vmem [shape: f32[64,32], index: 3, kind: output, shape index: {}]
  %s4 = sld [smem:[#allocation0]]
  $region30: #{music_transformer_forward.91} parent=0
    _
  %s6 = ssub.s32 1, %s4
  %s7 = scalar_select 0, %s6, %s4
  // Predicated region
  $region2: #{music_transformer_forward.91} parent=0 // pred_check
    _
  $region3: #{music_transformer_forward.91} parent=0 // pred_check_branch
    %9 = sbr.rel (0) target = $region5
  $region4: #{music_transformer_forward.91} parent=0 // pred_region
    _
  $region5: #{music_transformer_forward.91} parent=0 // pred_fallthru
    _
  // Predicated region
  $region6: #{music_transformer_forward.91} parent=0 // pred_check
    _
  $region7: #{music_transformer_forward.91} parent=0 // pred_check_branch
    %11 = sbr.rel (0) target = $region9
  $region8: #{music_transformer_forward.91} parent=0 // pred_region
    _
  $region9: #{music_transformer_forward.91} parent=0 // pred_fallthru
    _
  // Predicated region
  $region10: #{music_transformer_forward.91} parent=0 // pred_check
    _
  $region11: #{music_transformer_forward.91} parent=0 // pred_check_branch
    %13 = sbr.rel (0) target = $region13
  $region12: #{music_transformer_forward.91} parent=0 // pred_region
    _
  $region13: #{music_transformer_forward.91} parent=0 // pred_fallthru
    _
  %p15 = scmp.eq.s32.totalorder 0, 0
  // Predicated region
  $region14: #{music_transformer_forward.91} parent=0 // pred_check
    %p16 = pneg %p15
  $region15: #{music_transformer_forward.91} parent=0 // pred_check_branch
    %18 = sbr.rel (%p16) target = $region17
  $region16: #{music_transformer_forward.91} parent=0 // pred_region
    %vm19 = vcmask 261120
    %20 = vst.msk [vmem:[%s3] sm:$0xff] %vm19, 0.0
    %21 = vst.msk [vmem:[%s3 + $0x8] sm:$0xff] %vm19, 0.0
    %22 = vst.msk [vmem:[%s3 + $0x10] sm:$0xff] %vm19, 0.0
    %23 = vst.msk [vmem:[%s3 + $0x18] sm:$0xff] %vm19, 0.0
    %24 = vst.msk [vmem:[%s3 + $0x20] sm:$0xff] %vm19, 0.0
    %25 = vst.msk [vmem:[%s3 + $0x28] sm:$0xff] %vm19, 0.0
    %26 = vst.msk [vmem:[%s3 + $0x30] sm:$0xff] %vm19, 0.0
    %27 = vst.msk [vmem:[%s3 + $0x38] sm:$0xff] %vm19, 0.0
  $region17: #{music_transformer_forward.91} parent=0 // pred_fallthru
    _
  %v28 = vld [vmem:[%s3] sm:$0xff]
  %v29 = vld [vmem:[%s3 + $0x8] sm:$0xff]
  %v30 = vld [vmem:[%s3 + $0x10] sm:$0xff]
  %v31 = vld [vmem:[%s3 + $0x18] sm:$0xff]
  %v32 = vld [vmem:[%s3 + $0x20] sm:$0xff]
  %v33 = vld [vmem:[%s3 + $0x28] sm:$0xff]
  %v34 = vld [vmem:[%s3 + $0x30] sm:$0xff]
  %v35 = vld [vmem:[%s3 + $0x38] sm:$0xff]
  %v36 = vld [vmem:[%s0] sm:$0xf]
  %v37 = vld [vmem:[%s0 + $0x4] sm:$0xf]
  %v38 = vld [vmem:[%s0 + $0x8] sm:$0xf]
  %v39 = vld [vmem:[%s0 + $0xc] sm:$0xf]
  %v40 = vld [vmem:[%s0 + $0x10] sm:$0xf]
  %v41 = vld [vmem:[%s0 + $0x14] sm:$0xf]
  %v42 = vld [vmem:[%s0 + $0x18] sm:$0xf]
  %v43 = vld [vmem:[%s0 + $0x1c] sm:$0xf]
  %v44 = vld [vmem:[%s1] sm:$0xf]
  %v45 = vld [vmem:[%s1 + $0x4] sm:$0xf]
  %v46 = vld [vmem:[%s1 + $0x8] sm:$0xf]
  %v47 = vld [vmem:[%s1 + $0xc] sm:$0xf]
  %v56 = vunpack.c.l.b16 %v36
  %v57 = vunpack.c.l.b16 %v37
  %v58 = vunpack.c.l.b16 %v38
  %v59 = vunpack.c.l.b16 %v39
  %v60 = vunpack.c.l.b16 %v40
  %v61 = vunpack.c.l.b16 %v41
  %v62 = vunpack.c.l.b16 %v42
  %v63 = vunpack.c.l.b16 %v43
  %v64 = vpack.c.b16 %v57, %v56
  %v65 = vpack.c.b16 %v59, %v58
  %v66 = vpack.c.b16 %v61, %v60
  %v67 = vpack.c.b16 %v63, %v62
  %v72 = vunpack.c.l.b16 %v44
  %v73 = vunpack.c.l.b16 %v45
  %v74 = vunpack.c.l.b16 %v46
  %v75 = vunpack.c.l.b16 %v47
  %v76 = vpack.c.b16 %v73, %v72
  %v77 = vpack.c.b16 %v75, %v74
  %vm80 = vcmask 261120
  %v82 = vsel %vm80, %v64, 0
  %v85 = vsel %vm80, %v65, 0
  %v88 = vsel %vm80, %v66, 0
  %v91 = vsel %vm80, %v67, 0
  %93 = vmatprep.subr.bf16.mxu0 0
  %94 = vmatpush1.bf16.msra.mxu0 %v76
  %95 = vmatprep.subr.bf16.mxu0 0
  %96 = vmatpush1.bf16.msra.mxu0 %v77
  %97 = vmatprep.subr.bf16.mxu0 0
  %98 = vmatpush1.bf16.msra.mxu0 0
  %99 = vmatprep.subr.bf16.mxu0 0
  %100 = vmatpush1.bf16.msra.mxu0 0
  %101 = vmatprep.subr.bf16.mxu0 0
  %102 = vmatpush1.bf16.msra.mxu0 0
  %103 = vmatprep.subr.bf16.mxu0 0
  %104 = vmatpush1.bf16.msra.mxu0 0
  %105 = vmatprep.subr.bf16.mxu0 0
  %106 = vmatpush1.bf16.msra.mxu0 0
  %107 = vmatprep.subr.bf16.mxu0 0
  %108 = vmatpush1.bf16.msra.mxu0 0
  %109 = vmatprep.subr.bf16.mxu0 0
  %110 = vmatpush1.bf16.msra.mxu0 0
  %111 = vmatprep.subr.bf16.mxu0 0
  %112 = vmatpush1.bf16.msra.mxu0 0
  %113 = vmatprep.subr.bf16.mxu0 0
  %114 = vmatpush1.bf16.msra.mxu0 0
  %115 = vmatprep.subr.bf16.mxu0 0
  %116 = vmatpush1.bf16.msra.mxu0 0
  %117 = vmatprep.subr.bf16.mxu0 0
  %118 = vmatpush1.bf16.msra.mxu0 0
  %119 = vmatprep.subr.bf16.mxu0 0
  %120 = vmatpush1.bf16.msra.mxu0 0
  %121 = vmatprep.subr.bf16.mxu0 0
  %122 = vmatpush1.bf16.msra.mxu0 0
  %123 = vmatprep.subr.bf16.mxu0 0
  %124 = vmatpush1.bf16.msra.mxu0 0
  %125 = vmatprep.mubr.bf16.mxu0 0
  %126 = vmatmul.mubr.bf16.gmra.mrb[0].mxu0 %v82
  %v127 = vpop.f32.mrb[0].mxu0
  %v128 = vadd.f32 0.0, %v127
  %v129 = vpop.f32.mrb[0].mxu0
  %v130 = vpop.f32.mrb[0].mxu0
  %v131 = vadd.f32 0.0, %v130
  %v132 = vpop.f32.mrb[0].mxu0
  %133 = vmatprep.mubr.bf16.mxu0 0
  %134 = vmatmul.mubr.bf16.gmra.mrb[0].mxu0 %v85
  %v135 = vpop.f32.mrb[0].mxu0
  %v136 = vadd.f32 0.0, %v135
  %v137 = vpop.f32.mrb[0].mxu0
  %v138 = vpop.f32.mrb[0].mxu0
  %v139 = vadd.f32 0.0, %v138
  %v140 = vpop.f32.mrb[0].mxu0
  %141 = vmatprep.mubr.bf16.mxu0 0
  %142 = vmatmul.mubr.bf16.gmra.mrb[0].mxu0 %v88
  %v143 = vpop.f32.mrb[0].mxu0
  %v144 = vadd.f32 0.0, %v143
  %v145 = vpop.f32.mrb[0].mxu0
  %v146 = vpop.f32.mrb[0].mxu0
  %v147 = vadd.f32 0.0, %v146
  %v148 = vpop.f32.mrb[0].mxu0
  %149 = vmatprep.mubr.bf16.mxu0 0
  %150 = vmatmul.mubr.bf16.gmra.mrb[0].mxu0 %v91
  %v151 = vpop.f32.mrb[0].mxu0
  %v152 = vadd.f32 0.0, %v151
  %v153 = vpop.f32.mrb[0].mxu0
  %v154 = vpop.f32.mrb[0].mxu0
  %v155 = vadd.f32 0.0, %v154
  %v156 = vpop.f32.mrb[0].mxu0
  %157 = vdwg.mxu0
  %v158 = vadd.f32 %v28, %v128
  %v159 = vadd.f32 %v29, %v131
  %v160 = vadd.f32 %v30, %v136
  %v161 = vadd.f32 %v31, %v139
  %v162 = vadd.f32 %v32, %v144
  %v163 = vadd.f32 %v33, %v147
  %v164 = vadd.f32 %v34, %v152
  %v165 = vadd.f32 %v35, %v155
  %166 = vst.msk [vmem:[%s3] sm:$0xff] %vm80, %v158
  %167 = vst.msk [vmem:[%s3 + $0x8] sm:$0xff] %vm80, %v159
  %168 = vst.msk [vmem:[%s3 + $0x10] sm:$0xff] %vm80, %v160
  %169 = vst.msk [vmem:[%s3 + $0x18] sm:$0xff] %vm80, %v161
  %170 = vst.msk [vmem:[%s3 + $0x20] sm:$0xff] %vm80, %v162
  %171 = vst.msk [vmem:[%s3 + $0x28] sm:$0xff] %vm80, %v163
  %172 = vst.msk [vmem:[%s3 + $0x30] sm:$0xff] %vm80, %v164
  %173 = vst.msk [vmem:[%s3 + $0x38] sm:$0xff] %vm80, %v165
  // Predicated region
  $region18: #{music_transformer_forward.91} parent=0 // pred_check
    %p174 = pneg %p15
  $region19: #{music_transformer_forward.91} parent=0 // pred_check_branch
    %176 = sbr.rel (%p174) target = $region21
  $region20: #{music_transformer_forward.91} parent=0 // pred_region
    %v177 = vld [vmem:[%s3] sm:$0xff]
    %v178 = vld [vmem:[%s3 + $0x8] sm:$0xff]
    %v179 = vld [vmem:[%s3 + $0x10] sm:$0xff]
    %v180 = vld [vmem:[%s3 + $0x18] sm:$0xff]
    %v181 = vld [vmem:[%s3 + $0x20] sm:$0xff]
    %v182 = vld [vmem:[%s3 + $0x28] sm:$0xff]
    %v183 = vld [vmem:[%s3 + $0x30] sm:$0xff]
    %v184 = vld [vmem:[%s3 + $0x38] sm:$0xff]
    %v185 = vld [vmem:[%s2] sm:$0x1]
    %v187 = vlaneseq
    %v188 = vshrl.u32 %v187, 7
    %v189 = vsub.s32 0, %v188
    %v190 = vrot.slane %v185, %v189
    %v192 = vadd.f32 %v177, %v190
    %v193 = vadd.f32 %v178, %v190
    %v194 = vadd.f32 %v179, %v190
    %v195 = vadd.f32 %v180, %v190
    %v196 = vadd.f32 %v181, %v190
    %v197 = vadd.f32 %v182, %v190
    %v198 = vadd.f32 %v183, %v190
    %v199 = vadd.f32 %v184, %v190
    %200 = vst.msk [vmem:[%s3] sm:$0xff] %vm80, %v192
    %201 = vst.msk [vmem:[%s3 + $0x8] sm:$0xff] %vm80, %v193
    %202 = vst.msk [vmem:[%s3 + $0x10] sm:$0xff] %vm80, %v194
    %203 = vst.msk [vmem:[%s3 + $0x18] sm:$0xff] %vm80, %v195
    %204 = vst.msk [vmem:[%s3 + $0x20] sm:$0xff] %vm80, %v196
    %205 = vst.msk [vmem:[%s3 + $0x28] sm:$0xff] %vm80, %v197
    %206 = vst.msk [vmem:[%s3 + $0x30] sm:$0xff] %vm80, %v198
    %207 = vst.msk [vmem:[%s3 + $0x38] sm:$0xff] %vm80, %v199
  $region21: #{music_transformer_forward.91} parent=0 // pred_fallthru
    _
  // Predicated region
  $region22: #{music_transformer_forward.91} parent=0 // pred_check
    _
  $region23: #{music_transformer_forward.91} parent=0 // pred_check_branch
    %209 = sbr.rel (0) target = $region25
  $region24: #{music_transformer_forward.91} parent=0 // pred_region
    _
  $region25: #{music_transformer_forward.91} parent=0 // pred_fallthru
    _
  // Predicated region
  $region26: #{music_transformer_forward.91} parent=0 // pred_check
    _
  $region27: #{music_transformer_forward.91} parent=0 // pred_check_branch
    %211 = sbr.rel (0) target = $region29
  $region28: #{music_transformer_forward.91} parent=0 // pred_region
    _
  $region29: #{music_transformer_forward.91} parent=0 // pred_fallthru
    _

// kernel: music_transformer_forward.149
$region0: #{music_transformer_forward.149}
  #allocation0 [shape = 'u32[]', space=smem, size = 0x4, offset = 0x4, fixed_abs, tag = 'smem constant byte address 0x4 - core index']
  #allocation1 [shape = 'u32[144,128]{1,0:T(1,128)}', space=vmem, size = 0x12000, scoped, tag = 'internal scratch']
  %s0 = inlined_call_operand.vmem [shape: bf16[64,32], index: 0, kind: input, shape index: {}]
  %s1 = inlined_call_operand.vmem [shape: bf16[32,32], index: 1, kind: input, shape index: {}]
  %s2 = inlined_call_operand.vmem [shape: f32[1,32], index: 2, kind: input, shape index: {}]
  %s3 = inlined_call_operand.hbm [shape: f32[64,32], index: 3, kind: output, shape index: {}]
  %s4 = sld [smem:[#allocation0]]
  $region30: #{music_transformer_forward.149} parent=0
    _
  %s6 = ssub.s32 1, %s4
  %s7 = scalar_select 0, %s6, %s4
  $region1: #{music_transformer_forward.149} parent=0
    #allocation2 [shape = 'u8[32768]{0}', space=vmem, size = 0x8000, scoped, tag = 'output window, operand 0, single buffered']
    #allocation3 [shape = 's32[1]{0}', space=sflag, size = 0x4, scoped, tag = 'scoped memory for music_transformer_forward.149']
    %8 = vsyncpa [#allocation3], 0
    // Predicated region
    $region2: #{music_transformer_forward.149} parent=1 // pred_check
      _
    $region3: #{music_transformer_forward.149} parent=1 // pred_check_branch
      %10 = sbr.rel (0) target = $region5
    $region4: #{music_transformer_forward.149} parent=1 // pred_region
      _
    $region5: #{music_transformer_forward.149} parent=1 // pred_fallthru
      _
    // Predicated region
    $region6: #{music_transformer_forward.149} parent=1 // pred_check
      _
    $region7: #{music_transformer_forward.149} parent=1 // pred_check_branch
      %12 = sbr.rel (0) target = $region9
    $region8: #{music_transformer_forward.149} parent=1 // pred_region
      _
    $region9: #{music_transformer_forward.149} parent=1 // pred_fallthru
      _
    // Predicated region
    $region10: #{music_transformer_forward.149} parent=1 // pred_check
      _
    $region11: #{music_transformer_forward.149} parent=1 // pred_check_branch
      %14 = sbr.rel (0) target = $region13
    $region12: #{music_transformer_forward.149} parent=1 // pred_region
      _
    $region13: #{music_transformer_forward.149} parent=1 // pred_fallthru
      _
    %p16 = scmp.eq.s32.totalorder 0, 0
    // Predicated region
    $region14: #{music_transformer_forward.149} parent=1 // pred_check
      %p17 = pneg %p16
    $region15: #{music_transformer_forward.149} parent=1 // pred_check_branch
      %19 = sbr.rel (%p17) target = $region17
    $region16: #{music_transformer_forward.149} parent=1 // pred_region
      %vm20 = vcmask 261120
      %21 = vst.msk [vmem:[#allocation2] sm:$0xff] %vm20, 0.0
      %22 = vst.msk [vmem:[#allocation2 + $0x8] sm:$0xff] %vm20, 0.0
      %23 = vst.msk [vmem:[#allocation2 + $0x10] sm:$0xff] %vm20, 0.0
      %24 = vst.msk [vmem:[#allocation2 + $0x18] sm:$0xff] %vm20, 0.0
      %25 = vst.msk [vmem:[#allocation2 + $0x20] sm:$0xff] %vm20, 0.0
      %26 = vst.msk [vmem:[#allocation2 + $0x28] sm:$0xff] %vm20, 0.0
      %27 = vst.msk [vmem:[#allocation2 + $0x30] sm:$0xff] %vm20, 0.0
      %28 = vst.msk [vmem:[#allocation2 + $0x38] sm:$0xff] %vm20, 0.0
    $region17: #{music_transformer_forward.149} parent=1 // pred_fallthru
      _
    %v29 = vld [vmem:[#allocation2] sm:$0xff]
    %v30 = vld [vmem:[#allocation2 + $0x8] sm:$0xff]
    %v31 = vld [vmem:[#allocation2 + $0x10] sm:$0xff]
    %v32 = vld [vmem:[#allocation2 + $0x18] sm:$0xff]
    %v33 = vld [vmem:[#allocation2 + $0x20] sm:$0xff]
    %v34 = vld [vmem:[#allocation2 + $0x28] sm:$0xff]
    %v35 = vld [vmem:[#allocation2 + $0x30] sm:$0xff]
    %v36 = vld [vmem:[#allocation2 + $0x38] sm:$0xff]
    %v37 = vld [vmem:[%s0] sm:$0xf]
    %v38 = vld [vmem:[%s0 + $0x4] sm:$0xf]
    %v39 = vld [vmem:[%s0 + $0x8] sm:$0xf]
    %v40 = vld [vmem:[%s0 + $0xc] sm:$0xf]
    %v41 = vld [vmem:[%s0 + $0x10] sm:$0xf]
    %v42 = vld [vmem:[%s0 + $0x14] sm:$0xf]
    %v43 = vld [vmem:[%s0 + $0x18] sm:$0xf]
    %v44 = vld [vmem:[%s0 + $0x1c] sm:$0xf]
    %v45 = vld [vmem:[%s1] sm:$0xf]
    %v46 = vld [vmem:[%s1 + $0x4] sm:$0xf]
    %v47 = vld [vmem:[%s1 + $0x8] sm:$0xf]
    %v48 = vld [vmem:[%s1 + $0xc] sm:$0xf]
    %v57 = vunpack.c.l.b16 %v37
    %v58 = vunpack.c.l.b16 %v38
    %v59 = vunpack.c.l.b16 %v39
    %v60 = vunpack.c.l.b16 %v40
    %v61 = vunpack.c.l.b16 %v41
    %v62 = vunpack.c.l.b16 %v42
    %v63 = vunpack.c.l.b16 %v43
    %v64 = vunpack.c.l.b16 %v44
    %v65 = vpack.c.b16 %v58, %v57
    %v66 = vpack.c.b16 %v60, %v59
    %v67 = vpack.c.b16 %v62, %v61
    %v68 = vpack.c.b16 %v64, %v63
    %v73 = vunpack.c.l.b16 %v45
    %v74 = vunpack.c.l.b16 %v46
    %v75 = vunpack.c.l.b16 %v47
    %v76 = vunpack.c.l.b16 %v48
    %v77 = vpack.c.b16 %v74, %v73
    %v78 = vpack.c.b16 %v76, %v75
    %vm81 = vcmask 261120
    %v83 = vsel %vm81, %v65, 0
    %v86 = vsel %vm81, %v66, 0
    %v89 = vsel %vm81, %v67, 0
    %v92 = vsel %vm81, %v68, 0
    %94 = vmatprep.subr.bf16.mxu0 0
    %95 = vmatpush1.bf16.msra.mxu0 %v77
    %96 = vmatprep.subr.bf16.mxu0 0
    %97 = vmatpush1.bf16.msra.mxu0 %v78
    %98 = vmatprep.subr.bf16.mxu0 0
    %99 = vmatpush1.bf16.msra.mxu0 0
    %100 = vmatprep.subr.bf16.mxu0 0
    %101 = vmatpush1.bf16.msra.mxu0 0
    %102 = vmatprep.subr.bf16.mxu0 0
    %103 = vmatpush1.bf16.msra.mxu0 0
    %104 = vmatprep.subr.bf16.mxu0 0
    %105 = vmatpush1.bf16.msra.mxu0 0
    %106 = vmatprep.subr.bf16.mxu0 0
    %107 = vmatpush1.bf16.msra.mxu0 0
    %108 = vmatprep.subr.bf16.mxu0 0
    %109 = vmatpush1.bf16.msra.mxu0 0
    %110 = vmatprep.subr.bf16.mxu0 0
    %111 = vmatpush1.bf16.msra.mxu0 0
    %112 = vmatprep.subr.bf16.mxu0 0
    %113 = vmatpush1.bf16.msra.mxu0 0
    %114 = vmatprep.subr.bf16.mxu0 0
    %115 = vmatpush1.bf16.msra.mxu0 0
    %116 = vmatprep.subr.bf16.mxu0 0
    %117 = vmatpush1.bf16.msra.mxu0 0
    %118 = vmatprep.subr.bf16.mxu0 0
    %119 = vmatpush1.bf16.msra.mxu0 0
    %120 = vmatprep.subr.bf16.mxu0 0
    %121 = vmatpush1.bf16.msra.mxu0 0
    %122 = vmatprep.subr.bf16.mxu0 0
    %123 = vmatpush1.bf16.msra.mxu0 0
    %124 = vmatprep.subr.bf16.mxu0 0
    %125 = vmatpush1.bf16.msra.mxu0 0
    %126 = vmatprep.mubr.bf16.mxu0 0
    %127 = vmatmul.mubr.bf16.gmra.mrb[0].mxu0 %v83
    %v128 = vpop.f32.mrb[0].mxu0
    %v129 = vadd.f32 0.0, %v128
    %v130 = vpop.f32.mrb[0].mxu0
    %v131 = vpop.f32.mrb[0].mxu0
    %v132 = vadd.f32 0.0, %v131
    %v133 = vpop.f32.mrb[0].mxu0
    %134 = vmatprep.mubr.bf16.mxu0 0
    %135 = vmatmul.mubr.bf16.gmra.mrb[0].mxu0 %v86
    %v136 = vpop.f32.mrb[0].mxu0
    %v137 = vadd.f32 0.0, %v136
    %v138 = vpop.f32.mrb[0].mxu0
    %v139 = vpop.f32.mrb[0].mxu0
    %v140 = vadd.f32 0.0, %v139
    %v141 = vpop.f32.mrb[0].mxu0
    %142 = vmatprep.mubr.bf16.mxu0 0
    %143 = vmatmul.mubr.bf16.gmra.mrb[0].mxu0 %v89
    %v144 = vpop.f32.mrb[0].mxu0
    %v145 = vadd.f32 0.0, %v144
    %v146 = vpop.f32.mrb[0].mxu0
    %v147 = vpop.f32.mrb[0].mxu0
    %v148 = vadd.f32 0.0, %v147
    %v149 = vpop.f32.mrb[0].mxu0
    %150 = vmatprep.mubr.bf16.mxu0 0
    %151 = vmatmul.mubr.bf16.gmra.mrb[0].mxu0 %v92
    %v152 = vpop.f32.mrb[0].mxu0
    %v153 = vadd.f32 0.0, %v152
    %v154 = vpop.f32.mrb[0].mxu0
    %v155 = vpop.f32.mrb[0].mxu0
    %v156 = vadd.f32 0.0, %v155
    %v157 = vpop.f32.mrb[0].mxu0
    %158 = vdwg.mxu0
    %v159 = vadd.f32 %v29, %v129
    %v160 = vadd.f32 %v30, %v132
    %v161 = vadd.f32 %v31, %v137
    %v162 = vadd.f32 %v32, %v140
    %v163 = vadd.f32 %v33, %v145
    %v164 = vadd.f32 %v34, %v148
    %v165 = vadd.f32 %v35, %v153
    %v166 = vadd.f32 %v36, %v156
    %167 = vst.msk [vmem:[#allocation2] sm:$0xff] %vm81, %v159
    %168 = vst.msk [vmem:[#allocation2 + $0x8] sm:$0xff] %vm81, %v160
    %169 = vst.msk [vmem:[#allocation2 + $0x10] sm:$0xff] %vm81, %v161
    %170 = vst.msk [vmem:[#allocation2 + $0x18] sm:$0xff] %vm81, %v162
    %171 = vst.msk [vmem:[#allocation2 + $0x20] sm:$0xff] %vm81, %v163
    %172 = vst.msk [vmem:[#allocation2 + $0x28] sm:$0xff] %vm81, %v164
    %173 = vst.msk [vmem:[#allocation2 + $0x30] sm:$0xff] %vm81, %v165
    %174 = vst.msk [vmem:[#allocation2 + $0x38] sm:$0xff] %vm81, %v166
    // Predicated region
    $region18: #{music_transformer_forward.149} parent=1 // pred_check
      %p175 = pneg %p16
    $region19: #{music_transformer_forward.149} parent=1 // pred_check_branch
      %177 = sbr.rel (%p175) target = $region21
    $region20: #{music_transformer_forward.149} parent=1 // pred_region
      %v178 = vld [vmem:[#allocation2] sm:$0xff]
      %v179 = vld [vmem:[#allocation2 + $0x8] sm:$0xff]
      %v180 = vld [vmem:[#allocation2 + $0x10] sm:$0xff]
      %v181 = vld [vmem:[#allocation2 + $0x18] sm:$0xff]
      %v182 = vld [vmem:[#allocation2 + $0x20] sm:$0xff]
      %v183 = vld [vmem:[#allocation2 + $0x28] sm:$0xff]
      %v184 = vld [vmem:[#allocation2 + $0x30] sm:$0xff]
      %v185 = vld [vmem:[#allocation2 + $0x38] sm:$0xff]
      %v186 = vld [vmem:[%s2] sm:$0x1]
      %v188 = vlaneseq
      %v189 = vshrl.u32 %v188, 7
      %v190 = vsub.s32 0, %v189
      %v191 = vrot.slane %v186, %v190
      %v193 = vadd.f32 %v178, %v191
      %v194 = vadd.f32 %v179, %v191
      %v195 = vadd.f32 %v180, %v191
      %v196 = vadd.f32 %v181, %v191
      %v197 = vadd.f32 %v182, %v191
      %v198 = vadd.f32 %v183, %v191
      %v199 = vadd.f32 %v184, %v191
      %v200 = vadd.f32 %v185, %v191
      %201 = vst.msk [vmem:[#allocation2] sm:$0xff] %vm81, %v193
      %202 = vst.msk [vmem:[#allocation2 + $0x8] sm:$0xff] %vm81, %v194
      %203 = vst.msk [vmem:[#allocation2 + $0x10] sm:$0xff] %vm81, %v195
      %204 = vst.msk [vmem:[#allocation2 + $0x18] sm:$0xff] %vm81, %v196
      %205 = vst.msk [vmem:[#allocation2 + $0x20] sm:$0xff] %vm81, %v197
      %206 = vst.msk [vmem:[#allocation2 + $0x28] sm:$0xff] %vm81, %v198
      %207 = vst.msk [vmem:[#allocation2 + $0x30] sm:$0xff] %vm81, %v199
      %208 = vst.msk [vmem:[#allocation2 + $0x38] sm:$0xff] %vm81, %v200
    $region21: #{music_transformer_forward.149} parent=1 // pred_fallthru
      _
    // Predicated region
    $region22: #{music_transformer_forward.149} parent=1 // pred_check
      _
    $region23: #{music_transformer_forward.149} parent=1 // pred_check_branch
      %210 = sbr.rel (0) target = $region25
    $region24: #{music_transformer_forward.149} parent=1 // pred_region
      %s212 = ssub.s32 1024, 1024
      %213 = vsyncadd [#allocation3], %s212
      %s214 = sshll.u32 [#allocation2], 4
      %s215 = int_to_ptr.vmem [resolvable:$true] %s214
      %220 = dma.vmem_to_hbm [thread:$0]  %s215, 1024, %s3, [#allocation3], 128, 128, 8
    $region25: #{music_transformer_forward.149} parent=1 // pred_fallthru
      _
    // Predicated region
    $region26: #{music_transformer_forward.149} parent=1 // pred_check
      _
    $region27: #{music_transformer_forward.149} parent=1 // pred_check_branch
      %222 = sbr.rel (0) target = $region29
    $region28: #{music_transformer_forward.149} parent=1 // pred_region
      %223 = dma.done [#allocation3], 1024
    $region29: #{music_transformer_forward.149} parent=1 // pred_fallthru
      _
    %224 = vsyncpa [#allocation3], 1

// kernel: music_transformer_forward.89
$region0: #{music_transformer_forward.89}
  #allocation0 [shape = 'u32[]', space=smem, size = 0x4, offset = 0x4, fixed_abs, tag = 'smem constant byte address 0x4 - core index']
  #allocation1 [shape = 'u32[144,128]{1,0:T(1,128)}', space=vmem, size = 0x12000, scoped, tag = 'internal scratch']
  %s0 = inlined_call_operand.vmem [shape: bf16[8,8,32], index: 0, kind: input, shape index: {}]
  %s1 = inlined_call_operand.vmem [shape: bf16[8,8,32], index: 1, kind: input, shape index: {}]
  %s2 = inlined_call_operand.vmem [shape: bf16[8,8,32], index: 2, kind: input, shape index: {}]
  %s3 = inlined_call_operand.vmem [shape: bf16[32,32], index: 3, kind: input, shape index: {}]
  %s4 = inlined_call_operand.vmem [shape: f32[1,32], index: 4, kind: input, shape index: {}]
  %s5 = inlined_call_operand.vmem [shape: f32[8,8,32], index: 5, kind: output, shape index: {}]
  %s6 = sld [smem:[#allocation0]]
  $region53: #{music_transformer_forward.89} parent=0
    _
  %s8 = ssub.s32 1, %s6
  %s9 = scalar_select 0, %s8, %s6
  loop: start=0, step=1, limit=10
  $region2: #{music_transformer_forward.89} parent=0 // loop_pre_header
    _
  $region3: #{music_transformer_forward.89} parent=0 // loop_header
    %s11 = sphi 0, %s15
    %p12 = scmp.ge.s32.totalorder %s11, 10
    %s21 = sphi 0, %s23
    %s24 = sphi 0, %s21
    %s25 = sphi 0, %s24
    %s41 = sphi 0, %s25
    %s47 = sphi 0, %s49
    %s50 = sphi 0, %s47
    %s51 = sphi 0, %s50
    %s67 = sphi 0, %s51
    %s73 = sphi 0, %s75
    %s76 = sphi 0, %s73
    %s77 = sphi 0, %s76
    %s93 = sphi 0, %s77
    %s97 = sphi 0, %s97
    %s99 = sphi 0, %s97
    %s100 = sphi 0, %s99
    %s114 = sphi 0, %s100
    %s118 = sphi 0, %s118
    %s120 = sphi 0, %s118
    %s121 = sphi 0, %s120
    %s135 = sphi 0, %s121
    %s141 = sphi 0, %s143
    %s144 = sphi 0, %s141
    %s145 = sphi 0, %s144
    %s161 = sphi 0, %s145
  $region4: #{music_transformer_forward.89} parent=0 // loop_header_branch
    %14 = sbr.rel (%p12) target = $region8
  $region5: #{music_transformer_forward.89} parent=0 // loop_body
    %s16 = ssub.s32 %s11, 1
    %s17 = ssub.s32 %s11, 2
    %s18 = sadd.s32 %s11, 1
    %s19 = ssub.s32 %s11, %s18
    %p20 = scmp.eq.s32.totalorder %s19, 0
    %s22 = sadd.s32 %s21, 1
    %s23 = scalar_select %p20, %s21, %s22
    %p26 = pneg %p20
    %p27 = scmp.eq.s32.totalorder %s11, 7
    %p28 = por %p26, %p27
    %p29 = scmp.ne.s32.totalorder %s21, %s24
    %p30 = scmp.eq.s32.totalorder %s11, 0
    %p31 = por %p29, %p30
    %p32 = scmp.ne.s32.totalorder %s21, %s24
    %p33 = scmp.eq.s32.totalorder %s16, 7
    %p34 = por %p32, %p33
    %p35 = scmp.ne.s32.totalorder %s24, %s25
    %p36 = scmp.eq.s32.totalorder %s16, 0
    %p37 = por %p35, %p36
    %p38 = scmp.ne.s32.totalorder %s24, %s25
    %p39 = scmp.eq.s32.totalorder %s17, 7
    %p40 = por %p38, %p39
    %p42 = scmp.ne.s32.totalorder %s25, %s41
    %p43 = scmp.eq.s32.totalorder %s17, 0
    %p44 = por %p42, %p43
    %s45 = ssub.s32 %s11, %s18
    %p46 = scmp.eq.s32.totalorder %s45, 0
    %s48 = sadd.s32 %s47, 1
    %s49 = scalar_select %p46, %s47, %s48
    %p52 = pneg %p46
    %p53 = scmp.eq.s32.totalorder %s11, 7
    %p54 = por %p52, %p53
    %p55 = scmp.ne.s32.totalorder %s47, %s50
    %p56 = scmp.eq.s32.totalorder %s11, 0
    %p57 = por %p55, %p56
    %p58 = scmp.ne.s32.totalorder %s47, %s50
    %p59 = scmp.eq.s32.totalorder %s16, 7
    %p60 = por %p58, %p59
    %p61 = scmp.ne.s32.totalorder %s50, %s51
    %p62 = scmp.eq.s32.totalorder %s16, 0
    %p63 = por %p61, %p62
    %p64 = scmp.ne.s32.totalorder %s50, %s51
    %p65 = scmp.eq.s32.totalorder %s17, 7
    %p66 = por %p64, %p65
    %p68 = scmp.ne.s32.totalorder %s51, %s67
    %p69 = scmp.eq.s32.totalorder %s17, 0
    %p70 = por %p68, %p69
    %s71 = ssub.s32 %s11, %s18
    %p72 = scmp.eq.s32.totalorder %s71, 0
    %s74 = sadd.s32 %s73, 1
    %s75 = scalar_select %p72, %s73, %s74
    %p78 = pneg %p72
    %p79 = scmp.eq.s32.totalorder %s11, 7
    %p80 = por %p78, %p79
    %p81 = scmp.ne.s32.totalorder %s73, %s76
    %p82 = scmp.eq.s32.totalorder %s11, 0
    %p83 = por %p81, %p82
    %p84 = scmp.ne.s32.totalorder %s73, %s76
    %p85 = scmp.eq.s32.totalorder %s16, 7
    %p86 = por %p84, %p85
    %p87 = scmp.ne.s32.totalorder %s76, %s77
    %p88 = scmp.eq.s32.totalorder %s16, 0
    %p89 = por %p87, %p88
    %p90 = scmp.ne.s32.totalorder %s76, %s77
    %p91 = scmp.eq.s32.totalorder %s17, 7
    %p92 = por %p90, %p91
    %p94 = scmp.ne.s32.totalorder %s77, %s93
    %p95 = scmp.eq.s32.totalorder %s17, 0
    %p96 = por %p94, %p95
    %s98 = sadd.s32 %s97, 1
    %p101 = scmp.eq.s32.totalorder %s11, 7
    %p102 = scmp.ne.s32.totalorder %s97, %s99
    %p103 = scmp.eq.s32.totalorder %s11, 0
    %p104 = por %p102, %p103
    %p105 = scmp.ne.s32.totalorder %s97, %s99
    %p106 = scmp.eq.s32.totalorder %s16, 7
    %p107 = por %p105, %p106
    %p108 = scmp.ne.s32.totalorder %s99, %s100
    %p109 = scmp.eq.s32.totalorder %s16, 0
    %p110 = por %p108, %p109
    %p111 = scmp.ne.s32.totalorder %s99, %s100
    %p112 = scmp.eq.s32.totalorder %s17, 7
    %p113 = por %p111, %p112
    %p115 = scmp.ne.s32.totalorder %s100, %s114
    %p116 = scmp.eq.s32.totalorder %s17, 0
    %p117 = por %p115, %p116
    %s119 = sadd.s32 %s118, 1
    %p122 = scmp.eq.s32.totalorder %s11, 7
    %p123 = scmp.ne.s32.totalorder %s118, %s120
    %p124 = scmp.eq.s32.totalorder %s11, 0
    %p125 = por %p123, %p124
    %p126 = scmp.ne.s32.totalorder %s118, %s120
    %p127 = scmp.eq.s32.totalorder %s16, 7
    %p128 = por %p126, %p127
    %p129 = scmp.ne.s32.totalorder %s120, %s121
    %p130 = scmp.eq.s32.totalorder %s16, 0
    %p131 = por %p129, %p130
    %p132 = scmp.ne.s32.totalorder %s120, %s121
    %p133 = scmp.eq.s32.totalorder %s17, 7
    %p134 = por %p132, %p133
    %p136 = scmp.ne.s32.totalorder %s121, %s135
    %p137 = scmp.eq.s32.totalorder %s17, 0
    %p138 = por %p136, %p137
    %s139 = ssub.s32 %s11, %s18
    %p140 = scmp.eq.s32.totalorder %s139, 0
    %s142 = sadd.s32 %s141, 1
    %s143 = scalar_select %p140, %s141, %s142
    %p146 = pneg %p140
    %p147 = scmp.eq.s32.totalorder %s11, 7
    %p148 = por %p146, %p147
    %p149 = scmp.ne.s32.totalorder %s141, %s144
    %p150 = scmp.eq.s32.totalorder %s11, 0
    %p151 = por %p149, %p150
    %p152 = scmp.ne.s32.totalorder %s141, %s144
    %p153 = scmp.eq.s32.totalorder %s16, 7
    %p154 = por %p152, %p153
    %p155 = scmp.ne.s32.totalorder %s144, %s145
    %p156 = scmp.eq.s32.totalorder %s16, 0
    %p157 = por %p155, %p156
    %p158 = scmp.ne.s32.totalorder %s144, %s145
    %p159 = scmp.eq.s32.totalorder %s17, 7
    %p160 = por %p158, %p159
    %p162 = scmp.ne.s32.totalorder %s145, %s161
    %p163 = scmp.eq.s32.totalorder %s17, 0
    %p164 = por %p162, %p163
    %p165 = scmp.le.s32.totalorder 1, %s11
    %p166 = scmp.lt.s32.totalorder %s11, 9
    %p167 = pnand %p165, %p166
    %p168 = pneg %p167
    // Predicated region
    $region9: #{music_transformer_forward.89} parent=5 // pred_check
      _
    $region10: #{music_transformer_forward.89} parent=5 // pred_check_branch
      %170 = sbr.rel (%p167) target = $region12
    $region11: #{music_transformer_forward.89} parent=5 // pred_region
      %s171 = ssub.s32 %s11, 1
      // Predicated region
      $region13: #{music_transformer_forward.89} parent=11 // pred_check
        %p172 = pneg %p110
      $region14: #{music_transformer_forward.89} parent=11 // pred_check_branch
        %174 = sbr.rel (%p172) target = $region16
      $region15: #{music_transformer_forward.89} parent=11 // pred_region
        _
      $region16: #{music_transformer_forward.89} parent=11 // pred_fallthru
        _
      // Predicated region
      $region17: #{music_transformer_forward.89} parent=11 // pred_check
        %p175 = pneg %p131
      $region18: #{music_transformer_forward.89} parent=11 // pred_check_branch
        %177 = sbr.rel (%p175) target = $region20
      $region19: #{music_transformer_forward.89} parent=11 // pred_region
        _
      $region20: #{music_transformer_forward.89} parent=11 // pred_fallthru
        _
    $region12: #{music_transformer_forward.89} parent=5 // pred_fallthru
      _
    %p178 = scmp.lt.s32.totalorder %s11, 8
    // Predicated region
    $region21: #{music_transformer_forward.89} parent=5 // pred_check
      %p179 = pneg %p178
    $region22: #{music_transformer_forward.89} parent=5 // pred_check_branch
      %181 = sbr.rel (%p179) target = $region24
    $region23: #{music_transformer_forward.89} parent=5 // pred_region
      // Predicated region
      $region25: #{music_transformer_forward.89} parent=23 // pred_check
        %p182 = pneg %p31
      $region26: #{music_transformer_forward.89} parent=23 // pred_check_branch
        %184 = sbr.rel (%p182) target = $region28
      $region27: #{music_transformer_forward.89} parent=23 // pred_region
        %p185 = scmp.lt.s32.totalorder %s11, 7
        %s186 = scalar_select %p185, %s11, 7
        %s187 = smul.addr %s186, 4
        %s188 = scalar_lea.vmem %s0, %s187
      $region28: #{music_transformer_forward.89} parent=23 // pred_fallthru
        _
      // Predicated region
      $region29: #{music_transformer_forward.89} parent=23 // pred_check
        %p189 = pneg %p57
      $region30: #{music_transformer_forward.89} parent=23 // pred_check_branch
        %191 = sbr.rel (%p189) target = $region32
      $region31: #{music_transformer_forward.89} parent=23 // pred_region
        %p192 = scmp.lt.s32.totalorder %s11, 7
        %s193 = scalar_select %p192, %s11, 7
        %s194 = smul.addr %s193, 4
        %s195 = scalar_lea.vmem %s1, %s194
      $region32: #{music_transformer_forward.89} parent=23 // pred_fallthru
        _
      // Predicated region
      $region33: #{music_transformer_forward.89} parent=23 // pred_check
        %p196 = pneg %p83
      $region34: #{music_transformer_forward.89} parent=23 // pred_check_branch
        %198 = sbr.rel (%p196) target = $region36
      $region35: #{music_transformer_forward.89} parent=23 // pred_region
        %p199 = scmp.lt.s32.totalorder %s11, 7
        %s200 = scalar_select %p199, %s11, 7
        %s201 = smul.addr %s200, 4
        %s202 = scalar_lea.vmem %s2, %s201
      $region36: #{music_transformer_forward.89} parent=23 // pred_fallthru
        _
    $region24: #{music_transformer_forward.89} parent=5 // pred_fallthru
      _
    %p203 = scmp.le.s32.totalorder 1, %s11
    %p204 = scmp.lt.s32.totalorder %s11, 9
    %p205 = pnand %p203, %p204
    %p206 = pneg %p205
    // Predicated region
    $region37: #{music_transformer_forward.89} parent=5 // pred_check
      _
    $region38: #{music_transformer_forward.89} parent=5 // pred_check_branch
      %208 = sbr.rel (%p205) target = $region40
    $region39: #{music_transformer_forward.89} parent=5 // pred_region
      %s209 = ssub.s32 %s11, 1
      %p210 = scmp.lt.s32.totalorder %s16, 7
      %s211 = scalar_select %p210, %s16, 7
      %s212 = smul.addr %s211, 4
      %s213 = scalar_lea.vmem %s0, %s212
      %p214 = pneg %p37
      %p215 = pneg %p34
      %p216 = scmp.lt.s32.totalorder %s16, 7
      %s217 = scalar_select %p216, %s16, 7
      %s218 = smul.addr %s217, 4
      %s219 = scalar_lea.vmem %s1, %s218
      %p220 = pneg %p63
      %p221 = pneg %p60
      %p222 = scmp.lt.s32.totalorder %s16, 7
      %s223 = scalar_select %p222, %s16, 7
      %s224 = smul.addr %s223, 4
      %s225 = scalar_lea.vmem %s2, %s224
      %p226 = pneg %p89
      %p227 = pneg %p86
      %p228 = pneg %p110
      %p229 = pneg %p107
      %p230 = pneg %p131
      %p231 = pneg %p128
      %p232 = pneg %p157
      %p233 = pneg %p154
      %p234 = scmp.lt.s32.totalorder %s16, 7
      %s235 = scalar_select %p234, %s16, 7
      %s236 = smul.addr %s235, 8
      %s237 = scalar_lea.vmem %s5, %s236
      %p238 = scmp.lt.s32.totalorder %s16, 7
      %s239 = scalar_select %p238, %s16, 7
      %s240 = smul.addr %s239, 4
      %s241 = scalar_lea.vmem %s0, %s240
      %p242 = scmp.lt.s32.totalorder %s16, 7
      %s243 = scalar_select %p242, %s16, 7
      %s244 = smul.addr %s243, 4
      %s245 = scalar_lea.vmem %s1, %s244
      %p246 = scmp.lt.s32.totalorder %s16, 7
      %s247 = scalar_select %p246, %s16, 7
      %s248 = smul.addr %s247, 4
      %s249 = scalar_lea.vmem %s2, %s248
      %p250 = scmp.lt.s32.totalorder %s16, 7
      %s251 = scalar_select %p250, %s16, 7
      %s252 = smul.addr %s251, 8
      %s253 = scalar_lea.vmem %s5, %s252
      %v255 = vld [vmem:[%s241] sm:$0xf]
      %v256 = vld [vmem:[%s245] sm:$0xf]
      %v257 = vld [vmem:[%s249] sm:$0xf]
      %v258 = vlaneseq
      %v259 = vshrl.u32 %v258, 7
      %v260 = vlaneseq
      %v261 = vand.u32 %v260, 127
      %vm262 = vcmp.gt.s32.totalorder %v261, %v259
      %v263 = vsel %vm262, -1e+30, 0.0
      %vm264 = vcmask 64512
      %v266 = vsel %vm264, %v255, 0
      %v269 = vsel %vm264, %v256, 0
      %271 = vmatprep.subr.bf16.mxu0 0
      %272 = vmatpush1.bf16.xpose.msra.mxu0 %v269
      %273 = vmatprep.subr.bf16.mxu0 0
      %274 = vmatpush1.bf16.xpose.msra.mxu0 0
      %275 = vmatprep.subr.bf16.mxu0 0
      %276 = vmatpush1.bf16.xpose.msra.mxu0 0
      %277 = vmatprep.subr.bf16.mxu0 0
      %278 = vmatpush1.bf16.xpose.msra.mxu0 0
      %279 = vmatprep.subr.bf16.mxu0 0
      %280 = vmatpush1.bf16.xpose.msra.mxu0 0
      %281 = vmatprep.subr.bf16.mxu0 0
      %282 = vmatpush1.bf16.xpose.msra.mxu0 0
      %283 = vmatprep.subr.bf16.mxu0 0
      %284 = vmatpush1.bf16.xpose.msra.mxu0 0
      %285 = vmatprep.subr.bf16.mxu0 0
      %286 = vmatpush1.bf16.xpose.msra.mxu0 0
      %287 = vmatprep.subr.bf16.mxu0 0
      %288 = vmatpush1.bf16.xpose.msra.mxu0 0
      %289 = vmatprep.subr.bf16.mxu0 0
      %290 = vmatpush1.bf16.xpose.msra.mxu0 0
      %291 = vmatprep.subr.bf16.mxu0 0
      %292 = vmatpush1.bf16.xpose.msra.mxu0 0
      %293 = vmatprep.subr.bf16.mxu0 0
      %294 = vmatpush1.bf16.xpose.msra.mxu0 0
      %295 = vmatprep.subr.bf16.mxu0 0
      %296 = vmatpush1.bf16.xpose.msra.mxu0 0
      %297 = vmatprep.subr.bf16.mxu0 0
      %298 = vmatpush1.bf16.xpose.msra.mxu0 0
      %299 = vmatprep.subr.bf16.mxu0 0
      %300 = vmatpush1.bf16.xpose.msra.mxu0 0
      %301 = vmatprep.subr.bf16.mxu0 0
      %302 = vmatpush1.bf16.xpose.msra.mxu0 0
      %303 = vmatprep.mubr.bf16.mxu0 0
      %304 = vmatmul.mubr.bf16.gmra.mrb[0].mxu0 %v266
      %v305 = vpop.f32.mrb[0].mxu0
      %v306 = vadd.f32 0.0, %v305
      %v307 = vpop.f32.mrb[0].mxu0
      %v308 = vpop.f32.mrb[0].mxu0
      %v309 = vpop.f32.mrb[0].mxu0
      %310 = vdwg.mxu0
      %v311 = vmul.f32 %v306, 0.35355338
      %v312 = vadd.f32 %v311, %v263
      %v313 = vsel %vm264, %v312, -inf
      %314 = vmax.xlane.f32.xlu0 %v313
      %v315 = vpop.xlane.xlu0 %314
      %v316 = vsub.f32 %v312, %v315
      %v317 = vmul.f32 %v316, 1.442695
      %v318 = vpow.pop %v317
      %v319 = vsel %vm264, %v318, 0.0
      %320 = vadd.xlane.f32.xlu0 %v319
      %v321 = vpop.xlane.xlu0 %320
      %v322 = vrcp.pop %v321
      %v323 = vmul.f32 %v318, %v322
      %v324 = vpack.c.bf16 %v323, %v323
      %v326 = vsel %vm264, %v324, 0
      %vm328 = vcmask 1043456
      %v330 = vsel %vm328, %v257, 0
      %332 = vmatprep.subr.bf16.mxu0 0
      %333 = vmatpush1.bf16.msra.mxu0 %v330
      %334 = vmatprep.subr.bf16.mxu0 0
      %335 = vmatpush1.bf16.msra.mxu0 0
      %336 = vmatprep.subr.bf16.mxu0 0
      %337 = vmatpush1.bf16.msra.mxu0 0
      %338 = vmatprep.subr.bf16.mxu0 0
      %339 = vmatpush1.bf16.msra.mxu0 0
      %340 = vmatprep.subr.bf16.mxu0 0
      %341 = vmatpush1.bf16.msra.mxu0 0
      %342 = vmatprep.subr.bf16.mxu0 0
      %343 = vmatpush1.bf16.msra.mxu0 0
      %344 = vmatprep.subr.bf16.mxu0 0
      %345 = vmatpush1.bf16.msra.mxu0 0
      %346 = vmatprep.subr.bf16.mxu0 0
      %347 = vmatpush1.bf16.msra.mxu0 0
      %348 = vmatprep.subr.bf16.mxu0 0
      %349 = vmatpush1.bf16.msra.mxu0 0
      %350 = vmatprep.subr.bf16.mxu0 0
      %351 = vmatpush1.bf16.msra.mxu0 0
      %352 = vmatprep.subr.bf16.mxu0 0
      %353 = vmatpush1.bf16.msra.mxu0 0
      %354 = vmatprep.subr.bf16.mxu0 0
      %355 = vmatpush1.bf16.msra.mxu0 0
      %356 = vmatprep.subr.bf16.mxu0 0
      %357 = vmatpush1.bf16.msra.mxu0 0
      %358 = vmatprep.subr.bf16.mxu0 0
      %359 = vmatpush1.bf16.msra.mxu0 0
      %360 = vmatprep.subr.bf16.mxu0 0
      %361 = vmatpush1.bf16.msra.mxu0 0
      %362 = vmatprep.subr.bf16.mxu0 0
      %363 = vmatpush1.bf16.msra.mxu0 0
      %364 = vmatprep.mubr.bf16.mxu0 0
      %365 = vmatmul.mubr.bf16.gmra.mrb[0].mxu0 %v326
      %v366 = vpop.f32.mrb[0].mxu0
      %v367 = vadd.f32 0.0, %v366
      %v368 = vpop.f32.mrb[0].mxu0
      %v369 = vpop.f32.mrb[0].mxu0
      %v370 = vpop.f32.mrb[0].mxu0
      %371 = vdwg.mxu0
      %v373 = vunpack.c.l.b16 %v255
      %v374 = vpack.c.b16 %v373, %v373
      %375 = vrot.lane.b32.xlu0 %v374, 120
      %v376 = vpop.permute.xlu0 %375
      %v378 = vunpack.c.l.b16 %v256
      %v379 = vpack.c.b16 %v378, %v378
      %380 = vrot.lane.b32.xlu0 %v379, 120
      %v381 = vpop.permute.xlu0 %380
      %v383 = vsel %vm264, %v376, 0
      %v386 = vsel %vm264, %v381, 0
      %388 = vmatprep.subr.bf16.mxu0 0
      %389 = vmatpush1.bf16.xpose.msra.mxu0 %v386
      %390 = vmatprep.subr.bf16.mxu0 0
      %391 = vmatpush1.bf16.xpose.msra.mxu0 0
      %392 = vmatprep.subr.bf16.mxu0 0
      %393 = vmatpush1.bf16.xpose.msra.mxu0 0
      %394 = vmatprep.subr.bf16.mxu0 0
      %395 = vmatpush1.bf16.xpose.msra.mxu0 0
      %396 = vmatprep.subr.bf16.mxu0 0
      %397 = vmatpush1.bf16.xpose.msra.mxu0 0
      %398 = vmatprep.subr.bf16.mxu0 0
      %399 = vmatpush1.bf16.xpose.msra.mxu0 0
      %400 = vmatprep.subr.bf16.mxu0 0
      %401 = vmatpush1.bf16.xpose.msra.mxu0 0
      %402 = vmatprep.subr.bf16.mxu0 0
      %403 = vmatpush1.bf16.xpose.msra.mxu0 0
      %404 = vmatprep.subr.bf16.mxu0 0
      %405 = vmatpush1.bf16.xpose.msra.mxu0 0
      %406 = vmatprep.subr.bf16.mxu0 0
      %407 = vmatpush1.bf16.xpose.msra.mxu0 0
      %408 = vmatprep.subr.bf16.mxu0 0
      %409 = vmatpush1.bf16.xpose.msra.mxu0 0
      %410 = vmatprep.subr.bf16.mxu0 0
      %411 = vmatpush1.bf16.xpose.msra.mxu0 0
      %412 = vmatprep.subr.bf16.mxu0 0
      %413 = vmatpush1.bf16.xpose.msra.mxu0 0
      %414 = vmatprep.subr.bf16.mxu0 0
      %415 = vmatpush1.bf16.xpose.msra.mxu0 0
      %416 = vmatprep.subr.bf16.mxu0 0
      %417 = vmatpush1.bf16.xpose.msra.mxu0 0
      %418 = vmatprep.subr.bf16.mxu0 0
      %419 = vmatpush1.bf16.xpose.msra.mxu0 0
      %420 = vmatprep.mubr.bf16.mxu0 0
      %421 = vmatmul.mubr.bf16.gmra.mrb[0].mxu0 %v383
      %v422 = vpop.f32.mrb[0].mxu0
      %v423 = vadd.f32 0.0, %v422
      %v424 = vpop.f32.mrb[0].mxu0
      %v425 = vpop.f32.mrb[0].mxu0
      %v426 = vpop.f32.mrb[0].mxu0
      %427 = vdwg.mxu0
      %v428 = vmul.f32 %v423, 0.35355338
      %v429 = vadd.f32 %v428, %v263
      %v430 = vsel %vm264, %v429, -inf
      %431 = vmax.xlane.f32.xlu0 %v430
      %v432 = vpop.xlane.xlu0 %431
      %v433 = vsub.f32 %v429, %v432
      %v434 = vmul.f32 %v433, 1.442695
      %v435 = vpow.pop %v434
      %v436 = vsel %vm264, %v435, 0.0
      %437 = vadd.xlane.f32.xlu0 %v436
      %v438 = vpop.xlane.xlu0 %437
      %v439 = vrcp.pop %v438
      %v440 = vmul.f32 %v435, %v439
      %v441 = vpack.c.bf16 %v440, %v440
      %v443 = vunpack.c.l.b16 %v257
      %v444 = vpack.c.b16 %v443, %v443
      %445 = vrot.lane.b32.xlu0 %v444, 120
      %v446 = vpop.permute.xlu0 %445
      %v448 = vsel %vm264, %v441, 0
      %v451 = vsel %vm328, %v446, 0
      %453 = vmatprep.subr.bf16.mxu0 0
      %454 = vmatpush1.bf16.msra.mxu0 %v451
      %455 = vmatprep.subr.bf16.mxu0 0
      %456 = vmatpush1.bf16.msra.mxu0 0
      %457 = vmatprep.subr.bf16.mxu0 0
      %458 = vmatpush1.bf16.msra.mxu0 0
      %459 = vmatprep.subr.bf16.mxu0 0
      %460 = vmatpush1.bf16.msra.mxu0 0
      %461 = vmatprep.subr.bf16.mxu0 0
      %462 = vmatpush1.bf16.msra.mxu0 0
      %463 = vmatprep.subr.bf16.mxu0 0
      %464 = vmatpush1.bf16.msra.mxu0 0
      %465 = vmatprep.subr.bf16.mxu0 0
      %466 = vmatpush1.bf16.msra.mxu0 0
      %467 = vmatprep.subr.bf16.mxu0 0
      %468 = vmatpush1.bf16.msra.mxu0 0
      %469 = vmatprep.subr.bf16.mxu0 0
      %470 = vmatpush1.bf16.msra.mxu0 0
      %471 = vmatprep.subr.bf16.mxu0 0
      %472 = vmatpush1.bf16.msra.mxu0 0
      %473 = vmatprep.subr.bf16.mxu0 0
      %474 = vmatpush1.bf16.msra.mxu0 0
      %475 = vmatprep.subr.bf16.mxu0 0
      %476 = vmatpush1.bf16.msra.mxu0 0
      %477 = vmatprep.subr.bf16.mxu0 0
      %478 = vmatpush1.bf16.msra.mxu0 0
      %479 = vmatprep.subr.bf16.mxu0 0
      %480 = vmatpush1.bf16.msra.mxu0 0
      %481 = vmatprep.subr.bf16.mxu0 0
      %482 = vmatpush1.bf16.msra.mxu0 0
      %483 = vmatprep.subr.bf16.mxu0 0
      %484 = vmatpush1.bf16.msra.mxu0 0
      %485 = vmatprep.mubr.bf16.mxu0 0
      %486 = vmatmul.mubr.bf16.gmra.mrb[0].mxu0 %v448
      %v487 = vpop.f32.mrb[0].mxu0
      %v488 = vadd.f32 0.0, %v487
      %v489 = vpop.f32.mrb[0].mxu0
      %v490 = vpop.f32.mrb[0].mxu0
      %v491 = vpop.f32.mrb[0].mxu0
      %492 = vdwg.mxu0
      %493 = vrot.lane.b32.xlu0 %v374, 112
      %v494 = vpop.permute.xlu0 %493
      %495 = vrot.lane.b32.xlu0 %v379, 112
      %v496 = vpop.permute.xlu0 %495
      %v498 = vsel %vm264, %v494, 0
      %v501 = vsel %vm264, %v496, 0
      %503 = vmatprep.subr.bf16.mxu0 0
      %504 = vmatpush1.bf16.xpose.msra.mxu0 %v501
      %505 = vmatprep.subr.bf16.mxu0 0
      %506 = vmatpush1.bf16.xpose.msra.mxu0 0
      %507 = vmatprep.subr.bf16.mxu0 0
      %508 = vmatpush1.bf16.xpose.msra.mxu0 0
      %509 = vmatprep.subr.bf16.mxu0 0
      %510 = vmatpush1.bf16.xpose.msra.mxu0 0
      %511 = vmatprep.subr.bf16.mxu0 0
      %512 = vmatpush1.bf16.xpose.msra.mxu0 0
      %513 = vmatprep.subr.bf16.mxu0 0
      %514 = vmatpush1.bf16.xpose.msra.mxu0 0
      %515 = vmatprep.subr.bf16.mxu0 0
      %516 = vmatpush1.bf16.xpose.msra.mxu0 0
      %517 = vmatprep.subr.bf16.mxu0 0
      %518 = vmatpush1.bf16.xpose.msra.mxu0 0
      %519 = vmatprep.subr.bf16.mxu0 0
      %520 = vmatpush1.bf16.xpose.msra.mxu0 0
      %521 = vmatprep.subr.bf16.mxu0 0
      %522 = vmatpush1.bf16.xpose.msra.mxu0 0
      %523 = vmatprep.subr.bf16.mxu0 0
      %524 = vmatpush1.bf16.xpose.msra.mxu0 0
      %525 = vmatprep.subr.bf16.mxu0 0
      %526 = vmatpush1.bf16.xpose.msra.mxu0 0
      %527 = vmatprep.subr.bf16.mxu0 0
      %528 = vmatpush1.bf16.xpose.msra.mxu0 0
      %529 = vmatprep.subr.bf16.mxu0 0
      %530 = vmatpush1.bf16.xpose.msra.mxu0 0
      %531 = vmatprep.subr.bf16.mxu0 0
      %532 = vmatpush1.bf16.xpose.msra.mxu0 0
      %533 = vmatprep.subr.bf16.mxu0 0
      %534 = vmatpush1.bf16.xpose.msra.mxu0 0
      %535 = vmatprep.mubr.bf16.mxu0 0
      %536 = vmatmul.mubr.bf16.gmra.mrb[0].mxu0 %v498
      %v537 = vpop.f32.mrb[0].mxu0
      %v538 = vadd.f32 0.0, %v537
      %v539 = vpop.f32.mrb[0].mxu0
      %v540 = vpop.f32.mrb[0].mxu0
      %v541 = vpop.f32.mrb[0].mxu0
      %542 = vdwg.mxu0
      %v543 = vmul.f32 %v538, 0.35355338
      %v544 = vadd.f32 %v543, %v263
      %v545 = vsel %vm264, %v544, -inf
      %546 = vmax.xlane.f32.xlu0 %v545
      %v547 = vpop.xlane.xlu0 %546
      %v548 = vsub.f32 %v544, %v547
      %v549 = vmul.f32 %v548, 1.442695
      %v550 = vpow.pop %v549
      %v551 = vsel %vm264, %v550, 0.0
      %552 = vadd.xlane.f32.xlu0 %v551
      %v553 = vpop.xlane.xlu0 %552
      %v554 = vrcp.pop %v553
      %v555 = vmul.f32 %v550, %v554
      %v556 = vpack.c.bf16 %v555, %v555
      %557 = vrot.lane.b32.xlu0 %v444, 112
      %v558 = vpop.permute.xlu0 %557
      %v560 = vsel %vm264, %v556, 0
      %v563 = vsel %vm328, %v558, 0
      %565 = vmatprep.subr.bf16.mxu0 0
      %566 = vmatpush1.bf16.msra.mxu0 %v563
      %567 = vmatprep.subr.bf16.mxu0 0
      %568 = vmatpush1.bf16.msra.mxu0 0
      %569 = vmatprep.subr.bf16.mxu0 0
      %570 = vmatpush1.bf16.msra.mxu0 0
      %571 = vmatprep.subr.bf16.mxu0 0
      %572 = vmatpush1.bf16.msra.mxu0 0
      %573 = vmatprep.subr.bf16.mxu0 0
      %574 = vmatpush1.bf16.msra.mxu0 0
      %575 = vmatprep.subr.bf16.mxu0 0
      %576 = vmatpush1.bf16.msra.mxu0 0
      %577 = vmatprep.subr.bf16.mxu0 0
      %578 = vmatpush1.bf16.msra.mxu0 0
      %579 = vmatprep.subr.bf16.mxu0 0
      %580 = vmatpush1.bf16.msra.mxu0 0
      %581 = vmatprep.subr.bf16.mxu0 0
      %582 = vmatpush1.bf16.msra.mxu0 0
      %583 = vmatprep.subr.bf16.mxu0 0
      %584 = vmatpush1.bf16.msra.mxu0 0
      %585 = vmatprep.subr.bf16.mxu0 0
      %586 = vmatpush1.bf16.msra.mxu0 0
      %587 = vmatprep.subr.bf16.mxu0 0
      %588 = vmatpush1.bf16.msra.mxu0 0
      %589 = vmatprep.subr.bf16.mxu0 0
      %590 = vmatpush1.bf16.msra.mxu0 0
      %591 = vmatprep.subr.bf16.mxu0 0
      %592 = vmatpush1.bf16.msra.mxu0 0
      %593 = vmatprep.subr.bf16.mxu0 0
      %594 = vmatpush1.bf16.msra.mxu0 0
      %595 = vmatprep.subr.bf16.mxu0 0
      %596 = vmatpush1.bf16.msra.mxu0 0
      %597 = vmatprep.mubr.bf16.mxu0 0
      %598 = vmatmul.mubr.bf16.gmra.mrb[0].mxu0 %v560
      %v599 = vpop.f32.mrb[0].mxu0
      %v600 = vadd.f32 0.0, %v599
      %v601 = vpop.f32.mrb[0].mxu0
      %v602 = vpop.f32.mrb[0].mxu0
      %v603 = vpop.f32.mrb[0].mxu0
      %604 = vdwg.mxu0
      %605 = vrot.lane.b32.xlu0 %v374, 104
      %v606 = vpop.permute.xlu0 %605
      %607 = vrot.lane.b32.xlu0 %v379, 104
      %v608 = vpop.permute.xlu0 %607
      %v610 = vsel %vm264, %v606, 0
      %v613 = vsel %vm264, %v608, 0
      %615 = vmatprep.subr.bf16.mxu0 0
      %616 = vmatpush1.bf16.xpose.msra.mxu0 %v613
      %617 = vmatprep.subr.bf16.mxu0 0
      %618 = vmatpush1.bf16.xpose.msra.mxu0 0
      %619 = vmatprep.subr.bf16.mxu0 0
      %620 = vmatpush1.bf16.xpose.msra.mxu0 0
      %621 = vmatprep.subr.bf16.mxu0 0
      %622 = vmatpush1.bf16.xpose.msra.mxu0 0
      %623 = vmatprep.subr.bf16.mxu0 0
      %624 = vmatpush1.bf16.xpose.msra.mxu0 0
      %625 = vmatprep.subr.bf16.mxu0 0
      %626 = vmatpush1.bf16.xpose.msra.mxu0 0
      %627 = vmatprep.subr.bf16.mxu0 0
      %628 = vmatpush1.bf16.xpose.msra.mxu0 0
      %629 = vmatprep.subr.bf16.mxu0 0
      %630 = vmatpush1.bf16.xpose.msra.mxu0 0
      %631 = vmatprep.subr.bf16.mxu0 0
      %632 = vmatpush1.bf16.xpose.msra.mxu0 0
      %633 = vmatprep.subr.bf16.mxu0 0
      %634 = vmatpush1.bf16.xpose.msra.mxu0 0
      %635 = vmatprep.subr.bf16.mxu0 0
      %636 = vmatpush1.bf16.xpose.msra.mxu0 0
      %637 = vmatprep.subr.bf16.mxu0 0
      %638 = vmatpush1.bf16.xpose.msra.mxu0 0
      %639 = vmatprep.subr.bf16.mxu0 0
      %640 = vmatpush1.bf16.xpose.msra.mxu0 0
      %641 = vmatprep.subr.bf16.mxu0 0
      %642 = vmatpush1.bf16.xpose.msra.mxu0 0
      %643 = vmatprep.subr.bf16.mxu0 0
      %644 = vmatpush1.bf16.xpose.msra.mxu0 0
      %645 = vmatprep.subr.bf16.mxu0 0
      %646 = vmatpush1.bf16.xpose.msra.mxu0 0
      %647 = vmatprep.mubr.bf16.mxu0 0
      %648 = vmatmul.mubr.bf16.gmra.mrb[0].mxu0 %v610
      %v649 = vpop.f32.mrb[0].mxu0
      %v650 = vadd.f32 0.0, %v649
      %v651 = vpop.f32.mrb[0].mxu0
      %v652 = vpop.f32.mrb[0].mxu0
      %v653 = vpop.f32.mrb[0].mxu0
      %654 = vdwg.mxu0
      %v655 = vmul.f32 %v650, 0.35355338
      %v656 = vadd.f32 %v655, %v263
      %v657 = vsel %vm264, %v656, -inf
      %658 = vmax.xlane.f32.xlu0 %v657
      %v659 = vpop.xlane.xlu0 %658
      %v660 = vsub.f32 %v656, %v659
      %v661 = vmul.f32 %v660, 1.442695
      %v662 = vpow.pop %v661
      %v663 = vsel %vm264, %v662, 0.0
      %664 = vadd.xlane.f32.xlu0 %v663
      %v665 = vpop.xlane.xlu0 %664
      %v666 = vrcp.pop %v665
      %v667 = vmul.f32 %v662, %v666
      %v668 = vpack.c.bf16 %v667, %v667
      %669 = vrot.lane.b32.xlu0 %v444, 104
      %v670 = vpop.permute.xlu0 %669
      %v672 = vsel %vm264, %v668, 0
      %v675 = vsel %vm328, %v670, 0
      %677 = vmatprep.subr.bf16.mxu0 0
      %678 = vmatpush1.bf16.msra.mxu0 %v675
      %679 = vmatprep.subr.bf16.mxu0 0
      %680 = vmatpush1.bf16.msra.mxu0 0
      %681 = vmatprep.subr.bf16.mxu0 0
      %682 = vmatpush1.bf16.msra.mxu0 0
      %683 = vmatprep.subr.bf16.mxu0 0
      %684 = vmatpush1.bf16.msra.mxu0 0
      %685 = vmatprep.subr.bf16.mxu0 0
      %686 = vmatpush1.bf16.msra.mxu0 0
      %687 = vmatprep.subr.bf16.mxu0 0
      %688 = vmatpush1.bf16.msra.mxu0 0
      %689 = vmatprep.subr.bf16.mxu0 0
      %690 = vmatpush1.bf16.msra.mxu0 0
      %691 = vmatprep.subr.bf16.mxu0 0
      %692 = vmatpush1.bf16.msra.mxu0 0
      %693 = vmatprep.subr.bf16.mxu0 0
      %694 = vmatpush1.bf16.msra.mxu0 0
      %695 = vmatprep.subr.bf16.mxu0 0
      %696 = vmatpush1.bf16.msra.mxu0 0
      %697 = vmatprep.subr.bf16.mxu0 0
      %698 = vmatpush1.bf16.msra.mxu0 0
      %699 = vmatprep.subr.bf16.mxu0 0
      %700 = vmatpush1.bf16.msra.mxu0 0
      %701 = vmatprep.subr.bf16.mxu0 0
      %702 = vmatpush1.bf16.msra.mxu0 0
      %703 = vmatprep.subr.bf16.mxu0 0
      %704 = vmatpush1.bf16.msra.mxu0 0
      %705 = vmatprep.subr.bf16.mxu0 0
      %706 = vmatpush1.bf16.msra.mxu0 0
      %707 = vmatprep.subr.bf16.mxu0 0
      %708 = vmatpush1.bf16.msra.mxu0 0
      %709 = vmatprep.mubr.bf16.mxu0 0
      %710 = vmatmul.mubr.bf16.gmra.mrb[0].mxu0 %v672
      %v711 = vpop.f32.mrb[0].mxu0
      %v712 = vadd.f32 0.0, %v711
      %v713 = vpop.f32.mrb[0].mxu0
      %v714 = vpop.f32.mrb[0].mxu0
      %v715 = vpop.f32.mrb[0].mxu0
      %716 = vdwg.mxu0
      %718 = vrot.lane.b32.xlu0 %v488, 8
      %v719 = vpop.permute.xlu0 %718
      %722 = vrot.lane.b32.xlu0 %v600, 16
      %v723 = vpop.permute.xlu0 %722
      %726 = vrot.lane.b32.xlu0 %v712, 24
      %v727 = vpop.permute.xlu0 %726
      %v729 = vsel %vm264, %v367, %v719
      %vm730 = vcmask 130048
      %v731 = vsel %vm730, %v729, %v723
      %vm732 = vcmask 195584
      %v733 = vsel %vm732, %v731, %v727
      %v734 = vpack.c.bf16 %v733, %v733
      %v735 = vld [vmem:[%s3] sm:$0xf]
      %v736 = vld [vmem:[%s3 + $0x4] sm:$0xf]
      %v737 = vld [vmem:[%s3 + $0x8] sm:$0xf]
      %v738 = vld [vmem:[%s3 + $0xc] sm:$0xf]
      %v739 = vld [vmem:[%s4] sm:$0x1]
      %v741 = vlaneseq
      %v742 = vshrl.u32 %v741, 7
      %v743 = vsub.s32 0, %v742
      %v744 = vrot.slane %v739, %v743
      %v750 = vunpack.c.l.b16 %v735
      %v751 = vunpack.c.l.b16 %v736
      %v752 = vunpack.c.l.b16 %v737
      %v753 = vunpack.c.l.b16 %v738
      %v754 = vpack.c.b16 %v751, %v750
      %v755 = vpack.c.b16 %v753, %v752
      %vm758 = vcmask 261120
      %v760 = vsel %vm758, %v734, 0
      %762 = vmatprep.subr.bf16.mxu0 0
      %763 = vmatpush1.bf16.msra.mxu0 %v754
      %764 = vmatprep.subr.bf16.mxu0 0
      %765 = vmatpush1.bf16.msra.mxu0 %v755
      %766 = vmatprep.subr.bf16.mxu0 0
      %767 = vmatpush1.bf16.msra.mxu0 0
      %768 = vmatprep.subr.bf16.mxu0 0
      %769 = vmatpush1.bf16.msra.mxu0 0
      %770 = vmatprep.subr.bf16.mxu0 0
      %771 = vmatpush1.bf16.msra.mxu0 0
      %772 = vmatprep.subr.bf16.mxu0 0
      %773 = vmatpush1.bf16.msra.mxu0 0
      %774 = vmatprep.subr.bf16.mxu0 0
      %775 = vmatpush1.bf16.msra.mxu0 0
      %776 = vmatprep.subr.bf16.mxu0 0
      %777 = vmatpush1.bf16.msra.mxu0 0
      %778 = vmatprep.subr.bf16.mxu0 0
      %779 = vmatpush1.bf16.msra.mxu0 0
      %780 = vmatprep.subr.bf16.mxu0 0
      %781 = vmatpush1.bf16.msra.mxu0 0
      %782 = vmatprep.subr.bf16.mxu0 0
      %783 = vmatpush1.bf16.msra.mxu0 0
      %784 = vmatprep.subr.bf16.mxu0 0
      %785 = vmatpush1.bf16.msra.mxu0 0
      %786 = vmatprep.subr.bf16.mxu0 0
      %787 = vmatpush1.bf16.msra.mxu0 0
      %788 = vmatprep.subr.bf16.mxu0 0
      %789 = vmatpush1.bf16.msra.mxu0 0
      %790 = vmatprep.subr.bf16.mxu0 0
      %791 = vmatpush1.bf16.msra.mxu0 0
      %792 = vmatprep.subr.bf16.mxu0 0
      %793 = vmatpush1.bf16.msra.mxu0 0
      %794 = vmatprep.mubr.bf16.mxu0 0
      %795 = vmatmul.mubr.bf16.gmra.mrb[0].mxu0 %v760
      %v796 = vpop.f32.mrb[0].mxu0
      %v797 = vadd.f32 %v744, %v796
      %v798 = vpop.f32.mrb[0].mxu0
      %v799 = vpop.f32.mrb[0].mxu0
      %v800 = vpop.f32.mrb[0].mxu0
      %801 = vdwg.mxu0
      %802 = vst.msk [vmem:[%s253] sm:$0xff] %vm758, %v797
      %p803 = scmp.lt.s32.totalorder %s16, 7
      %s804 = scalar_select %p803, %s16, 7
      %s805 = smul.addr %s804, 8
      %s806 = scalar_lea.vmem %s5, %s805
      // Predicated region
      $region41: #{music_transformer_forward.89} parent=39 // pred_check
        %p807 = pneg %p154
      $region42: #{music_transformer_forward.89} parent=39 // pred_check_branch
        %809 = sbr.rel (%p807) target = $region44
      $region43: #{music_transformer_forward.89} parent=39 // pred_region
        _
      $region44: #{music_transformer_forward.89} parent=39 // pred_fallthru
        _
    $region40: #{music_transformer_forward.89} parent=5 // pred_fallthru
      _
    %p810 = scmp.le.s32.totalorder 2, %s11
    // Predicated region
    $region45: #{music_transformer_forward.89} parent=5 // pred_check
      %p811 = pneg %p810
    $region46: #{music_transformer_forward.89} parent=5 // pred_check_branch
      %813 = sbr.rel (%p811) target = $region48
    $region47: #{music_transformer_forward.89} parent=5 // pred_region
      %s814 = ssub.s32 %s11, 2
      // Predicated region
      $region49: #{music_transformer_forward.89} parent=47 // pred_check
        %p815 = pneg %p160
      $region50: #{music_transformer_forward.89} parent=47 // pred_check_branch
        %817 = sbr.rel (%p815) target = $region52
      $region51: #{music_transformer_forward.89} parent=47 // pred_region
        %p818 = scmp.lt.s32.totalorder %s17, 7
        %s819 = scalar_select %p818, %s17, 7
        %s820 = smul.addr %s819, 8
        %s821 = scalar_lea.vmem %s5, %s820
      $region52: #{music_transformer_forward.89} parent=47 // pred_fallthru
        _
    $region48: #{music_transformer_forward.89} parent=5 // pred_fallthru
      _
  $region6: #{music_transformer_forward.89} parent=0 // loop_footer
    %s15 = sadd.s32 1, %s11
  $region7: #{music_transformer_forward.89} parent=0 // loop_footer_branch
    %10 = sbr.rel target = $region3
  $region8: #{music_transformer_forward.89} parent=0 // loop_exit
    _

</llo_original>
